<compile_context>
chip_gen: v7x
topology: tpu7x:2x2x1
jax: 0.10.0
libtpu: 0.0.40
codegen_flags: <defaults>
</compile_context>

<pallas_src>
import math
from functools import partial

import jax
import jax.numpy as jnp
from jax.experimental import pallas as pl
from jax.experimental.pallas import tpu as pltpu


# ----------------------------------------------------------------------------
# Kernel 1: fused depthwise-3x3 (WTConv stand-in) + 5x5 conv + bias + LayerNorm
# ----------------------------------------------------------------------------
def _conv_dw_ln_kernel(xp_ref, dww_ref, dwb_ref, w5_ref, b5_ref, g_ref, beta_ref,
                       o_ref, *, H, W, eps):
    f32 = jnp.float32
    xp = xp_ref[0]                                     # (H+6, W+6, cd) f32
    cd = xp.shape[-1]
    Hx, Wx = H + 4, W + 4

    # Depthwise 3x3 (SAME) evaluated over the 2-halo-extended window so the
    # 5x5 im2col below needs no separate pad/concat of the intermediate.
    dw = jnp.zeros((Hx, Wx, cd), f32)
    for t in range(9):                                 # static unroll over taps
        i, j = divmod(t, 3)
        dw = dw + xp[i:i + Hx, j:j + Wx, :] * dww_ref[t]
    dw = dw + dwb_ref[...]

    # Zero the halo so the 5x5 conv sees exact zero padding (as nn.Conv2d does).
    ri = jax.lax.broadcasted_iota(jnp.int32, (Hx, Wx, cd), 0)
    ci = jax.lax.broadcasted_iota(jnp.int32, (Hx, Wx, cd), 1)
    valid = (ri >= 2) & (ri < 2 + H) & (ci >= 2) & (ci < 2 + W)
    dw = jnp.where(valid, dw, 0.0)

    # im2col ONCE -> (H*W, 25*cd) in VMEM, single bf16 cast pass, then ONE
    # deep (K = 25*cd) MXU contraction instead of 25 K=cd matmuls + adds.
    cols = []
    for i in range(5):
        for j in range(5):
            rows = [dw[h + i, j:j + W, :] for h in range(H)]
            cols.append(jnp.concatenate(rows, axis=0))         # (H*W, cd)
    patch = jnp.concatenate(cols, axis=-1).astype(jnp.bfloat16)  # (H*W, 25*cd)
    y = jnp.dot(patch, w5_ref[...], preferred_element_type=f32) + b5_ref[...]

    # LayerNorm over channels (eps inside sqrt, biased variance — as PyTorch).
    mean = jnp.mean(y, axis=-1, keepdims=True)
    var = jnp.mean((y - mean) ** 2, axis=-1, keepdims=True)
    yn = (y - mean) * jax.lax.rsqrt(var + eps)
    o_ref[0] = yn * g_ref[...] + beta_ref[...]


# ----------------------------------------------------------------------------
# Kernel 2: fused qkv projection + multi-head attention + output projection
# ----------------------------------------------------------------------------
def _attn_proj_kernel(x_ref, conv_ref, qkvw_ref, wa_ref, wc_ref, b_ref, o_ref,
                      *, num_heads, dp, cd):
    # x block: (1, N, C) f32; take the attention part and cast once.
    xa = x_ref[0][:, cd:].astype(jnp.bfloat16)                   # (N, dim)

    # Fused q / k / v projection (scale folded into q weight, heads padded
    # to dp lanes with exact zero columns).  (N, dim) x (dim, 3*Hh*dp).
    qkv = jnp.dot(xa, qkvw_ref[...], preferred_element_type=jnp.float32)
    qkv = qkv.astype(jnp.bfloat16)
    hp = num_heads * dp

    outs = []
    for h in range(num_heads):                                   # static unroll
        qh = qkv[:, h * dp:(h + 1) * dp]                         # (N, dp)
        kh = qkv[:, hp + h * dp:hp + (h + 1) * dp]               # (N, dp)
        vh = qkv[:, 2 * hp + h * dp:2 * hp + (h + 1) * dp]       # (N, dp)
        # q @ k^T without an explicit relayout (contract on last dims).
        s = jax.lax.dot_general(qh, kh, (((1,), (1,)), ((), ())),
                                preferred_element_type=jnp.float32)  # (N, N)
        s = s - jnp.max(s, axis=-1, keepdims=True)
        p = jnp.exp(s)
        p = p * pl.reciprocal(jnp.sum(p, axis=-1, keepdims=True), approx=True)
        outs.append(jnp.dot(p.astype(jnp.bfloat16), vh,
                            preferred_element_type=jnp.float32))     # (N, dp)

    # All heads concatenated on the lane axis -> (N, Hh*dp) (128-lane aligned).
    attn = jnp.concatenate(outs, axis=-1).astype(jnp.bfloat16)

    # Output projection, split as attn @ Wa + conv @ Wc + b so no XLA concat
    # is needed and the store below is a dense 128-lane (N, C) tile.
    out = jnp.dot(attn, wa_ref[...], preferred_element_type=jnp.float32)
    out = out + jnp.dot(conv_ref[0], wc_ref[...],
                        preferred_element_type=jnp.float32)
    o_ref[0] = out + b_ref[...]


# ----------------------------------------------------------------------------
# Parameters (deterministic, matching the module's __init__ shapes, sr_ratio=1)
# ----------------------------------------------------------------------------
def init_params(key, origin_dim, num_heads):
    dim = origin_dim // 4 * 3
    cd = origin_dim // 4
    ks = jax.random.split(key, 6)

    def trunc_normal(k, shape, std=0.02):
        return std * jax.random.truncated_normal(k, -2.0, 2.0, shape, jnp.float32)

    p = {}
    # WTConv2d stand-in: depthwise 3x3 base conv (see TODO at top of file).
    p["wt_w"] = math.sqrt(2.0 / 9.0) * jax.random.normal(ks[0], (3, 3, cd), jnp.float32)
    p["wt_b"] = jnp.zeros((cd,), jnp.float32)
    # conv_part_2d: 5x5, cd -> cd (sr_ratio == 1 path), fan_out = 25*cd
    p["c2_w"] = math.sqrt(2.0 / (25 * cd)) * jax.random.normal(
        ks[1], (5, 5, cd, cd), jnp.float32)            # HWIO
    p["c2_b"] = jnp.zeros((cd,), jnp.float32)
    # convNorm (LayerNorm over cd)
    p["ln_g"] = jnp.ones((cd,), jnp.float32)
    p["ln_b"] = jnp.zeros((cd,), jnp.float32)
    # Linears stored as (in, out); qkv_bias=False
    p["q_w"] = trunc_normal(ks[2], (dim, dim))
    p["kv_w"] = trunc_normal(ks[3], (dim, 2 * dim))
    p["proj_w"] = trunc_normal(ks[4], (origin_dim, origin_dim))
    p["proj_b"] = jnp.zeros((origin_dim,), jnp.float32)
    return p


def prepare_params(p, origin_dim, num_heads, head_dim_pad):
    """Hoist all per-call weight prep out of the forward (done once)."""
    dim = origin_dim // 4 * 3
    cd = origin_dim // 4
    D = dim // num_heads
    Dp = head_dim_pad
    scale = D ** (-0.5)

    def pad_head_cols(w):  # (in, Hh*D) -> (in, Hh*Dp), exact zero pad per head
        in_dim = w.shape[0]
        w3 = w.reshape(in_dim, num_heads, D)
        pad = jnp.zeros((in_dim, num_heads, Dp - D), w.dtype)
        return jnp.concatenate([w3, pad], axis=-1).reshape(in_dim, num_heads * Dp)

    qw = pad_head_cols(p["q_w"] * scale)               # scale folded into q
    kw = pad_head_cols(p["kv_w"][:, :dim])
    vw = pad_head_cols(p["kv_w"][:, dim:])
    qkv_w = jnp.concatenate([qw, kw, vw], axis=1).astype(jnp.bfloat16)

    wa = p["proj_w"][:dim, :].reshape(num_heads, D, origin_dim)
    wa = jnp.concatenate(
        [wa, jnp.zeros((num_heads, Dp - D, origin_dim), wa.dtype)], axis=1)
    wa = wa.reshape(num_heads * Dp, origin_dim).astype(jnp.bfloat16)
    wc = p["proj_w"][dim:, :].astype(jnp.bfloat16)

    return {
        "dw_w": p["wt_w"].reshape(9, 1, cd),
        "dw_b": p["wt_b"].reshape(1, cd),
        "c5_w": p["c2_w"].reshape(25 * cd, cd).astype(jnp.bfloat16),
        "c5_b": p["c2_b"].reshape(1, cd),
        "ln_g": p["ln_g"].reshape(1, cd),
        "ln_b": p["ln_b"].reshape(1, cd),
        "qkv_w": qkv_w,                                 # (dim, 3*Hh*Dp) bf16
        "wa": wa,                                       # (Hh*Dp, C) bf16
        "wc": wc,                                       # (cd, C) bf16
        "proj_b": p["proj_b"].reshape(1, origin_dim),
    }


# ----------------------------------------------------------------------------
# Forward (sr_ratio = 1)
# ----------------------------------------------------------------------------
@partial(jax.jit, static_argnames=("H", "W", "num_heads", "head_dim_pad"))
def attention_forward(pp, x, *, H, W, num_heads, head_dim_pad):
    B, N, C = x.shape
    cd = C // 4
    dim = C - cd
    Dp = head_dim_pad
    params = pltpu.CompilerParams(dimension_semantics=("parallel",))

    # -------- conv branch: dw3x3 + 5x5 conv + bias + LayerNorm in ONE kernel
    xc = x[:, :, :cd].reshape(B, H, W, cd)
    xcp = jnp.pad(xc, ((0, 0), (3, 3), (3, 3), (0, 0)))         # pad 1 (dw) + 2 (5x5)
    conv_ln = pl.pallas_call(
        partial(_conv_dw_ln_kernel, H=H, W=W, eps=1e-5),
        out_shape=jax.ShapeDtypeStruct((B, N, cd), jnp.float32),
        grid=(B,),
        in_specs=[
            pl.BlockSpec((1, H + 6, W + 6, cd), lambda b: (b, 0, 0, 0)),
            pl.BlockSpec((9, 1, cd), lambda b: (0, 0, 0)),
            pl.BlockSpec((1, cd), lambda b: (0, 0)),
            pl.BlockSpec((25 * cd, cd), lambda b: (0, 0)),
            pl.BlockSpec((1, cd), lambda b: (0, 0)),
            pl.BlockSpec((1, cd), lambda b: (0, 0)),
            pl.BlockSpec((1, cd), lambda b: (0, 0)),
        ],
        out_specs=pl.BlockSpec((1, N, cd), lambda b: (b, 0, 0)),
        compiler_params=params,
    )(xcp, pp["dw_w"], pp["dw_b"], pp["c5_w"], pp["c5_b"], pp["ln_g"], pp["ln_b"])

    # exact erf-GELU (nn.GELU()) kept in XLA (see TODO at top of file)
    conv_act = jax.nn.gelu(conv_ln, approximate=False).astype(jnp.bfloat16)

    # -------- attention branch: qkv proj + MHA + output proj in ONE kernel
    out = pl.pallas_call(
        partial(_attn_proj_kernel, num_heads=num_heads, dp=Dp, cd=cd),
        out_shape=jax.ShapeDtypeStruct((B, N, C), jnp.float32),
        grid=(B,),
        in_specs=[
            pl.BlockSpec((1, N, C), lambda b: (b, 0, 0)),
            pl.BlockSpec((1, N, cd), lambda b: (b, 0, 0)),
            pl.BlockSpec((dim, 3 * num_heads * Dp), lambda b: (0, 0)),
            pl.BlockSpec((num_heads * Dp, C), lambda b: (0, 0)),
            pl.BlockSpec((cd, C), lambda b: (0, 0)),
            pl.BlockSpec((1, C), lambda b: (0, 0)),
        ],
        out_specs=pl.BlockSpec((1, N, C), lambda b: (b, 0, 0)),
        compiler_params=params,
    )(x, conv_act, pp["qkv_w"], pp["wa"], pp["wc"], pp["proj_b"])
    # attn_drop / proj_drop have rate 0.0 -> identity
    return out


# ----------------------------------------------------------------------------
if __name__ == "__main__":
    B, Hs, Ws = 2, 8, 8
    N = Hs * Ws
    origin_dim = 128              # dim = 96, conv_part_dim = 32
    num_heads = 4                 # head_dim = 24 -> padded to 32 lanes
    head_dim = (origin_dim // 4 * 3) // num_heads
    head_dim_pad = ((head_dim + 31) // 32) * 32

    key = jax.random.PRNGKey(0)
    kx, kp = jax.random.split(key)
    x = jax.random.normal(kx, (B, N, origin_dim), jnp.float32)
    raw = init_params(kp, origin_dim, num_heads)
    params = prepare_params(raw, origin_dim, num_heads, head_dim_pad)

    out = attention_forward(params, x, H=Hs, W=Ws, num_heads=num_heads,
                            head_dim_pad=head_dim_pad)
    out = jax.block_until_ready(out)
    assert out.shape == (B, N, origin_dim)
    assert bool(jnp.all(jnp.isfinite(out)))
    print("KERNEL_OK")
</pallas_src>

<mosaic_0001>
module attributes {stable_mosaic.version = 11 : i64} {
  func.func @_conv_dw_ln_kernel(%arg0: i32, %arg1: memref<1x14x14x32xf32, #tpu.memory_space<vmem>>, %arg2: memref<9x1x32xf32, #tpu.memory_space<vmem>>, %arg3: memref<1x32xf32, #tpu.memory_space<vmem>>, %arg4: memref<800x32xbf16, #tpu.memory_space<vmem>>, %arg5: memref<1x32xf32, #tpu.memory_space<vmem>>, %arg6: memref<1x32xf32, #tpu.memory_space<vmem>>, %arg7: memref<1x32xf32, #tpu.memory_space<vmem>>, %arg8: memref<1x64x32xf32, #tpu.memory_space<vmem>>) attributes {dimension_semantics = [#tpu.dimension_semantics<parallel>], iteration_bounds = array<i64: 2>, scalar_prefetch = 0 : i64, scratch_operands = 0 : i64, tpu.core_type = #tpu.core_type<tc>, window_params = [{transform_indices = @transform_0, window_bounds = array<i64: 1, 14, 14, 32>}, {pipeline_mode = #tpu.pipeline_mode<synchronous>, transform_indices = @transform_1, window_bounds = array<i64: 9, 1, 32>}, {pipeline_mode = #tpu.pipeline_mode<synchronous>, transform_indices = @transform_2, window_bounds = array<i64: 1, 32>}, {pipeline_mode = #tpu.pipeline_mode<synchronous>, transform_indices = @transform_3, window_bounds = array<i64: 800, 32>}, {pipeline_mode = #tpu.pipeline_mode<synchronous>, transform_indices = @transform_4, window_bounds = array<i64: 1, 32>}, {pipeline_mode = #tpu.pipeline_mode<synchronous>, transform_indices = @transform_5, window_bounds = array<i64: 1, 32>}, {pipeline_mode = #tpu.pipeline_mode<synchronous>, transform_indices = @transform_6, window_bounds = array<i64: 1, 32>}, {transform_indices = @transform_7, window_bounds = array<i64: 1, 64, 32>}]} {
    %c0 = arith.constant 0 : index
    %c0_0 = arith.constant 0 : index
    %c0_1 = arith.constant 0 : index
    %c0_2 = arith.constant 0 : index
    %0 = vector.load %arg1[%c0, %c0_0, %c0_1, %c0_2] : memref<1x14x14x32xf32, #tpu.memory_space<vmem>>, vector<1x14x14x32xf32>
    %1 = vector.shape_cast %0 : vector<1x14x14x32xf32> to vector<14x14x32xf32>
    %cst = arith.constant 0.000000e+00 : f32
    %2 = vector.broadcast %cst : f32 to vector<12x12x32xf32>
    %3 = vector.extract_strided_slice %1 {offsets = [0, 0, 0], sizes = [12, 12, 32], strides = [1, 1, 1]} : vector<14x14x32xf32> to vector<12x12x32xf32>
    %c0_3 = arith.constant 0 : index
    %c0_4 = arith.constant 0 : index
    %c0_5 = arith.constant 0 : index
    %4 = vector.load %arg2[%c0_3, %c0_4, %c0_5] : memref<9x1x32xf32, #tpu.memory_space<vmem>>, vector<1x1x32xf32>
    %5 = vector.shape_cast %4 : vector<1x1x32xf32> to vector<1x32xf32>
    %6 = vector.shape_cast %5 : vector<1x32xf32> to vector<1x1x32xf32>
    %7 = vector.broadcast %6 : vector<1x1x32xf32> to vector<12x12x32xf32>
    %8 = arith.mulf %3, %7 : vector<12x12x32xf32>
    %9 = arith.addf %2, %8 : vector<12x12x32xf32>
    %10 = vector.extract_strided_slice %1 {offsets = [0, 1, 0], sizes = [12, 12, 32], strides = [1, 1, 1]} : vector<14x14x32xf32> to vector<12x12x32xf32>
    %c1 = arith.constant 1 : index
    %c0_6 = arith.constant 0 : index
    %c0_7 = arith.constant 0 : index
    %11 = vector.load %arg2[%c1, %c0_6, %c0_7] : memref<9x1x32xf32, #tpu.memory_space<vmem>>, vector<1x1x32xf32>
    %12 = vector.shape_cast %11 : vector<1x1x32xf32> to vector<1x32xf32>
    %13 = vector.shape_cast %12 : vector<1x32xf32> to vector<1x1x32xf32>
    %14 = vector.broadcast %13 : vector<1x1x32xf32> to vector<12x12x32xf32>
    %15 = arith.mulf %10, %14 : vector<12x12x32xf32>
    %16 = arith.addf %9, %15 : vector<12x12x32xf32>
    %17 = vector.extract_strided_slice %1 {offsets = [0, 2, 0], sizes = [12, 12, 32], strides = [1, 1, 1]} : vector<14x14x32xf32> to vector<12x12x32xf32>
    %c2 = arith.constant 2 : index
    %c0_8 = arith.constant 0 : index
    %c0_9 = arith.constant 0 : index
    %18 = vector.load %arg2[%c2, %c0_8, %c0_9] : memref<9x1x32xf32, #tpu.memory_space<vmem>>, vector<1x1x32xf32>
    %19 = vector.shape_cast %18 : vector<1x1x32xf32> to vector<1x32xf32>
    %20 = vector.shape_cast %19 : vector<1x32xf32> to vector<1x1x32xf32>
    %21 = vector.broadcast %20 : vector<1x1x32xf32> to vector<12x12x32xf32>
    %22 = arith.mulf %17, %21 : vector<12x12x32xf32>
    %23 = arith.addf %16, %22 : vector<12x12x32xf32>
    %24 = vector.extract_strided_slice %1 {offsets = [1, 0, 0], sizes = [12, 12, 32], strides = [1, 1, 1]} : vector<14x14x32xf32> to vector<12x12x32xf32>
    %c3 = arith.constant 3 : index
    %c0_10 = arith.constant 0 : index
    %c0_11 = arith.constant 0 : index
    %25 = vector.load %arg2[%c3, %c0_10, %c0_11] : memref<9x1x32xf32, #tpu.memory_space<vmem>>, vector<1x1x32xf32>
    %26 = vector.shape_cast %25 : vector<1x1x32xf32> to vector<1x32xf32>
    %27 = vector.shape_cast %26 : vector<1x32xf32> to vector<1x1x32xf32>
    %28 = vector.broadcast %27 : vector<1x1x32xf32> to vector<12x12x32xf32>
    %29 = arith.mulf %24, %28 : vector<12x12x32xf32>
    %30 = arith.addf %23, %29 : vector<12x12x32xf32>
    %31 = vector.extract_strided_slice %1 {offsets = [1, 1, 0], sizes = [12, 12, 32], strides = [1, 1, 1]} : vector<14x14x32xf32> to vector<12x12x32xf32>
    %c4 = arith.constant 4 : index
    %c0_12 = arith.constant 0 : index
    %c0_13 = arith.constant 0 : index
    %32 = vector.load %arg2[%c4, %c0_12, %c0_13] : memref<9x1x32xf32, #tpu.memory_space<vmem>>, vector<1x1x32xf32>
    %33 = vector.shape_cast %32 : vector<1x1x32xf32> to vector<1x32xf32>
    %34 = vector.shape_cast %33 : vector<1x32xf32> to vector<1x1x32xf32>
    %35 = vector.broadcast %34 : vector<1x1x32xf32> to vector<12x12x32xf32>
    %36 = arith.mulf %31, %35 : vector<12x12x32xf32>
    %37 = arith.addf %30, %36 : vector<12x12x32xf32>
    %38 = vector.extract_strided_slice %1 {offsets = [1, 2, 0], sizes = [12, 12, 32], strides = [1, 1, 1]} : vector<14x14x32xf32> to vector<12x12x32xf32>
    %c5 = arith.constant 5 : index
    %c0_14 = arith.constant 0 : index
    %c0_15 = arith.constant 0 : index
    %39 = vector.load %arg2[%c5, %c0_14, %c0_15] : memref<9x1x32xf32, #tpu.memory_space<vmem>>, vector<1x1x32xf32>
    %40 = vector.shape_cast %39 : vector<1x1x32xf32> to vector<1x32xf32>
    %41 = vector.shape_cast %40 : vector<1x32xf32> to vector<1x1x32xf32>
    %42 = vector.broadcast %41 : vector<1x1x32xf32> to vector<12x12x32xf32>
    %43 = arith.mulf %38, %42 : vector<12x12x32xf32>
    %44 = arith.addf %37, %43 : vector<12x12x32xf32>
    %45 = vector.extract_strided_slice %1 {offsets = [2, 0, 0], sizes = [12, 12, 32], strides = [1, 1, 1]} : vector<14x14x32xf32> to vector<12x12x32xf32>
    %c6 = arith.constant 6 : index
    %c0_16 = arith.constant 0 : index
    %c0_17 = arith.constant 0 : index
    %46 = vector.load %arg2[%c6, %c0_16, %c0_17] : memref<9x1x32xf32, #tpu.memory_space<vmem>>, vector<1x1x32xf32>
    %47 = vector.shape_cast %46 : vector<1x1x32xf32> to vector<1x32xf32>
    %48 = vector.shape_cast %47 : vector<1x32xf32> to vector<1x1x32xf32>
    %49 = vector.broadcast %48 : vector<1x1x32xf32> to vector<12x12x32xf32>
    %50 = arith.mulf %45, %49 : vector<12x12x32xf32>
    %51 = arith.addf %44, %50 : vector<12x12x32xf32>
    %52 = vector.extract_strided_slice %1 {offsets = [2, 1, 0], sizes = [12, 12, 32], strides = [1, 1, 1]} : vector<14x14x32xf32> to vector<12x12x32xf32>
    %c7 = arith.constant 7 : index
    %c0_18 = arith.constant 0 : index
    %c0_19 = arith.constant 0 : index
    %53 = vector.load %arg2[%c7, %c0_18, %c0_19] : memref<9x1x32xf32, #tpu.memory_space<vmem>>, vector<1x1x32xf32>
    %54 = vector.shape_cast %53 : vector<1x1x32xf32> to vector<1x32xf32>
    %55 = vector.shape_cast %54 : vector<1x32xf32> to vector<1x1x32xf32>
    %56 = vector.broadcast %55 : vector<1x1x32xf32> to vector<12x12x32xf32>
    %57 = arith.mulf %52, %56 : vector<12x12x32xf32>
    %58 = arith.addf %51, %57 : vector<12x12x32xf32>
    %59 = vector.extract_strided_slice %1 {offsets = [2, 2, 0], sizes = [12, 12, 32], strides = [1, 1, 1]} : vector<14x14x32xf32> to vector<12x12x32xf32>
    %c8 = arith.constant 8 : index
    %c0_20 = arith.constant 0 : index
    %c0_21 = arith.constant 0 : index
    %60 = vector.load %arg2[%c8, %c0_20, %c0_21] : memref<9x1x32xf32, #tpu.memory_space<vmem>>, vector<1x1x32xf32>
    %61 = vector.shape_cast %60 : vector<1x1x32xf32> to vector<1x32xf32>
    %62 = vector.shape_cast %61 : vector<1x32xf32> to vector<1x1x32xf32>
    %63 = vector.broadcast %62 : vector<1x1x32xf32> to vector<12x12x32xf32>
    %64 = arith.mulf %59, %63 : vector<12x12x32xf32>
    %65 = arith.addf %58, %64 : vector<12x12x32xf32>
    %c0_22 = arith.constant 0 : index
    %c0_23 = arith.constant 0 : index
    %66 = vector.load %arg3[%c0_22, %c0_23] : memref<1x32xf32, #tpu.memory_space<vmem>>, vector<1x32xf32>
    %67 = vector.shape_cast %66 : vector<1x32xf32> to vector<1x1x32xf32>
    %68 = vector.broadcast %67 : vector<1x1x32xf32> to vector<12x12x32xf32>
    %69 = arith.addf %65, %68 : vector<12x12x32xf32>
    %70 = tpu.iota {dimensions = array<i32: 0>} : vector<12x12x32xi32>
    %71 = tpu.iota {dimensions = array<i32: 1>} : vector<12x12x32xi32>
    %c2_i32 = arith.constant 2 : i32
    %72 = vector.broadcast %c2_i32 : i32 to vector<12x12x32xi32>
    %73 = arith.cmpi sge, %70, %72 : vector<12x12x32xi32>
    %c10_i32 = arith.constant 10 : i32
    %74 = vector.broadcast %c10_i32 : i32 to vector<12x12x32xi32>
    %75 = arith.cmpi slt, %70, %74 : vector<12x12x32xi32>
    %76 = arith.andi %73, %75 : vector<12x12x32xi1>
    %c2_i32_24 = arith.constant 2 : i32
    %77 = vector.broadcast %c2_i32_24 : i32 to vector<12x12x32xi32>
    %78 = arith.cmpi sge, %71, %77 : vector<12x12x32xi32>
    %79 = arith.andi %76, %78 : vector<12x12x32xi1>
    %c10_i32_25 = arith.constant 10 : i32
    %80 = vector.broadcast %c10_i32_25 : i32 to vector<12x12x32xi32>
    %81 = arith.cmpi slt, %71, %80 : vector<12x12x32xi32>
    %82 = arith.andi %79, %81 : vector<12x12x32xi1>
    %cst_26 = arith.constant 0.000000e+00 : f32
    %83 = vector.broadcast %cst_26 : f32 to vector<12x12x32xf32>
    %84 = arith.select %82, %69, %83 : vector<12x12x32xi1>, vector<12x12x32xf32>
    %85 = vector.extract_strided_slice %84 {offsets = [0, 0, 0], sizes = [1, 8, 32], strides = [1, 1, 1]} : vector<12x12x32xf32> to vector<1x8x32xf32>
    %86 = vector.shape_cast %85 : vector<1x8x32xf32> to vector<8x32xf32>
    %87 = vector.extract_strided_slice %84 {offsets = [1, 0, 0], sizes = [1, 8, 32], strides = [1, 1, 1]} : vector<12x12x32xf32> to vector<1x8x32xf32>
    %88 = vector.shape_cast %87 : vector<1x8x32xf32> to vector<8x32xf32>
    %89 = vector.extract_strided_slice %84 {offsets = [2, 0, 0], sizes = [1, 8, 32], strides = [1, 1, 1]} : vector<12x12x32xf32> to vector<1x8x32xf32>
    %90 = vector.shape_cast %89 : vector<1x8x32xf32> to vector<8x32xf32>
    %91 = vector.extract_strided_slice %84 {offsets = [3, 0, 0], sizes = [1, 8, 32], strides = [1, 1, 1]} : vector<12x12x32xf32> to vector<1x8x32xf32>
    %92 = vector.shape_cast %91 : vector<1x8x32xf32> to vector<8x32xf32>
    %93 = vector.extract_strided_slice %84 {offsets = [4, 0, 0], sizes = [1, 8, 32], strides = [1, 1, 1]} : vector<12x12x32xf32> to vector<1x8x32xf32>
    %94 = vector.shape_cast %93 : vector<1x8x32xf32> to vector<8x32xf32>
    %95 = vector.extract_strided_slice %84 {offsets = [5, 0, 0], sizes = [1, 8, 32], strides = [1, 1, 1]} : vector<12x12x32xf32> to vector<1x8x32xf32>
    %96 = vector.shape_cast %95 : vector<1x8x32xf32> to vector<8x32xf32>
    %97 = vector.extract_strided_slice %84 {offsets = [6, 0, 0], sizes = [1, 8, 32], strides = [1, 1, 1]} : vector<12x12x32xf32> to vector<1x8x32xf32>
    %98 = vector.shape_cast %97 : vector<1x8x32xf32> to vector<8x32xf32>
    %99 = vector.extract_strided_slice %84 {offsets = [7, 0, 0], sizes = [1, 8, 32], strides = [1, 1, 1]} : vector<12x12x32xf32> to vector<1x8x32xf32>
    %100 = vector.shape_cast %99 : vector<1x8x32xf32> to vector<8x32xf32>
    %101 = tpu.concatenate %86, %88, %90, %92, %94, %96, %98, %100 in 0 : vector<8x32xf32>, vector<8x32xf32>, vector<8x32xf32>, vector<8x32xf32>, vector<8x32xf32>, vector<8x32xf32>, vector<8x32xf32>, vector<8x32xf32> -> vector<64x32xf32>
    %102 = vector.extract_strided_slice %84 {offsets = [0, 1, 0], sizes = [1, 8, 32], strides = [1, 1, 1]} : vector<12x12x32xf32> to vector<1x8x32xf32>
    %103 = vector.shape_cast %102 : vector<1x8x32xf32> to vector<8x32xf32>
    %104 = vector.extract_strided_slice %84 {offsets = [1, 1, 0], sizes = [1, 8, 32], strides = [1, 1, 1]} : vector<12x12x32xf32> to vector<1x8x32xf32>
    %105 = vector.shape_cast %104 : vector<1x8x32xf32> to vector<8x32xf32>
    %106 = vector.extract_strided_slice %84 {offsets = [2, 1, 0], sizes = [1, 8, 32], strides = [1, 1, 1]} : vector<12x12x32xf32> to vector<1x8x32xf32>
    %107 = vector.shape_cast %106 : vector<1x8x32xf32> to vector<8x32xf32>
    %108 = vector.extract_strided_slice %84 {offsets = [3, 1, 0], sizes = [1, 8, 32], strides = [1, 1, 1]} : vector<12x12x32xf32> to vector<1x8x32xf32>
    %109 = vector.shape_cast %108 : vector<1x8x32xf32> to vector<8x32xf32>
    %110 = vector.extract_strided_slice %84 {offsets = [4, 1, 0], sizes = [1, 8, 32], strides = [1, 1, 1]} : vector<12x12x32xf32> to vector<1x8x32xf32>
    %111 = vector.shape_cast %110 : vector<1x8x32xf32> to vector<8x32xf32>
    %112 = vector.extract_strided_slice %84 {offsets = [5, 1, 0], sizes = [1, 8, 32], strides = [1, 1, 1]} : vector<12x12x32xf32> to vector<1x8x32xf32>
    %113 = vector.shape_cast %112 : vector<1x8x32xf32> to vector<8x32xf32>
    %114 = vector.extract_strided_slice %84 {offsets = [6, 1, 0], sizes = [1, 8, 32], strides = [1, 1, 1]} : vector<12x12x32xf32> to vector<1x8x32xf32>
    %115 = vector.shape_cast %114 : vector<1x8x32xf32> to vector<8x32xf32>
    %116 = vector.extract_strided_slice %84 {offsets = [7, 1, 0], sizes = [1, 8, 32], strides = [1, 1, 1]} : vector<12x12x32xf32> to vector<1x8x32xf32>
    %117 = vector.shape_cast %116 : vector<1x8x32xf32> to vector<8x32xf32>
    %118 = tpu.concatenate %103, %105, %107, %109, %111, %113, %115, %117 in 0 : vector<8x32xf32>, vector<8x32xf32>, vector<8x32xf32>, vector<8x32xf32>, vector<8x32xf32>, vector<8x32xf32>, vector<8x32xf32>, vector<8x32xf32> -> vector<64x32xf32>
    %119 = vector.extract_strided_slice %84 {offsets = [0, 2, 0], sizes = [1, 8, 32], strides = [1, 1, 1]} : vector<12x12x32xf32> to vector<1x8x32xf32>
    %120 = vector.shape_cast %119 : vector<1x8x32xf32> to vector<8x32xf32>
    %121 = vector.extract_strided_slice %84 {offsets = [1, 2, 0], sizes = [1, 8, 32], strides = [1, 1, 1]} : vector<12x12x32xf32> to vector<1x8x32xf32>
    %122 = vector.shape_cast %121 : vector<1x8x32xf32> to vector<8x32xf32>
    %123 = vector.extract_strided_slice %84 {offsets = [2, 2, 0], sizes = [1, 8, 32], strides = [1, 1, 1]} : vector<12x12x32xf32> to vector<1x8x32xf32>
    %124 = vector.shape_cast %123 : vector<1x8x32xf32> to vector<8x32xf32>
    %125 = vector.extract_strided_slice %84 {offsets = [3, 2, 0], sizes = [1, 8, 32], strides = [1, 1, 1]} : vector<12x12x32xf32> to vector<1x8x32xf32>
    %126 = vector.shape_cast %125 : vector<1x8x32xf32> to vector<8x32xf32>
    %127 = vector.extract_strided_slice %84 {offsets = [4, 2, 0], sizes = [1, 8, 32], strides = [1, 1, 1]} : vector<12x12x32xf32> to vector<1x8x32xf32>
    %128 = vector.shape_cast %127 : vector<1x8x32xf32> to vector<8x32xf32>
    %129 = vector.extract_strided_slice %84 {offsets = [5, 2, 0], sizes = [1, 8, 32], strides = [1, 1, 1]} : vector<12x12x32xf32> to vector<1x8x32xf32>
    %130 = vector.shape_cast %129 : vector<1x8x32xf32> to vector<8x32xf32>
    %131 = vector.extract_strided_slice %84 {offsets = [6, 2, 0], sizes = [1, 8, 32], strides = [1, 1, 1]} : vector<12x12x32xf32> to vector<1x8x32xf32>
    %132 = vector.shape_cast %131 : vector<1x8x32xf32> to vector<8x32xf32>
    %133 = vector.extract_strided_slice %84 {offsets = [7, 2, 0], sizes = [1, 8, 32], strides = [1, 1, 1]} : vector<12x12x32xf32> to vector<1x8x32xf32>
    %134 = vector.shape_cast %133 : vector<1x8x32xf32> to vector<8x32xf32>
    %135 = tpu.concatenate %120, %122, %124, %126, %128, %130, %132, %134 in 0 : vector<8x32xf32>, vector<8x32xf32>, vector<8x32xf32>, vector<8x32xf32>, vector<8x32xf32>, vector<8x32xf32>, vector<8x32xf32>, vector<8x32xf32> -> vector<64x32xf32>
    %136 = vector.extract_strided_slice %84 {offsets = [0, 3, 0], sizes = [1, 8, 32], strides = [1, 1, 1]} : vector<12x12x32xf32> to vector<1x8x32xf32>
    %137 = vector.shape_cast %136 : vector<1x8x32xf32> to vector<8x32xf32>
    %138 = vector.extract_strided_slice %84 {offsets = [1, 3, 0], sizes = [1, 8, 32], strides = [1, 1, 1]} : vector<12x12x32xf32> to vector<1x8x32xf32>
    %139 = vector.shape_cast %138 : vector<1x8x32xf32> to vector<8x32xf32>
    %140 = vector.extract_strided_slice %84 {offsets = [2, 3, 0], sizes = [1, 8, 32], strides = [1, 1, 1]} : vector<12x12x32xf32> to vector<1x8x32xf32>
    %141 = vector.shape_cast %140 : vector<1x8x32xf32> to vector<8x32xf32>
    %142 = vector.extract_strided_slice %84 {offsets = [3, 3, 0], sizes = [1, 8, 32], strides = [1, 1, 1]} : vector<12x12x32xf32> to vector<1x8x32xf32>
    %143 = vector.shape_cast %142 : vector<1x8x32xf32> to vector<8x32xf32>
    %144 = vector.extract_strided_slice %84 {offsets = [4, 3, 0], sizes = [1, 8, 32], strides = [1, 1, 1]} : vector<12x12x32xf32> to vector<1x8x32xf32>
    %145 = vector.shape_cast %144 : vector<1x8x32xf32> to vector<8x32xf32>
    %146 = vector.extract_strided_slice %84 {offsets = [5, 3, 0], sizes = [1, 8, 32], strides = [1, 1, 1]} : vector<12x12x32xf32> to vector<1x8x32xf32>
    %147 = vector.shape_cast %146 : vector<1x8x32xf32> to vector<8x32xf32>
    %148 = vector.extract_strided_slice %84 {offsets = [6, 3, 0], sizes = [1, 8, 32], strides = [1, 1, 1]} : vector<12x12x32xf32> to vector<1x8x32xf32>
    %149 = vector.shape_cast %148 : vector<1x8x32xf32> to vector<8x32xf32>
    %150 = vector.extract_strided_slice %84 {offsets = [7, 3, 0], sizes = [1, 8, 32], strides = [1, 1, 1]} : vector<12x12x32xf32> to vector<1x8x32xf32>
    %151 = vector.shape_cast %150 : vector<1x8x32xf32> to vector<8x32xf32>
    %152 = tpu.concatenate %137, %139, %141, %143, %145, %147, %149, %151 in 0 : vector<8x32xf32>, vector<8x32xf32>, vector<8x32xf32>, vector<8x32xf32>, vector<8x32xf32>, vector<8x32xf32>, vector<8x32xf32>, vector<8x32xf32> -> vector<64x32xf32>
    %153 = vector.extract_strided_slice %84 {offsets = [0, 4, 0], sizes = [1, 8, 32], strides = [1, 1, 1]} : vector<12x12x32xf32> to vector<1x8x32xf32>
    %154 = vector.shape_cast %153 : vector<1x8x32xf32> to vector<8x32xf32>
    %155 = vector.extract_strided_slice %84 {offsets = [1, 4, 0], sizes = [1, 8, 32], strides = [1, 1, 1]} : vector<12x12x32xf32> to vector<1x8x32xf32>
    %156 = vector.shape_cast %155 : vector<1x8x32xf32> to vector<8x32xf32>
    %157 = vector.extract_strided_slice %84 {offsets = [2, 4, 0], sizes = [1, 8, 32], strides = [1, 1, 1]} : vector<12x12x32xf32> to vector<1x8x32xf32>
    %158 = vector.shape_cast %157 : vector<1x8x32xf32> to vector<8x32xf32>
    %159 = vector.extract_strided_slice %84 {offsets = [3, 4, 0], sizes = [1, 8, 32], strides = [1, 1, 1]} : vector<12x12x32xf32> to vector<1x8x32xf32>
    %160 = vector.shape_cast %159 : vector<1x8x32xf32> to vector<8x32xf32>
    %161 = vector.extract_strided_slice %84 {offsets = [4, 4, 0], sizes = [1, 8, 32], strides = [1, 1, 1]} : vector<12x12x32xf32> to vector<1x8x32xf32>
    %162 = vector.shape_cast %161 : vector<1x8x32xf32> to vector<8x32xf32>
    %163 = vector.extract_strided_slice %84 {offsets = [5, 4, 0], sizes = [1, 8, 32], strides = [1, 1, 1]} : vector<12x12x32xf32> to vector<1x8x32xf32>
    %164 = vector.shape_cast %163 : vector<1x8x32xf32> to vector<8x32xf32>
    %165 = vector.extract_strided_slice %84 {offsets = [6, 4, 0], sizes = [1, 8, 32], strides = [1, 1, 1]} : vector<12x12x32xf32> to vector<1x8x32xf32>
    %166 = vector.shape_cast %165 : vector<1x8x32xf32> to vector<8x32xf32>
    %167 = vector.extract_strided_slice %84 {offsets = [7, 4, 0], sizes = [1, 8, 32], strides = [1, 1, 1]} : vector<12x12x32xf32> to vector<1x8x32xf32>
    %168 = vector.shape_cast %167 : vector<1x8x32xf32> to vector<8x32xf32>
    %169 = tpu.concatenate %154, %156, %158, %160, %162, %164, %166, %168 in 0 : vector<8x32xf32>, vector<8x32xf32>, vector<8x32xf32>, vector<8x32xf32>, vector<8x32xf32>, vector<8x32xf32>, vector<8x32xf32>, vector<8x32xf32> -> vector<64x32xf32>
    %170 = vector.extract_strided_slice %84 {offsets = [1, 0, 0], sizes = [1, 8, 32], strides = [1, 1, 1]} : vector<12x12x32xf32> to vector<1x8x32xf32>
    %171 = vector.shape_cast %170 : vector<1x8x32xf32> to vector<8x32xf32>
    %172 = vector.extract_strided_slice %84 {offsets = [2, 0, 0], sizes = [1, 8, 32], strides = [1, 1, 1]} : vector<12x12x32xf32> to vector<1x8x32xf32>
    %173 = vector.shape_cast %172 : vector<1x8x32xf32> to vector<8x32xf32>
    %174 = vector.extract_strided_slice %84 {offsets = [3, 0, 0], sizes = [1, 8, 32], strides = [1, 1, 1]} : vector<12x12x32xf32> to vector<1x8x32xf32>
    %175 = vector.shape_cast %174 : vector<1x8x32xf32> to vector<8x32xf32>
    %176 = vector.extract_strided_slice %84 {offsets = [4, 0, 0], sizes = [1, 8, 32], strides = [1, 1, 1]} : vector<12x12x32xf32> to vector<1x8x32xf32>
    %177 = vector.shape_cast %176 : vector<1x8x32xf32> to vector<8x32xf32>
    %178 = vector.extract_strided_slice %84 {offsets = [5, 0, 0], sizes = [1, 8, 32], strides = [1, 1, 1]} : vector<12x12x32xf32> to vector<1x8x32xf32>
    %179 = vector.shape_cast %178 : vector<1x8x32xf32> to vector<8x32xf32>
    %180 = vector.extract_strided_slice %84 {offsets = [6, 0, 0], sizes = [1, 8, 32], strides = [1, 1, 1]} : vector<12x12x32xf32> to vector<1x8x32xf32>
    %181 = vector.shape_cast %180 : vector<1x8x32xf32> to vector<8x32xf32>
    %182 = vector.extract_strided_slice %84 {offsets = [7, 0, 0], sizes = [1, 8, 32], strides = [1, 1, 1]} : vector<12x12x32xf32> to vector<1x8x32xf32>
    %183 = vector.shape_cast %182 : vector<1x8x32xf32> to vector<8x32xf32>
    %184 = vector.extract_strided_slice %84 {offsets = [8, 0, 0], sizes = [1, 8, 32], strides = [1, 1, 1]} : vector<12x12x32xf32> to vector<1x8x32xf32>
    %185 = vector.shape_cast %184 : vector<1x8x32xf32> to vector<8x32xf32>
    %186 = tpu.concatenate %171, %173, %175, %177, %179, %181, %183, %185 in 0 : vector<8x32xf32>, vector<8x32xf32>, vector<8x32xf32>, vector<8x32xf32>, vector<8x32xf32>, vector<8x32xf32>, vector<8x32xf32>, vector<8x32xf32> -> vector<64x32xf32>
    %187 = vector.extract_strided_slice %84 {offsets = [1, 1, 0], sizes = [1, 8, 32], strides = [1, 1, 1]} : vector<12x12x32xf32> to vector<1x8x32xf32>
    %188 = vector.shape_cast %187 : vector<1x8x32xf32> to vector<8x32xf32>
    %189 = vector.extract_strided_slice %84 {offsets = [2, 1, 0], sizes = [1, 8, 32], strides = [1, 1, 1]} : vector<12x12x32xf32> to vector<1x8x32xf32>
    %190 = vector.shape_cast %189 : vector<1x8x32xf32> to vector<8x32xf32>
    %191 = vector.extract_strided_slice %84 {offsets = [3, 1, 0], sizes = [1, 8, 32], strides = [1, 1, 1]} : vector<12x12x32xf32> to vector<1x8x32xf32>
    %192 = vector.shape_cast %191 : vector<1x8x32xf32> to vector<8x32xf32>
    %193 = vector.extract_strided_slice %84 {offsets = [4, 1, 0], sizes = [1, 8, 32], strides = [1, 1, 1]} : vector<12x12x32xf32> to vector<1x8x32xf32>
    %194 = vector.shape_cast %193 : vector<1x8x32xf32> to vector<8x32xf32>
    %195 = vector.extract_strided_slice %84 {offsets = [5, 1, 0], sizes = [1, 8, 32], strides = [1, 1, 1]} : vector<12x12x32xf32> to vector<1x8x32xf32>
    %196 = vector.shape_cast %195 : vector<1x8x32xf32> to vector<8x32xf32>
    %197 = vector.extract_strided_slice %84 {offsets = [6, 1, 0], sizes = [1, 8, 32], strides = [1, 1, 1]} : vector<12x12x32xf32> to vector<1x8x32xf32>
    %198 = vector.shape_cast %197 : vector<1x8x32xf32> to vector<8x32xf32>
    %199 = vector.extract_strided_slice %84 {offsets = [7, 1, 0], sizes = [1, 8, 32], strides = [1, 1, 1]} : vector<12x12x32xf32> to vector<1x8x32xf32>
    %200 = vector.shape_cast %199 : vector<1x8x32xf32> to vector<8x32xf32>
    %201 = vector.extract_strided_slice %84 {offsets = [8, 1, 0], sizes = [1, 8, 32], strides = [1, 1, 1]} : vector<12x12x32xf32> to vector<1x8x32xf32>
    %202 = vector.shape_cast %201 : vector<1x8x32xf32> to vector<8x32xf32>
    %203 = tpu.concatenate %188, %190, %192, %194, %196, %198, %200, %202 in 0 : vector<8x32xf32>, vector<8x32xf32>, vector<8x32xf32>, vector<8x32xf32>, vector<8x32xf32>, vector<8x32xf32>, vector<8x32xf32>, vector<8x32xf32> -> vector<64x32xf32>
    %204 = vector.extract_strided_slice %84 {offsets = [1, 2, 0], sizes = [1, 8, 32], strides = [1, 1, 1]} : vector<12x12x32xf32> to vector<1x8x32xf32>
    %205 = vector.shape_cast %204 : vector<1x8x32xf32> to vector<8x32xf32>
    %206 = vector.extract_strided_slice %84 {offsets = [2, 2, 0], sizes = [1, 8, 32], strides = [1, 1, 1]} : vector<12x12x32xf32> to vector<1x8x32xf32>
    %207 = vector.shape_cast %206 : vector<1x8x32xf32> to vector<8x32xf32>
    %208 = vector.extract_strided_slice %84 {offsets = [3, 2, 0], sizes = [1, 8, 32], strides = [1, 1, 1]} : vector<12x12x32xf32> to vector<1x8x32xf32>
    %209 = vector.shape_cast %208 : vector<1x8x32xf32> to vector<8x32xf32>
    %210 = vector.extract_strided_slice %84 {offsets = [4, 2, 0], sizes = [1, 8, 32], strides = [1, 1, 1]} : vector<12x12x32xf32> to vector<1x8x32xf32>
    %211 = vector.shape_cast %210 : vector<1x8x32xf32> to vector<8x32xf32>
    %212 = vector.extract_strided_slice %84 {offsets = [5, 2, 0], sizes = [1, 8, 32], strides = [1, 1, 1]} : vector<12x12x32xf32> to vector<1x8x32xf32>
    %213 = vector.shape_cast %212 : vector<1x8x32xf32> to vector<8x32xf32>
    %214 = vector.extract_strided_slice %84 {offsets = [6, 2, 0], sizes = [1, 8, 32], strides = [1, 1, 1]} : vector<12x12x32xf32> to vector<1x8x32xf32>
    %215 = vector.shape_cast %214 : vector<1x8x32xf32> to vector<8x32xf32>
    %216 = vector.extract_strided_slice %84 {offsets = [7, 2, 0], sizes = [1, 8, 32], strides = [1, 1, 1]} : vector<12x12x32xf32> to vector<1x8x32xf32>
    %217 = vector.shape_cast %216 : vector<1x8x32xf32> to vector<8x32xf32>
    %218 = vector.extract_strided_slice %84 {offsets = [8, 2, 0], sizes = [1, 8, 32], strides = [1, 1, 1]} : vector<12x12x32xf32> to vector<1x8x32xf32>
    %219 = vector.shape_cast %218 : vector<1x8x32xf32> to vector<8x32xf32>
    %220 = tpu.concatenate %205, %207, %209, %211, %213, %215, %217, %219 in 0 : vector<8x32xf32>, vector<8x32xf32>, vector<8x32xf32>, vector<8x32xf32>, vector<8x32xf32>, vector<8x32xf32>, vector<8x32xf32>, vector<8x32xf32> -> vector<64x32xf32>
    %221 = vector.extract_strided_slice %84 {offsets = [1, 3, 0], sizes = [1, 8, 32], strides = [1, 1, 1]} : vector<12x12x32xf32> to vector<1x8x32xf32>
    %222 = vector.shape_cast %221 : vector<1x8x32xf32> to vector<8x32xf32>
    %223 = vector.extract_strided_slice %84 {offsets = [2, 3, 0], sizes = [1, 8, 32], strides = [1, 1, 1]} : vector<12x12x32xf32> to vector<1x8x32xf32>
    %224 = vector.shape_cast %223 : vector<1x8x32xf32> to vector<8x32xf32>
    %225 = vector.extract_strided_slice %84 {offsets = [3, 3, 0], sizes = [1, 8, 32], strides = [1, 1, 1]} : vector<12x12x32xf32> to vector<1x8x32xf32>
    %226 = vector.shape_cast %225 : vector<1x8x32xf32> to vector<8x32xf32>
    %227 = vector.extract_strided_slice %84 {offsets = [4, 3, 0], sizes = [1, 8, 32], strides = [1, 1, 1]} : vector<12x12x32xf32> to vector<1x8x32xf32>
    %228 = vector.shape_cast %227 : vector<1x8x32xf32> to vector<8x32xf32>
    %229 = vector.extract_strided_slice %84 {offsets = [5, 3, 0], sizes = [1, 8, 32], strides = [1, 1, 1]} : vector<12x12x32xf32> to vector<1x8x32xf32>
    %230 = vector.shape_cast %229 : vector<1x8x32xf32> to vector<8x32xf32>
    %231 = vector.extract_strided_slice %84 {offsets = [6, 3, 0], sizes = [1, 8, 32], strides = [1, 1, 1]} : vector<12x12x32xf32> to vector<1x8x32xf32>
    %232 = vector.shape_cast %231 : vector<1x8x32xf32> to vector<8x32xf32>
    %233 = vector.extract_strided_slice %84 {offsets = [7, 3, 0], sizes = [1, 8, 32], strides = [1, 1, 1]} : vector<12x12x32xf32> to vector<1x8x32xf32>
    %234 = vector.shape_cast %233 : vector<1x8x32xf32> to vector<8x32xf32>
    %235 = vector.extract_strided_slice %84 {offsets = [8, 3, 0], sizes = [1, 8, 32], strides = [1, 1, 1]} : vector<12x12x32xf32> to vector<1x8x32xf32>
    %236 = vector.shape_cast %235 : vector<1x8x32xf32> to vector<8x32xf32>
    %237 = tpu.concatenate %222, %224, %226, %228, %230, %232, %234, %236 in 0 : vector<8x32xf32>, vector<8x32xf32>, vector<8x32xf32>, vector<8x32xf32>, vector<8x32xf32>, vector<8x32xf32>, vector<8x32xf32>, vector<8x32xf32> -> vector<64x32xf32>
    %238 = vector.extract_strided_slice %84 {offsets = [1, 4, 0], sizes = [1, 8, 32], strides = [1, 1, 1]} : vector<12x12x32xf32> to vector<1x8x32xf32>
    %239 = vector.shape_cast %238 : vector<1x8x32xf32> to vector<8x32xf32>
    %240 = vector.extract_strided_slice %84 {offsets = [2, 4, 0], sizes = [1, 8, 32], strides = [1, 1, 1]} : vector<12x12x32xf32> to vector<1x8x32xf32>
    %241 = vector.shape_cast %240 : vector<1x8x32xf32> to vector<8x32xf32>
    %242 = vector.extract_strided_slice %84 {offsets = [3, 4, 0], sizes = [1, 8, 32], strides = [1, 1, 1]} : vector<12x12x32xf32> to vector<1x8x32xf32>
    %243 = vector.shape_cast %242 : vector<1x8x32xf32> to vector<8x32xf32>
    %244 = vector.extract_strided_slice %84 {offsets = [4, 4, 0], sizes = [1, 8, 32], strides = [1, 1, 1]} : vector<12x12x32xf32> to vector<1x8x32xf32>
    %245 = vector.shape_cast %244 : vector<1x8x32xf32> to vector<8x32xf32>
    %246 = vector.extract_strided_slice %84 {offsets = [5, 4, 0], sizes = [1, 8, 32], strides = [1, 1, 1]} : vector<12x12x32xf32> to vector<1x8x32xf32>
    %247 = vector.shape_cast %246 : vector<1x8x32xf32> to vector<8x32xf32>
    %248 = vector.extract_strided_slice %84 {offsets = [6, 4, 0], sizes = [1, 8, 32], strides = [1, 1, 1]} : vector<12x12x32xf32> to vector<1x8x32xf32>
    %249 = vector.shape_cast %248 : vector<1x8x32xf32> to vector<8x32xf32>
    %250 = vector.extract_strided_slice %84 {offsets = [7, 4, 0], sizes = [1, 8, 32], strides = [1, 1, 1]} : vector<12x12x32xf32> to vector<1x8x32xf32>
    %251 = vector.shape_cast %250 : vector<1x8x32xf32> to vector<8x32xf32>
    %252 = vector.extract_strided_slice %84 {offsets = [8, 4, 0], sizes = [1, 8, 32], strides = [1, 1, 1]} : vector<12x12x32xf32> to vector<1x8x32xf32>
    %253 = vector.shape_cast %252 : vector<1x8x32xf32> to vector<8x32xf32>
    %254 = tpu.concatenate %239, %241, %243, %245, %247, %249, %251, %253 in 0 : vector<8x32xf32>, vector<8x32xf32>, vector<8x32xf32>, vector<8x32xf32>, vector<8x32xf32>, vector<8x32xf32>, vector<8x32xf32>, vector<8x32xf32> -> vector<64x32xf32>
    %255 = vector.extract_strided_slice %84 {offsets = [2, 0, 0], sizes = [1, 8, 32], strides = [1, 1, 1]} : vector<12x12x32xf32> to vector<1x8x32xf32>
    %256 = vector.shape_cast %255 : vector<1x8x32xf32> to vector<8x32xf32>
    %257 = vector.extract_strided_slice %84 {offsets = [3, 0, 0], sizes = [1, 8, 32], strides = [1, 1, 1]} : vector<12x12x32xf32> to vector<1x8x32xf32>
    %258 = vector.shape_cast %257 : vector<1x8x32xf32> to vector<8x32xf32>
    %259 = vector.extract_strided_slice %84 {offsets = [4, 0, 0], sizes = [1, 8, 32], strides = [1, 1, 1]} : vector<12x12x32xf32> to vector<1x8x32xf32>
    %260 = vector.shape_cast %259 : vector<1x8x32xf32> to vector<8x32xf32>
    %261 = vector.extract_strided_slice %84 {offsets = [5, 0, 0], sizes = [1, 8, 32], strides = [1, 1, 1]} : vector<12x12x32xf32> to vector<1x8x32xf32>
    %262 = vector.shape_cast %261 : vector<1x8x32xf32> to vector<8x32xf32>
    %263 = vector.extract_strided_slice %84 {offsets = [6, 0, 0], sizes = [1, 8, 32], strides = [1, 1, 1]} : vector<12x12x32xf32> to vector<1x8x32xf32>
    %264 = vector.shape_cast %263 : vector<1x8x32xf32> to vector<8x32xf32>
    %265 = vector.extract_strided_slice %84 {offsets = [7, 0, 0], sizes = [1, 8, 32], strides = [1, 1, 1]} : vector<12x12x32xf32> to vector<1x8x32xf32>
    %266 = vector.shape_cast %265 : vector<1x8x32xf32> to vector<8x32xf32>
    %267 = vector.extract_strided_slice %84 {offsets = [8, 0, 0], sizes = [1, 8, 32], strides = [1, 1, 1]} : vector<12x12x32xf32> to vector<1x8x32xf32>
    %268 = vector.shape_cast %267 : vector<1x8x32xf32> to vector<8x32xf32>
    %269 = vector.extract_strided_slice %84 {offsets = [9, 0, 0], sizes = [1, 8, 32], strides = [1, 1, 1]} : vector<12x12x32xf32> to vector<1x8x32xf32>
    %270 = vector.shape_cast %269 : vector<1x8x32xf32> to vector<8x32xf32>
    %271 = tpu.concatenate %256, %258, %260, %262, %264, %266, %268, %270 in 0 : vector<8x32xf32>, vector<8x32xf32>, vector<8x32xf32>, vector<8x32xf32>, vector<8x32xf32>, vector<8x32xf32>, vector<8x32xf32>, vector<8x32xf32> -> vector<64x32xf32>
    %272 = vector.extract_strided_slice %84 {offsets = [2, 1, 0], sizes = [1, 8, 32], strides = [1, 1, 1]} : vector<12x12x32xf32> to vector<1x8x32xf32>
    %273 = vector.shape_cast %272 : vector<1x8x32xf32> to vector<8x32xf32>
    %274 = vector.extract_strided_slice %84 {offsets = [3, 1, 0], sizes = [1, 8, 32], strides = [1, 1, 1]} : vector<12x12x32xf32> to vector<1x8x32xf32>
    %275 = vector.shape_cast %274 : vector<1x8x32xf32> to vector<8x32xf32>
    %276 = vector.extract_strided_slice %84 {offsets = [4, 1, 0], sizes = [1, 8, 32], strides = [1, 1, 1]} : vector<12x12x32xf32> to vector<1x8x32xf32>
    %277 = vector.shape_cast %276 : vector<1x8x32xf32> to vector<8x32xf32>
    %278 = vector.extract_strided_slice %84 {offsets = [5, 1, 0], sizes = [1, 8, 32], strides = [1, 1, 1]} : vector<12x12x32xf32> to vector<1x8x32xf32>
    %279 = vector.shape_cast %278 : vector<1x8x32xf32> to vector<8x32xf32>
    %280 = vector.extract_strided_slice %84 {offsets = [6, 1, 0], sizes = [1, 8, 32], strides = [1, 1, 1]} : vector<12x12x32xf32> to vector<1x8x32xf32>
    %281 = vector.shape_cast %280 : vector<1x8x32xf32> to vector<8x32xf32>
    %282 = vector.extract_strided_slice %84 {offsets = [7, 1, 0], sizes = [1, 8, 32], strides = [1, 1, 1]} : vector<12x12x32xf32> to vector<1x8x32xf32>
    %283 = vector.shape_cast %282 : vector<1x8x32xf32> to vector<8x32xf32>
    %284 = vector.extract_strided_slice %84 {offsets = [8, 1, 0], sizes = [1, 8, 32], strides = [1, 1, 1]} : vector<12x12x32xf32> to vector<1x8x32xf32>
    %285 = vector.shape_cast %284 : vector<1x8x32xf32> to vector<8x32xf32>
    %286 = vector.extract_strided_slice %84 {offsets = [9, 1, 0], sizes = [1, 8, 32], strides = [1, 1, 1]} : vector<12x12x32xf32> to vector<1x8x32xf32>
    %287 = vector.shape_cast %286 : vector<1x8x32xf32> to vector<8x32xf32>
    %288 = tpu.concatenate %273, %275, %277, %279, %281, %283, %285, %287 in 0 : vector<8x32xf32>, vector<8x32xf32>, vector<8x32xf32>, vector<8x32xf32>, vector<8x32xf32>, vector<8x32xf32>, vector<8x32xf32>, vector<8x32xf32> -> vector<64x32xf32>
    %289 = vector.extract_strided_slice %84 {offsets = [2, 2, 0], sizes = [1, 8, 32], strides = [1, 1, 1]} : vector<12x12x32xf32> to vector<1x8x32xf32>
    %290 = vector.shape_cast %289 : vector<1x8x32xf32> to vector<8x32xf32>
    %291 = vector.extract_strided_slice %84 {offsets = [3, 2, 0], sizes = [1, 8, 32], strides = [1, 1, 1]} : vector<12x12x32xf32> to vector<1x8x32xf32>
    %292 = vector.shape_cast %291 : vector<1x8x32xf32> to vector<8x32xf32>
    %293 = vector.extract_strided_slice %84 {offsets = [4, 2, 0], sizes = [1, 8, 32], strides = [1, 1, 1]} : vector<12x12x32xf32> to vector<1x8x32xf32>
    %294 = vector.shape_cast %293 : vector<1x8x32xf32> to vector<8x32xf32>
    %295 = vector.extract_strided_slice %84 {offsets = [5, 2, 0], sizes = [1, 8, 32], strides = [1, 1, 1]} : vector<12x12x32xf32> to vector<1x8x32xf32>
    %296 = vector.shape_cast %295 : vector<1x8x32xf32> to vector<8x32xf32>
    %297 = vector.extract_strided_slice %84 {offsets = [6, 2, 0], sizes = [1, 8, 32], strides = [1, 1, 1]} : vector<12x12x32xf32> to vector<1x8x32xf32>
    %298 = vector.shape_cast %297 : vector<1x8x32xf32> to vector<8x32xf32>
    %299 = vector.extract_strided_slice %84 {offsets = [7, 2, 0], sizes = [1, 8, 32], strides = [1, 1, 1]} : vector<12x12x32xf32> to vector<1x8x32xf32>
    %300 = vector.shape_cast %299 : vector<1x8x32xf32> to vector<8x32xf32>
    %301 = vector.extract_strided_slice %84 {offsets = [8, 2, 0], sizes = [1, 8, 32], strides = [1, 1, 1]} : vector<12x12x32xf32> to vector<1x8x32xf32>
    %302 = vector.shape_cast %301 : vector<1x8x32xf32> to vector<8x32xf32>
    %303 = vector.extract_strided_slice %84 {offsets = [9, 2, 0], sizes = [1, 8, 32], strides = [1, 1, 1]} : vector<12x12x32xf32> to vector<1x8x32xf32>
    %304 = vector.shape_cast %303 : vector<1x8x32xf32> to vector<8x32xf32>
    %305 = tpu.concatenate %290, %292, %294, %296, %298, %300, %302, %304 in 0 : vector<8x32xf32>, vector<8x32xf32>, vector<8x32xf32>, vector<8x32xf32>, vector<8x32xf32>, vector<8x32xf32>, vector<8x32xf32>, vector<8x32xf32> -> vector<64x32xf32>
    %306 = vector.extract_strided_slice %84 {offsets = [2, 3, 0], sizes = [1, 8, 32], strides = [1, 1, 1]} : vector<12x12x32xf32> to vector<1x8x32xf32>
    %307 = vector.shape_cast %306 : vector<1x8x32xf32> to vector<8x32xf32>
    %308 = vector.extract_strided_slice %84 {offsets = [3, 3, 0], sizes = [1, 8, 32], strides = [1, 1, 1]} : vector<12x12x32xf32> to vector<1x8x32xf32>
    %309 = vector.shape_cast %308 : vector<1x8x32xf32> to vector<8x32xf32>
    %310 = vector.extract_strided_slice %84 {offsets = [4, 3, 0], sizes = [1, 8, 32], strides = [1, 1, 1]} : vector<12x12x32xf32> to vector<1x8x32xf32>
    %311 = vector.shape_cast %310 : vector<1x8x32xf32> to vector<8x32xf32>
    %312 = vector.extract_strided_slice %84 {offsets = [5, 3, 0], sizes = [1, 8, 32], strides = [1, 1, 1]} : vector<12x12x32xf32> to vector<1x8x32xf32>
    %313 = vector.shape_cast %312 : vector<1x8x32xf32> to vector<8x32xf32>
    %314 = vector.extract_strided_slice %84 {offsets = [6, 3, 0], sizes = [1, 8, 32], strides = [1, 1, 1]} : vector<12x12x32xf32> to vector<1x8x32xf32>
    %315 = vector.shape_cast %314 : vector<1x8x32xf32> to vector<8x32xf32>
    %316 = vector.extract_strided_slice %84 {offsets = [7, 3, 0], sizes = [1, 8, 32], strides = [1, 1, 1]} : vector<12x12x32xf32> to vector<1x8x32xf32>
    %317 = vector.shape_cast %316 : vector<1x8x32xf32> to vector<8x32xf32>
    %318 = vector.extract_strided_slice %84 {offsets = [8, 3, 0], sizes = [1, 8, 32], strides = [1, 1, 1]} : vector<12x12x32xf32> to vector<1x8x32xf32>
    %319 = vector.shape_cast %318 : vector<1x8x32xf32> to vector<8x32xf32>
    %320 = vector.extract_strided_slice %84 {offsets = [9, 3, 0], sizes = [1, 8, 32], strides = [1, 1, 1]} : vector<12x12x32xf32> to vector<1x8x32xf32>
    %321 = vector.shape_cast %320 : vector<1x8x32xf32> to vector<8x32xf32>
    %322 = tpu.concatenate %307, %309, %311, %313, %315, %317, %319, %321 in 0 : vector<8x32xf32>, vector<8x32xf32>, vector<8x32xf32>, vector<8x32xf32>, vector<8x32xf32>, vector<8x32xf32>, vector<8x32xf32>, vector<8x32xf32> -> vector<64x32xf32>
    %323 = vector.extract_strided_slice %84 {offsets = [2, 4, 0], sizes = [1, 8, 32], strides = [1, 1, 1]} : vector<12x12x32xf32> to vector<1x8x32xf32>
    %324 = vector.shape_cast %323 : vector<1x8x32xf32> to vector<8x32xf32>
    %325 = vector.extract_strided_slice %84 {offsets = [3, 4, 0], sizes = [1, 8, 32], strides = [1, 1, 1]} : vector<12x12x32xf32> to vector<1x8x32xf32>
    %326 = vector.shape_cast %325 : vector<1x8x32xf32> to vector<8x32xf32>
    %327 = vector.extract_strided_slice %84 {offsets = [4, 4, 0], sizes = [1, 8, 32], strides = [1, 1, 1]} : vector<12x12x32xf32> to vector<1x8x32xf32>
    %328 = vector.shape_cast %327 : vector<1x8x32xf32> to vector<8x32xf32>
    %329 = vector.extract_strided_slice %84 {offsets = [5, 4, 0], sizes = [1, 8, 32], strides = [1, 1, 1]} : vector<12x12x32xf32> to vector<1x8x32xf32>
    %330 = vector.shape_cast %329 : vector<1x8x32xf32> to vector<8x32xf32>
    %331 = vector.extract_strided_slice %84 {offsets = [6, 4, 0], sizes = [1, 8, 32], strides = [1, 1, 1]} : vector<12x12x32xf32> to vector<1x8x32xf32>
    %332 = vector.shape_cast %331 : vector<1x8x32xf32> to vector<8x32xf32>
    %333 = vector.extract_strided_slice %84 {offsets = [7, 4, 0], sizes = [1, 8, 32], strides = [1, 1, 1]} : vector<12x12x32xf32> to vector<1x8x32xf32>
    %334 = vector.shape_cast %333 : vector<1x8x32xf32> to vector<8x32xf32>
    %335 = vector.extract_strided_slice %84 {offsets = [8, 4, 0], sizes = [1, 8, 32], strides = [1, 1, 1]} : vector<12x12x32xf32> to vector<1x8x32xf32>
    %336 = vector.shape_cast %335 : vector<1x8x32xf32> to vector<8x32xf32>
    %337 = vector.extract_strided_slice %84 {offsets = [9, 4, 0], sizes = [1, 8, 32], strides = [1, 1, 1]} : vector<12x12x32xf32> to vector<1x8x32xf32>
    %338 = vector.shape_cast %337 : vector<1x8x32xf32> to vector<8x32xf32>
    %339 = tpu.concatenate %324, %326, %328, %330, %332, %334, %336, %338 in 0 : vector<8x32xf32>, vector<8x32xf32>, vector<8x32xf32>, vector<8x32xf32>, vector<8x32xf32>, vector<8x32xf32>, vector<8x32xf32>, vector<8x32xf32> -> vector<64x32xf32>
    %340 = vector.extract_strided_slice %84 {offsets = [3, 0, 0], sizes = [1, 8, 32], strides = [1, 1, 1]} : vector<12x12x32xf32> to vector<1x8x32xf32>
    %341 = vector.shape_cast %340 : vector<1x8x32xf32> to vector<8x32xf32>
    %342 = vector.extract_strided_slice %84 {offsets = [4, 0, 0], sizes = [1, 8, 32], strides = [1, 1, 1]} : vector<12x12x32xf32> to vector<1x8x32xf32>
    %343 = vector.shape_cast %342 : vector<1x8x32xf32> to vector<8x32xf32>
    %344 = vector.extract_strided_slice %84 {offsets = [5, 0, 0], sizes = [1, 8, 32], strides = [1, 1, 1]} : vector<12x12x32xf32> to vector<1x8x32xf32>
    %345 = vector.shape_cast %344 : vector<1x8x32xf32> to vector<8x32xf32>
    %346 = vector.extract_strided_slice %84 {offsets = [6, 0, 0], sizes = [1, 8, 32], strides = [1, 1, 1]} : vector<12x12x32xf32> to vector<1x8x32xf32>
    %347 = vector.shape_cast %346 : vector<1x8x32xf32> to vector<8x32xf32>
    %348 = vector.extract_strided_slice %84 {offsets = [7, 0, 0], sizes = [1, 8, 32], strides = [1, 1, 1]} : vector<12x12x32xf32> to vector<1x8x32xf32>
    %349 = vector.shape_cast %348 : vector<1x8x32xf32> to vector<8x32xf32>
    %350 = vector.extract_strided_slice %84 {offsets = [8, 0, 0], sizes = [1, 8, 32], strides = [1, 1, 1]} : vector<12x12x32xf32> to vector<1x8x32xf32>
    %351 = vector.shape_cast %350 : vector<1x8x32xf32> to vector<8x32xf32>
    %352 = vector.extract_strided_slice %84 {offsets = [9, 0, 0], sizes = [1, 8, 32], strides = [1, 1, 1]} : vector<12x12x32xf32> to vector<1x8x32xf32>
    %353 = vector.shape_cast %352 : vector<1x8x32xf32> to vector<8x32xf32>
    %354 = vector.extract_strided_slice %84 {offsets = [10, 0, 0], sizes = [1, 8, 32], strides = [1, 1, 1]} : vector<12x12x32xf32> to vector<1x8x32xf32>
    %355 = vector.shape_cast %354 : vector<1x8x32xf32> to vector<8x32xf32>
    %356 = tpu.concatenate %341, %343, %345, %347, %349, %351, %353, %355 in 0 : vector<8x32xf32>, vector<8x32xf32>, vector<8x32xf32>, vector<8x32xf32>, vector<8x32xf32>, vector<8x32xf32>, vector<8x32xf32>, vector<8x32xf32> -> vector<64x32xf32>
    %357 = vector.extract_strided_slice %84 {offsets = [3, 1, 0], sizes = [1, 8, 32], strides = [1, 1, 1]} : vector<12x12x32xf32> to vector<1x8x32xf32>
    %358 = vector.shape_cast %357 : vector<1x8x32xf32> to vector<8x32xf32>
    %359 = vector.extract_strided_slice %84 {offsets = [4, 1, 0], sizes = [1, 8, 32], strides = [1, 1, 1]} : vector<12x12x32xf32> to vector<1x8x32xf32>
    %360 = vector.shape_cast %359 : vector<1x8x32xf32> to vector<8x32xf32>
    %361 = vector.extract_strided_slice %84 {offsets = [5, 1, 0], sizes = [1, 8, 32], strides = [1, 1, 1]} : vector<12x12x32xf32> to vector<1x8x32xf32>
    %362 = vector.shape_cast %361 : vector<1x8x32xf32> to vector<8x32xf32>
    %363 = vector.extract_strided_slice %84 {offsets = [6, 1, 0], sizes = [1, 8, 32], strides = [1, 1, 1]} : vector<12x12x32xf32> to vector<1x8x32xf32>
    %364 = vector.shape_cast %363 : vector<1x8x32xf32> to vector<8x32xf32>
    %365 = vector.extract_strided_slice %84 {offsets = [7, 1, 0], sizes = [1, 8, 32], strides = [1, 1, 1]} : vector<12x12x32xf32> to vector<1x8x32xf32>
    %366 = vector.shape_cast %365 : vector<1x8x32xf32> to vector<8x32xf32>
    %367 = vector.extract_strided_slice %84 {offsets = [8, 1, 0], sizes = [1, 8, 32], strides = [1, 1, 1]} : vector<12x12x32xf32> to vector<1x8x32xf32>
    %368 = vector.shape_cast %367 : vector<1x8x32xf32> to vector<8x32xf32>
    %369 = vector.extract_strided_slice %84 {offsets = [9, 1, 0], sizes = [1, 8, 32], strides = [1, 1, 1]} : vector<12x12x32xf32> to vector<1x8x32xf32>
    %370 = vector.shape_cast %369 : vector<1x8x32xf32> to vector<8x32xf32>
    %371 = vector.extract_strided_slice %84 {offsets = [10, 1, 0], sizes = [1, 8, 32], strides = [1, 1, 1]} : vector<12x12x32xf32> to vector<1x8x32xf32>
    %372 = vector.shape_cast %371 : vector<1x8x32xf32> to vector<8x32xf32>
    %373 = tpu.concatenate %358, %360, %362, %364, %366, %368, %370, %372 in 0 : vector<8x32xf32>, vector<8x32xf32>, vector<8x32xf32>, vector<8x32xf32>, vector<8x32xf32>, vector<8x32xf32>, vector<8x32xf32>, vector<8x32xf32> -> vector<64x32xf32>
    %374 = vector.extract_strided_slice %84 {offsets = [3, 2, 0], sizes = [1, 8, 32], strides = [1, 1, 1]} : vector<12x12x32xf32> to vector<1x8x32xf32>
    %375 = vector.shape_cast %374 : vector<1x8x32xf32> to vector<8x32xf32>
    %376 = vector.extract_strided_slice %84 {offsets = [4, 2, 0], sizes = [1, 8, 32], strides = [1, 1, 1]} : vector<12x12x32xf32> to vector<1x8x32xf32>
    %377 = vector.shape_cast %376 : vector<1x8x32xf32> to vector<8x32xf32>
    %378 = vector.extract_strided_slice %84 {offsets = [5, 2, 0], sizes = [1, 8, 32], strides = [1, 1, 1]} : vector<12x12x32xf32> to vector<1x8x32xf32>
    %379 = vector.shape_cast %378 : vector<1x8x32xf32> to vector<8x32xf32>
    %380 = vector.extract_strided_slice %84 {offsets = [6, 2, 0], sizes = [1, 8, 32], strides = [1, 1, 1]} : vector<12x12x32xf32> to vector<1x8x32xf32>
    %381 = vector.shape_cast %380 : vector<1x8x32xf32> to vector<8x32xf32>
    %382 = vector.extract_strided_slice %84 {offsets = [7, 2, 0], sizes = [1, 8, 32], strides = [1, 1, 1]} : vector<12x12x32xf32> to vector<1x8x32xf32>
    %383 = vector.shape_cast %382 : vector<1x8x32xf32> to vector<8x32xf32>
    %384 = vector.extract_strided_slice %84 {offsets = [8, 2, 0], sizes = [1, 8, 32], strides = [1, 1, 1]} : vector<12x12x32xf32> to vector<1x8x32xf32>
    %385 = vector.shape_cast %384 : vector<1x8x32xf32> to vector<8x32xf32>
    %386 = vector.extract_strided_slice %84 {offsets = [9, 2, 0], sizes = [1, 8, 32], strides = [1, 1, 1]} : vector<12x12x32xf32> to vector<1x8x32xf32>
    %387 = vector.shape_cast %386 : vector<1x8x32xf32> to vector<8x32xf32>
    %388 = vector.extract_strided_slice %84 {offsets = [10, 2, 0], sizes = [1, 8, 32], strides = [1, 1, 1]} : vector<12x12x32xf32> to vector<1x8x32xf32>
    %389 = vector.shape_cast %388 : vector<1x8x32xf32> to vector<8x32xf32>
    %390 = tpu.concatenate %375, %377, %379, %381, %383, %385, %387, %389 in 0 : vector<8x32xf32>, vector<8x32xf32>, vector<8x32xf32>, vector<8x32xf32>, vector<8x32xf32>, vector<8x32xf32>, vector<8x32xf32>, vector<8x32xf32> -> vector<64x32xf32>
    %391 = vector.extract_strided_slice %84 {offsets = [3, 3, 0], sizes = [1, 8, 32], strides = [1, 1, 1]} : vector<12x12x32xf32> to vector<1x8x32xf32>
    %392 = vector.shape_cast %391 : vector<1x8x32xf32> to vector<8x32xf32>
    %393 = vector.extract_strided_slice %84 {offsets = [4, 3, 0], sizes = [1, 8, 32], strides = [1, 1, 1]} : vector<12x12x32xf32> to vector<1x8x32xf32>
    %394 = vector.shape_cast %393 : vector<1x8x32xf32> to vector<8x32xf32>
    %395 = vector.extract_strided_slice %84 {offsets = [5, 3, 0], sizes = [1, 8, 32], strides = [1, 1, 1]} : vector<12x12x32xf32> to vector<1x8x32xf32>
    %396 = vector.shape_cast %395 : vector<1x8x32xf32> to vector<8x32xf32>
    %397 = vector.extract_strided_slice %84 {offsets = [6, 3, 0], sizes = [1, 8, 32], strides = [1, 1, 1]} : vector<12x12x32xf32> to vector<1x8x32xf32>
    %398 = vector.shape_cast %397 : vector<1x8x32xf32> to vector<8x32xf32>
    %399 = vector.extract_strided_slice %84 {offsets = [7, 3, 0], sizes = [1, 8, 32], strides = [1, 1, 1]} : vector<12x12x32xf32> to vector<1x8x32xf32>
    %400 = vector.shape_cast %399 : vector<1x8x32xf32> to vector<8x32xf32>
    %401 = vector.extract_strided_slice %84 {offsets = [8, 3, 0], sizes = [1, 8, 32], strides = [1, 1, 1]} : vector<12x12x32xf32> to vector<1x8x32xf32>
    %402 = vector.shape_cast %401 : vector<1x8x32xf32> to vector<8x32xf32>
    %403 = vector.extract_strided_slice %84 {offsets = [9, 3, 0], sizes = [1, 8, 32], strides = [1, 1, 1]} : vector<12x12x32xf32> to vector<1x8x32xf32>
    %404 = vector.shape_cast %403 : vector<1x8x32xf32> to vector<8x32xf32>
    %405 = vector.extract_strided_slice %84 {offsets = [10, 3, 0], sizes = [1, 8, 32], strides = [1, 1, 1]} : vector<12x12x32xf32> to vector<1x8x32xf32>
    %406 = vector.shape_cast %405 : vector<1x8x32xf32> to vector<8x32xf32>
    %407 = tpu.concatenate %392, %394, %396, %398, %400, %402, %404, %406 in 0 : vector<8x32xf32>, vector<8x32xf32>, vector<8x32xf32>, vector<8x32xf32>, vector<8x32xf32>, vector<8x32xf32>, vector<8x32xf32>, vector<8x32xf32> -> vector<64x32xf32>
    %408 = vector.extract_strided_slice %84 {offsets = [3, 4, 0], sizes = [1, 8, 32], strides = [1, 1, 1]} : vector<12x12x32xf32> to vector<1x8x32xf32>
    %409 = vector.shape_cast %408 : vector<1x8x32xf32> to vector<8x32xf32>
    %410 = vector.extract_strided_slice %84 {offsets = [4, 4, 0], sizes = [1, 8, 32], strides = [1, 1, 1]} : vector<12x12x32xf32> to vector<1x8x32xf32>
    %411 = vector.shape_cast %410 : vector<1x8x32xf32> to vector<8x32xf32>
    %412 = vector.extract_strided_slice %84 {offsets = [5, 4, 0], sizes = [1, 8, 32], strides = [1, 1, 1]} : vector<12x12x32xf32> to vector<1x8x32xf32>
    %413 = vector.shape_cast %412 : vector<1x8x32xf32> to vector<8x32xf32>
    %414 = vector.extract_strided_slice %84 {offsets = [6, 4, 0], sizes = [1, 8, 32], strides = [1, 1, 1]} : vector<12x12x32xf32> to vector<1x8x32xf32>
    %415 = vector.shape_cast %414 : vector<1x8x32xf32> to vector<8x32xf32>
    %416 = vector.extract_strided_slice %84 {offsets = [7, 4, 0], sizes = [1, 8, 32], strides = [1, 1, 1]} : vector<12x12x32xf32> to vector<1x8x32xf32>
    %417 = vector.shape_cast %416 : vector<1x8x32xf32> to vector<8x32xf32>
    %418 = vector.extract_strided_slice %84 {offsets = [8, 4, 0], sizes = [1, 8, 32], strides = [1, 1, 1]} : vector<12x12x32xf32> to vector<1x8x32xf32>
    %419 = vector.shape_cast %418 : vector<1x8x32xf32> to vector<8x32xf32>
    %420 = vector.extract_strided_slice %84 {offsets = [9, 4, 0], sizes = [1, 8, 32], strides = [1, 1, 1]} : vector<12x12x32xf32> to vector<1x8x32xf32>
    %421 = vector.shape_cast %420 : vector<1x8x32xf32> to vector<8x32xf32>
    %422 = vector.extract_strided_slice %84 {offsets = [10, 4, 0], sizes = [1, 8, 32], strides = [1, 1, 1]} : vector<12x12x32xf32> to vector<1x8x32xf32>
    %423 = vector.shape_cast %422 : vector<1x8x32xf32> to vector<8x32xf32>
    %424 = tpu.concatenate %409, %411, %413, %415, %417, %419, %421, %423 in 0 : vector<8x32xf32>, vector<8x32xf32>, vector<8x32xf32>, vector<8x32xf32>, vector<8x32xf32>, vector<8x32xf32>, vector<8x32xf32>, vector<8x32xf32> -> vector<64x32xf32>
    %425 = vector.extract_strided_slice %84 {offsets = [4, 0, 0], sizes = [1, 8, 32], strides = [1, 1, 1]} : vector<12x12x32xf32> to vector<1x8x32xf32>
    %426 = vector.shape_cast %425 : vector<1x8x32xf32> to vector<8x32xf32>
    %427 = vector.extract_strided_slice %84 {offsets = [5, 0, 0], sizes = [1, 8, 32], strides = [1, 1, 1]} : vector<12x12x32xf32> to vector<1x8x32xf32>
    %428 = vector.shape_cast %427 : vector<1x8x32xf32> to vector<8x32xf32>
    %429 = vector.extract_strided_slice %84 {offsets = [6, 0, 0], sizes = [1, 8, 32], strides = [1, 1, 1]} : vector<12x12x32xf32> to vector<1x8x32xf32>
    %430 = vector.shape_cast %429 : vector<1x8x32xf32> to vector<8x32xf32>
    %431 = vector.extract_strided_slice %84 {offsets = [7, 0, 0], sizes = [1, 8, 32], strides = [1, 1, 1]} : vector<12x12x32xf32> to vector<1x8x32xf32>
    %432 = vector.shape_cast %431 : vector<1x8x32xf32> to vector<8x32xf32>
    %433 = vector.extract_strided_slice %84 {offsets = [8, 0, 0], sizes = [1, 8, 32], strides = [1, 1, 1]} : vector<12x12x32xf32> to vector<1x8x32xf32>
    %434 = vector.shape_cast %433 : vector<1x8x32xf32> to vector<8x32xf32>
    %435 = vector.extract_strided_slice %84 {offsets = [9, 0, 0], sizes = [1, 8, 32], strides = [1, 1, 1]} : vector<12x12x32xf32> to vector<1x8x32xf32>
    %436 = vector.shape_cast %435 : vector<1x8x32xf32> to vector<8x32xf32>
    %437 = vector.extract_strided_slice %84 {offsets = [10, 0, 0], sizes = [1, 8, 32], strides = [1, 1, 1]} : vector<12x12x32xf32> to vector<1x8x32xf32>
    %438 = vector.shape_cast %437 : vector<1x8x32xf32> to vector<8x32xf32>
    %439 = vector.extract_strided_slice %84 {offsets = [11, 0, 0], sizes = [1, 8, 32], strides = [1, 1, 1]} : vector<12x12x32xf32> to vector<1x8x32xf32>
    %440 = vector.shape_cast %439 : vector<1x8x32xf32> to vector<8x32xf32>
    %441 = tpu.concatenate %426, %428, %430, %432, %434, %436, %438, %440 in 0 : vector<8x32xf32>, vector<8x32xf32>, vector<8x32xf32>, vector<8x32xf32>, vector<8x32xf32>, vector<8x32xf32>, vector<8x32xf32>, vector<8x32xf32> -> vector<64x32xf32>
    %442 = vector.extract_strided_slice %84 {offsets = [4, 1, 0], sizes = [1, 8, 32], strides = [1, 1, 1]} : vector<12x12x32xf32> to vector<1x8x32xf32>
    %443 = vector.shape_cast %442 : vector<1x8x32xf32> to vector<8x32xf32>
    %444 = vector.extract_strided_slice %84 {offsets = [5, 1, 0], sizes = [1, 8, 32], strides = [1, 1, 1]} : vector<12x12x32xf32> to vector<1x8x32xf32>
    %445 = vector.shape_cast %444 : vector<1x8x32xf32> to vector<8x32xf32>
    %446 = vector.extract_strided_slice %84 {offsets = [6, 1, 0], sizes = [1, 8, 32], strides = [1, 1, 1]} : vector<12x12x32xf32> to vector<1x8x32xf32>
    %447 = vector.shape_cast %446 : vector<1x8x32xf32> to vector<8x32xf32>
    %448 = vector.extract_strided_slice %84 {offsets = [7, 1, 0], sizes = [1, 8, 32], strides = [1, 1, 1]} : vector<12x12x32xf32> to vector<1x8x32xf32>
    %449 = vector.shape_cast %448 : vector<1x8x32xf32> to vector<8x32xf32>
    %450 = vector.extract_strided_slice %84 {offsets = [8, 1, 0], sizes = [1, 8, 32], strides = [1, 1, 1]} : vector<12x12x32xf32> to vector<1x8x32xf32>
    %451 = vector.shape_cast %450 : vector<1x8x32xf32> to vector<8x32xf32>
    %452 = vector.extract_strided_slice %84 {offsets = [9, 1, 0], sizes = [1, 8, 32], strides = [1, 1, 1]} : vector<12x12x32xf32> to vector<1x8x32xf32>
    %453 = vector.shape_cast %452 : vector<1x8x32xf32> to vector<8x32xf32>
    %454 = vector.extract_strided_slice %84 {offsets = [10, 1, 0], sizes = [1, 8, 32], strides = [1, 1, 1]} : vector<12x12x32xf32> to vector<1x8x32xf32>
    %455 = vector.shape_cast %454 : vector<1x8x32xf32> to vector<8x32xf32>
    %456 = vector.extract_strided_slice %84 {offsets = [11, 1, 0], sizes = [1, 8, 32], strides = [1, 1, 1]} : vector<12x12x32xf32> to vector<1x8x32xf32>
    %457 = vector.shape_cast %456 : vector<1x8x32xf32> to vector<8x32xf32>
    %458 = tpu.concatenate %443, %445, %447, %449, %451, %453, %455, %457 in 0 : vector<8x32xf32>, vector<8x32xf32>, vector<8x32xf32>, vector<8x32xf32>, vector<8x32xf32>, vector<8x32xf32>, vector<8x32xf32>, vector<8x32xf32> -> vector<64x32xf32>
    %459 = vector.extract_strided_slice %84 {offsets = [4, 2, 0], sizes = [1, 8, 32], strides = [1, 1, 1]} : vector<12x12x32xf32> to vector<1x8x32xf32>
    %460 = vector.shape_cast %459 : vector<1x8x32xf32> to vector<8x32xf32>
    %461 = vector.extract_strided_slice %84 {offsets = [5, 2, 0], sizes = [1, 8, 32], strides = [1, 1, 1]} : vector<12x12x32xf32> to vector<1x8x32xf32>
    %462 = vector.shape_cast %461 : vector<1x8x32xf32> to vector<8x32xf32>
    %463 = vector.extract_strided_slice %84 {offsets = [6, 2, 0], sizes = [1, 8, 32], strides = [1, 1, 1]} : vector<12x12x32xf32> to vector<1x8x32xf32>
    %464 = vector.shape_cast %463 : vector<1x8x32xf32> to vector<8x32xf32>
    %465 = vector.extract_strided_slice %84 {offsets = [7, 2, 0], sizes = [1, 8, 32], strides = [1, 1, 1]} : vector<12x12x32xf32> to vector<1x8x32xf32>
    %466 = vector.shape_cast %465 : vector<1x8x32xf32> to vector<8x32xf32>
    %467 = vector.extract_strided_slice %84 {offsets = [8, 2, 0], sizes = [1, 8, 32], strides = [1, 1, 1]} : vector<12x12x32xf32> to vector<1x8x32xf32>
    %468 = vector.shape_cast %467 : vector<1x8x32xf32> to vector<8x32xf32>
    %469 = vector.extract_strided_slice %84 {offsets = [9, 2, 0], sizes = [1, 8, 32], strides = [1, 1, 1]} : vector<12x12x32xf32> to vector<1x8x32xf32>
    %470 = vector.shape_cast %469 : vector<1x8x32xf32> to vector<8x32xf32>
    %471 = vector.extract_strided_slice %84 {offsets = [10, 2, 0], sizes = [1, 8, 32], strides = [1, 1, 1]} : vector<12x12x32xf32> to vector<1x8x32xf32>
    %472 = vector.shape_cast %471 : vector<1x8x32xf32> to vector<8x32xf32>
    %473 = vector.extract_strided_slice %84 {offsets = [11, 2, 0], sizes = [1, 8, 32], strides = [1, 1, 1]} : vector<12x12x32xf32> to vector<1x8x32xf32>
    %474 = vector.shape_cast %473 : vector<1x8x32xf32> to vector<8x32xf32>
    %475 = tpu.concatenate %460, %462, %464, %466, %468, %470, %472, %474 in 0 : vector<8x32xf32>, vector<8x32xf32>, vector<8x32xf32>, vector<8x32xf32>, vector<8x32xf32>, vector<8x32xf32>, vector<8x32xf32>, vector<8x32xf32> -> vector<64x32xf32>
    %476 = vector.extract_strided_slice %84 {offsets = [4, 3, 0], sizes = [1, 8, 32], strides = [1, 1, 1]} : vector<12x12x32xf32> to vector<1x8x32xf32>
    %477 = vector.shape_cast %476 : vector<1x8x32xf32> to vector<8x32xf32>
    %478 = vector.extract_strided_slice %84 {offsets = [5, 3, 0], sizes = [1, 8, 32], strides = [1, 1, 1]} : vector<12x12x32xf32> to vector<1x8x32xf32>
    %479 = vector.shape_cast %478 : vector<1x8x32xf32> to vector<8x32xf32>
    %480 = vector.extract_strided_slice %84 {offsets = [6, 3, 0], sizes = [1, 8, 32], strides = [1, 1, 1]} : vector<12x12x32xf32> to vector<1x8x32xf32>
    %481 = vector.shape_cast %480 : vector<1x8x32xf32> to vector<8x32xf32>
    %482 = vector.extract_strided_slice %84 {offsets = [7, 3, 0], sizes = [1, 8, 32], strides = [1, 1, 1]} : vector<12x12x32xf32> to vector<1x8x32xf32>
    %483 = vector.shape_cast %482 : vector<1x8x32xf32> to vector<8x32xf32>
    %484 = vector.extract_strided_slice %84 {offsets = [8, 3, 0], sizes = [1, 8, 32], strides = [1, 1, 1]} : vector<12x12x32xf32> to vector<1x8x32xf32>
    %485 = vector.shape_cast %484 : vector<1x8x32xf32> to vector<8x32xf32>
    %486 = vector.extract_strided_slice %84 {offsets = [9, 3, 0], sizes = [1, 8, 32], strides = [1, 1, 1]} : vector<12x12x32xf32> to vector<1x8x32xf32>
    %487 = vector.shape_cast %486 : vector<1x8x32xf32> to vector<8x32xf32>
    %488 = vector.extract_strided_slice %84 {offsets = [10, 3, 0], sizes = [1, 8, 32], strides = [1, 1, 1]} : vector<12x12x32xf32> to vector<1x8x32xf32>
    %489 = vector.shape_cast %488 : vector<1x8x32xf32> to vector<8x32xf32>
    %490 = vector.extract_strided_slice %84 {offsets = [11, 3, 0], sizes = [1, 8, 32], strides = [1, 1, 1]} : vector<12x12x32xf32> to vector<1x8x32xf32>
    %491 = vector.shape_cast %490 : vector<1x8x32xf32> to vector<8x32xf32>
    %492 = tpu.concatenate %477, %479, %481, %483, %485, %487, %489, %491 in 0 : vector<8x32xf32>, vector<8x32xf32>, vector<8x32xf32>, vector<8x32xf32>, vector<8x32xf32>, vector<8x32xf32>, vector<8x32xf32>, vector<8x32xf32> -> vector<64x32xf32>
    %493 = vector.extract_strided_slice %84 {offsets = [4, 4, 0], sizes = [1, 8, 32], strides = [1, 1, 1]} : vector<12x12x32xf32> to vector<1x8x32xf32>
    %494 = vector.shape_cast %493 : vector<1x8x32xf32> to vector<8x32xf32>
    %495 = vector.extract_strided_slice %84 {offsets = [5, 4, 0], sizes = [1, 8, 32], strides = [1, 1, 1]} : vector<12x12x32xf32> to vector<1x8x32xf32>
    %496 = vector.shape_cast %495 : vector<1x8x32xf32> to vector<8x32xf32>
    %497 = vector.extract_strided_slice %84 {offsets = [6, 4, 0], sizes = [1, 8, 32], strides = [1, 1, 1]} : vector<12x12x32xf32> to vector<1x8x32xf32>
    %498 = vector.shape_cast %497 : vector<1x8x32xf32> to vector<8x32xf32>
    %499 = vector.extract_strided_slice %84 {offsets = [7, 4, 0], sizes = [1, 8, 32], strides = [1, 1, 1]} : vector<12x12x32xf32> to vector<1x8x32xf32>
    %500 = vector.shape_cast %499 : vector<1x8x32xf32> to vector<8x32xf32>
    %501 = vector.extract_strided_slice %84 {offsets = [8, 4, 0], sizes = [1, 8, 32], strides = [1, 1, 1]} : vector<12x12x32xf32> to vector<1x8x32xf32>
    %502 = vector.shape_cast %501 : vector<1x8x32xf32> to vector<8x32xf32>
    %503 = vector.extract_strided_slice %84 {offsets = [9, 4, 0], sizes = [1, 8, 32], strides = [1, 1, 1]} : vector<12x12x32xf32> to vector<1x8x32xf32>
    %504 = vector.shape_cast %503 : vector<1x8x32xf32> to vector<8x32xf32>
    %505 = vector.extract_strided_slice %84 {offsets = [10, 4, 0], sizes = [1, 8, 32], strides = [1, 1, 1]} : vector<12x12x32xf32> to vector<1x8x32xf32>
    %506 = vector.shape_cast %505 : vector<1x8x32xf32> to vector<8x32xf32>
    %507 = vector.extract_strided_slice %84 {offsets = [11, 4, 0], sizes = [1, 8, 32], strides = [1, 1, 1]} : vector<12x12x32xf32> to vector<1x8x32xf32>
    %508 = vector.shape_cast %507 : vector<1x8x32xf32> to vector<8x32xf32>
    %509 = tpu.concatenate %494, %496, %498, %500, %502, %504, %506, %508 in 0 : vector<8x32xf32>, vector<8x32xf32>, vector<8x32xf32>, vector<8x32xf32>, vector<8x32xf32>, vector<8x32xf32>, vector<8x32xf32>, vector<8x32xf32> -> vector<64x32xf32>
    %510 = tpu.concatenate %101, %118, %135, %152, %169, %186, %203, %220, %237, %254, %271, %288, %305, %322, %339, %356 in 1 : vector<64x32xf32>, vector<64x32xf32>, vector<64x32xf32>, vector<64x32xf32>, vector<64x32xf32>, vector<64x32xf32>, vector<64x32xf32>, vector<64x32xf32>, vector<64x32xf32>, vector<64x32xf32>, vector<64x32xf32>, vector<64x32xf32>, vector<64x32xf32>, vector<64x32xf32>, vector<64x32xf32>, vector<64x32xf32> -> vector<64x512xf32>
    %511 = tpu.concatenate %373, %390, %407, %424, %441, %458, %475, %492, %509 in 1 : vector<64x32xf32>, vector<64x32xf32>, vector<64x32xf32>, vector<64x32xf32>, vector<64x32xf32>, vector<64x32xf32>, vector<64x32xf32>, vector<64x32xf32>, vector<64x32xf32> -> vector<64x288xf32>
    %512 = tpu.concatenate %510, %511 in 1 : vector<64x512xf32>, vector<64x288xf32> -> vector<64x800xf32>
    %513 = arith.truncf %512 : vector<64x800xf32> to vector<64x800xbf16>
    %c0_27 = arith.constant 0 : index
    %c0_28 = arith.constant 0 : index
    %514 = vector.load %arg4[%c0_27, %c0_28] : memref<800x32xbf16, #tpu.memory_space<vmem>>, vector<800x32xbf16>
    %cst_29 = arith.constant dense<0.000000e+00> : vector<64x32xf32>
    %515 = tpu.matmul %513, %514, %cst_29 {dimension_numbers = #tpu.dot_dimension_numbers<[1], [0], [0], [1], [0, 0, 1, 1], [], []>} : vector<64x800xbf16>, vector<800x32xbf16>, vector<64x32xf32> -> vector<64x32xf32>
    %c0_30 = arith.constant 0 : index
    %c0_31 = arith.constant 0 : index
    %516 = vector.load %arg5[%c0_30, %c0_31] : memref<1x32xf32, #tpu.memory_space<vmem>>, vector<1x32xf32>
    %517 = vector.broadcast %516 : vector<1x32xf32> to vector<64x32xf32>
    %518 = arith.addf %515, %517 : vector<64x32xf32>
    %cst_32 = arith.constant dense<0.000000e+00> : vector<64xf32>
    %519 = vector.multi_reduction <add>, %518, %cst_32 [1] : vector<64x32xf32> to vector<64xf32>
    %520 = vector.shape_cast %519 : vector<64xf32> to vector<64x1xf32>
    %cst_33 = arith.constant 3.200000e+01 : f32
    %521 = vector.broadcast %cst_33 : f32 to vector<64x1xf32>
    %522 = arith.divf %520, %521 : vector<64x1xf32>
    %523 = vector.broadcast %522 : vector<64x1xf32> to vector<64x32xf32>
    %524 = arith.subf %518, %523 : vector<64x32xf32>
    %525 = arith.mulf %524, %524 : vector<64x32xf32>
    %cst_34 = arith.constant dense<0.000000e+00> : vector<64xf32>
    %526 = vector.multi_reduction <add>, %525, %cst_34 [1] : vector<64x32xf32> to vector<64xf32>
    %527 = vector.shape_cast %526 : vector<64xf32> to vector<64x1xf32>
    %cst_35 = arith.constant 3.200000e+01 : f32
    %528 = vector.broadcast %cst_35 : f32 to vector<64x1xf32>
    %529 = arith.divf %527, %528 : vector<64x1xf32>
    %530 = vector.broadcast %522 : vector<64x1xf32> to vector<64x32xf32>
    %531 = arith.subf %518, %530 : vector<64x32xf32>
    %cst_36 = arith.constant 9.99999974E-6 : f32
    %532 = vector.broadcast %cst_36 : f32 to vector<64x1xf32>
    %533 = arith.addf %529, %532 : vector<64x1xf32>
    %534 = math.rsqrt %533 : vector<64x1xf32>
    %535 = vector.broadcast %534 : vector<64x1xf32> to vector<64x32xf32>
    %536 = arith.mulf %531, %535 : vector<64x32xf32>
    %c0_37 = arith.constant 0 : index
    %c0_38 = arith.constant 0 : index
    %537 = vector.load %arg6[%c0_37, %c0_38] : memref<1x32xf32, #tpu.memory_space<vmem>>, vector<1x32xf32>
    %538 = vector.broadcast %537 : vector<1x32xf32> to vector<64x32xf32>
    %539 = arith.mulf %536, %538 : vector<64x32xf32>
    %c0_39 = arith.constant 0 : index
    %c0_40 = arith.constant 0 : index
    %540 = vector.load %arg7[%c0_39, %c0_40] : memref<1x32xf32, #tpu.memory_space<vmem>>, vector<1x32xf32>
    %541 = vector.broadcast %540 : vector<1x32xf32> to vector<64x32xf32>
    %542 = arith.addf %539, %541 : vector<64x32xf32>
    %c0_41 = arith.constant 0 : index
    %c0_42 = arith.constant 0 : index
    %c0_43 = arith.constant 0 : index
    %543 = vector.load %arg8[%c0_41, %c0_42, %c0_43] : memref<1x64x32xf32, #tpu.memory_space<vmem>>, vector<1x64x32xf32>
    %544 = vector.shape_cast %543 : vector<1x64x32xf32> to vector<64x32xf32>
    %545 = vector.shape_cast %542 : vector<64x32xf32> to vector<1x64x32xf32>
    tpu.vector_store %arg8[%c0_41, %c0_42, %c0_43], %545 {strides = array<i32>} : memref<1x64x32xf32, #tpu.memory_space<vmem>>, vector<1x64x32xf32>,
    return
  }
  func.func @transform_0(%arg0: i32) -> (i32, i32, i32, i32) {
    %c0_i32 = arith.constant 0 : i32
    %c0_i32_0 = arith.constant 0 : i32
    %c0_i32_1 = arith.constant 0 : i32
    %c0_i32_2 = arith.constant 0 : i32
    return %arg0, %c0_i32, %c0_i32_0, %c0_i32_1 : i32, i32, i32, i32
  }
  func.func @transform_1(%arg0: i32) -> (i32, i32, i32) {
    %c0_i32 = arith.constant 0 : i32
    %c0_i32_0 = arith.constant 0 : i32
    %c0_i32_1 = arith.constant 0 : i32
    %c0_i32_2 = arith.constant 0 : i32
    return %c0_i32, %c0_i32_0, %c0_i32_1 : i32, i32, i32
  }
  func.func @transform_2(%arg0: i32) -> (i32, i32) {
    %c0_i32 = arith.constant 0 : i32
    %c0_i32_0 = arith.constant 0 : i32
    %c0_i32_1 = arith.constant 0 : i32
    return %c0_i32, %c0_i32_0 : i32, i32
  }
  func.func @transform_3(%arg0: i32) -> (i32, i32) {
    %c0_i32 = arith.constant 0 : i32
    %c0_i32_0 = arith.constant 0 : i32
    %c0_i32_1 = arith.constant 0 : i32
    return %c0_i32, %c0_i32_0 : i32, i32
  }
  func.func @transform_4(%arg0: i32) -> (i32, i32) {
    %c0_i32 = arith.constant 0 : i32
    %c0_i32_0 = arith.constant 0 : i32
    %c0_i32_1 = arith.constant 0 : i32
    return %c0_i32, %c0_i32_0 : i32, i32
  }
  func.func @transform_5(%arg0: i32) -> (i32, i32) {
    %c0_i32 = arith.constant 0 : i32
    %c0_i32_0 = arith.constant 0 : i32
    %c0_i32_1 = arith.constant 0 : i32
    return %c0_i32, %c0_i32_0 : i32, i32
  }
  func.func @transform_6(%arg0: i32) -> (i32, i32) {
    %c0_i32 = arith.constant 0 : i32
    %c0_i32_0 = arith.constant 0 : i32
    %c0_i32_1 = arith.constant 0 : i32
    return %c0_i32, %c0_i32_0 : i32, i32
  }
  func.func @transform_7(%arg0: i32) -> (i32, i32, i32) {
    %c0_i32 = arith.constant 0 : i32
    %c0_i32_0 = arith.constant 0 : i32
    %c0_i32_1 = arith.constant 0 : i32
    return %arg0, %c0_i32, %c0_i32_0 : i32, i32, i32
  }
}

module attributes {stable_mosaic.version = 11 : i64} {
  func.func @_attn_proj_kernel(%arg0: i32, %arg1: memref<1x64x128xf32, #tpu.memory_space<vmem>>, %arg2: memref<1x64x32xbf16, #tpu.memory_space<vmem>>, %arg3: memref<96x384xbf16, #tpu.memory_space<vmem>>, %arg4: memref<128x128xbf16, #tpu.memory_space<vmem>>, %arg5: memref<32x128xbf16, #tpu.memory_space<vmem>>, %arg6: memref<1x128xf32, #tpu.memory_space<vmem>>, %arg7: memref<1x64x128xf32, #tpu.memory_space<vmem>>) attributes {dimension_semantics = [#tpu.dimension_semantics<parallel>], iteration_bounds = array<i64: 2>, scalar_prefetch = 0 : i64, scratch_operands = 0 : i64, tpu.core_type = #tpu.core_type<tc>, window_params = [{transform_indices = @transform_0, window_bounds = array<i64: 1, 64, 128>}, {transform_indices = @transform_1, window_bounds = array<i64: 1, 64, 32>}, {pipeline_mode = #tpu.pipeline_mode<synchronous>, transform_indices = @transform_2, window_bounds = array<i64: 96, 384>}, {pipeline_mode = #tpu.pipeline_mode<synchronous>, transform_indices = @transform_3, window_bounds = array<i64: 128, 128>}, {pipeline_mode = #tpu.pipeline_mode<synchronous>, transform_indices = @transform_4, window_bounds = array<i64: 32, 128>}, {pipeline_mode = #tpu.pipeline_mode<synchronous>, transform_indices = @transform_5, window_bounds = array<i64: 1, 128>}, {transform_indices = @transform_6, window_bounds = array<i64: 1, 64, 128>}]} {
    %c0 = arith.constant 0 : index
    %c0_0 = arith.constant 0 : index
    %c0_1 = arith.constant 0 : index
    %0 = vector.load %arg1[%c0, %c0_0, %c0_1] : memref<1x64x128xf32, #tpu.memory_space<vmem>>, vector<1x64x128xf32>
    %1 = vector.shape_cast %0 : vector<1x64x128xf32> to vector<64x128xf32>
    %2 = vector.extract_strided_slice %1 {offsets = [0, 32], sizes = [64, 96], strides = [1, 1]} : vector<64x128xf32> to vector<64x96xf32>
    %3 = arith.truncf %2 : vector<64x96xf32> to vector<64x96xbf16>
    %c0_2 = arith.constant 0 : index
    %c0_3 = arith.constant 0 : index
    %4 = vector.load %arg3[%c0_2, %c0_3] : memref<96x384xbf16, #tpu.memory_space<vmem>>, vector<96x384xbf16>
    %cst = arith.constant dense<0.000000e+00> : vector<64x384xf32>
    %5 = tpu.matmul %3, %4, %cst {dimension_numbers = #tpu.dot_dimension_numbers<[1], [0], [0], [1], [0, 0, 1, 1], [], []>} : vector<64x96xbf16>, vector<96x384xbf16>, vector<64x384xf32> -> vector<64x384xf32>
    %6 = arith.truncf %5 : vector<64x384xf32> to vector<64x384xbf16>
    %7 = vector.extract_strided_slice %6 {offsets = [0, 0], sizes = [64, 32], strides = [1, 1]} : vector<64x384xbf16> to vector<64x32xbf16>
    %8 = vector.extract_strided_slice %6 {offsets = [0, 128], sizes = [64, 32], strides = [1, 1]} : vector<64x384xbf16> to vector<64x32xbf16>
    %9 = vector.extract_strided_slice %6 {offsets = [0, 256], sizes = [64, 32], strides = [1, 1]} : vector<64x384xbf16> to vector<64x32xbf16>
    %cst_4 = arith.constant dense<0.000000e+00> : vector<64x64xf32>
    %10 = tpu.matmul %7, %8, %cst_4 {dimension_numbers = #tpu.dot_dimension_numbers<[1], [1], [0], [0], [0, 0, 1, 0], [], []>} : vector<64x32xbf16>, vector<64x32xbf16>, vector<64x64xf32> -> vector<64x64xf32>
    %cst_5 = arith.constant dense<0xFF800000> : vector<64xf32>
    %11 = vector.multi_reduction <maximumf>, %10, %cst_5 [1] : vector<64x64xf32> to vector<64xf32>
    %12 = vector.shape_cast %11 : vector<64xf32> to vector<64x1xf32>
    %13 = vector.broadcast %12 : vector<64x1xf32> to vector<64x64xf32>
    %14 = arith.subf %10, %13 : vector<64x64xf32>
    %15 = math.exp %14 : vector<64x64xf32>
    %cst_6 = arith.constant dense<0.000000e+00> : vector<64xf32>
    %16 = vector.multi_reduction <add>, %15, %cst_6 [1] : vector<64x64xf32> to vector<64xf32>
    %17 = vector.shape_cast %16 : vector<64xf32> to vector<64x1xf32>
    %18 = tpu.reciprocal %17 {approx = true} : vector<64x1xf32> -> vector<64x1xf32>
    %19 = vector.broadcast %18 : vector<64x1xf32> to vector<64x64xf32>
    %20 = arith.mulf %15, %19 : vector<64x64xf32>
    %21 = arith.truncf %20 : vector<64x64xf32> to vector<64x64xbf16>
    %cst_7 = arith.constant dense<0.000000e+00> : vector<64x32xf32>
    %22 = tpu.matmul %21, %9, %cst_7 {dimension_numbers = #tpu.dot_dimension_numbers<[1], [0], [0], [1], [0, 0, 1, 1], [], []>} : vector<64x64xbf16>, vector<64x32xbf16>, vector<64x32xf32> -> vector<64x32xf32>
    %23 = vector.extract_strided_slice %6 {offsets = [0, 32], sizes = [64, 32], strides = [1, 1]} : vector<64x384xbf16> to vector<64x32xbf16>
    %24 = vector.extract_strided_slice %6 {offsets = [0, 160], sizes = [64, 32], strides = [1, 1]} : vector<64x384xbf16> to vector<64x32xbf16>
    %25 = vector.extract_strided_slice %6 {offsets = [0, 288], sizes = [64, 32], strides = [1, 1]} : vector<64x384xbf16> to vector<64x32xbf16>
    %cst_8 = arith.constant dense<0.000000e+00> : vector<64x64xf32>
    %26 = tpu.matmul %23, %24, %cst_8 {dimension_numbers = #tpu.dot_dimension_numbers<[1], [1], [0], [0], [0, 0, 1, 0], [], []>} : vector<64x32xbf16>, vector<64x32xbf16>, vector<64x64xf32> -> vector<64x64xf32>
    %cst_9 = arith.constant dense<0xFF800000> : vector<64xf32>
    %27 = vector.multi_reduction <maximumf>, %26, %cst_9 [1] : vector<64x64xf32> to vector<64xf32>
    %28 = vector.shape_cast %27 : vector<64xf32> to vector<64x1xf32>
    %29 = vector.broadcast %28 : vector<64x1xf32> to vector<64x64xf32>
    %30 = arith.subf %26, %29 : vector<64x64xf32>
    %31 = math.exp %30 : vector<64x64xf32>
    %cst_10 = arith.constant dense<0.000000e+00> : vector<64xf32>
    %32 = vector.multi_reduction <add>, %31, %cst_10 [1] : vector<64x64xf32> to vector<64xf32>
    %33 = vector.shape_cast %32 : vector<64xf32> to vector<64x1xf32>
    %34 = tpu.reciprocal %33 {approx = true} : vector<64x1xf32> -> vector<64x1xf32>
    %35 = vector.broadcast %34 : vector<64x1xf32> to vector<64x64xf32>
    %36 = arith.mulf %31, %35 : vector<64x64xf32>
    %37 = arith.truncf %36 : vector<64x64xf32> to vector<64x64xbf16>
    %cst_11 = arith.constant dense<0.000000e+00> : vector<64x32xf32>
    %38 = tpu.matmul %37, %25, %cst_11 {dimension_numbers = #tpu.dot_dimension_numbers<[1], [0], [0], [1], [0, 0, 1, 1], [], []>} : vector<64x64xbf16>, vector<64x32xbf16>, vector<64x32xf32> -> vector<64x32xf32>
    %39 = vector.extract_strided_slice %6 {offsets = [0, 64], sizes = [64, 32], strides = [1, 1]} : vector<64x384xbf16> to vector<64x32xbf16>
    %40 = vector.extract_strided_slice %6 {offsets = [0, 192], sizes = [64, 32], strides = [1, 1]} : vector<64x384xbf16> to vector<64x32xbf16>
    %41 = vector.extract_strided_slice %6 {offsets = [0, 320], sizes = [64, 32], strides = [1, 1]} : vector<64x384xbf16> to vector<64x32xbf16>
    %cst_12 = arith.constant dense<0.000000e+00> : vector<64x64xf32>
    %42 = tpu.matmul %39, %40, %cst_12 {dimension_numbers = #tpu.dot_dimension_numbers<[1], [1], [0], [0], [0, 0, 1, 0], [], []>} : vector<64x32xbf16>, vector<64x32xbf16>, vector<64x64xf32> -> vector<64x64xf32>
    %cst_13 = arith.constant dense<0xFF800000> : vector<64xf32>
    %43 = vector.multi_reduction <maximumf>, %42, %cst_13 [1] : vector<64x64xf32> to vector<64xf32>
    %44 = vector.shape_cast %43 : vector<64xf32> to vector<64x1xf32>
    %45 = vector.broadcast %44 : vector<64x1xf32> to vector<64x64xf32>
    %46 = arith.subf %42, %45 : vector<64x64xf32>
    %47 = math.exp %46 : vector<64x64xf32>
    %cst_14 = arith.constant dense<0.000000e+00> : vector<64xf32>
    %48 = vector.multi_reduction <add>, %47, %cst_14 [1] : vector<64x64xf32> to vector<64xf32>
    %49 = vector.shape_cast %48 : vector<64xf32> to vector<64x1xf32>
    %50 = tpu.reciprocal %49 {approx = true} : vector<64x1xf32> -> vector<64x1xf32>
    %51 = vector.broadcast %50 : vector<64x1xf32> to vector<64x64xf32>
    %52 = arith.mulf %47, %51 : vector<64x64xf32>
    %53 = arith.truncf %52 : vector<64x64xf32> to vector<64x64xbf16>
    %cst_15 = arith.constant dense<0.000000e+00> : vector<64x32xf32>
    %54 = tpu.matmul %53, %41, %cst_15 {dimension_numbers = #tpu.dot_dimension_numbers<[1], [0], [0], [1], [0, 0, 1, 1], [], []>} : vector<64x64xbf16>, vector<64x32xbf16>, vector<64x32xf32> -> vector<64x32xf32>
    %55 = vector.extract_strided_slice %6 {offsets = [0, 96], sizes = [64, 32], strides = [1, 1]} : vector<64x384xbf16> to vector<64x32xbf16>
    %56 = vector.extract_strided_slice %6 {offsets = [0, 224], sizes = [64, 32], strides = [1, 1]} : vector<64x384xbf16> to vector<64x32xbf16>
    %57 = vector.extract_strided_slice %6 {offsets = [0, 352], sizes = [64, 32], strides = [1, 1]} : vector<64x384xbf16> to vector<64x32xbf16>
    %cst_16 = arith.constant dense<0.000000e+00> : vector<64x64xf32>
    %58 = tpu.matmul %55, %56, %cst_16 {dimension_numbers = #tpu.dot_dimension_numbers<[1], [1], [0], [0], [0, 0, 1, 0], [], []>} : vector<64x32xbf16>, vector<64x32xbf16>, vector<64x64xf32> -> vector<64x64xf32>
    %cst_17 = arith.constant dense<0xFF800000> : vector<64xf32>
    %59 = vector.multi_reduction <maximumf>, %58, %cst_17 [1] : vector<64x64xf32> to vector<64xf32>
    %60 = vector.shape_cast %59 : vector<64xf32> to vector<64x1xf32>
    %61 = vector.broadcast %60 : vector<64x1xf32> to vector<64x64xf32>
    %62 = arith.subf %58, %61 : vector<64x64xf32>
    %63 = math.exp %62 : vector<64x64xf32>
    %cst_18 = arith.constant dense<0.000000e+00> : vector<64xf32>
    %64 = vector.multi_reduction <add>, %63, %cst_18 [1] : vector<64x64xf32> to vector<64xf32>
    %65 = vector.shape_cast %64 : vector<64xf32> to vector<64x1xf32>
    %66 = tpu.reciprocal %65 {approx = true} : vector<64x1xf32> -> vector<64x1xf32>
    %67 = vector.broadcast %66 : vector<64x1xf32> to vector<64x64xf32>
    %68 = arith.mulf %63, %67 : vector<64x64xf32>
    %69 = arith.truncf %68 : vector<64x64xf32> to vector<64x64xbf16>
    %cst_19 = arith.constant dense<0.000000e+00> : vector<64x32xf32>
    %70 = tpu.matmul %69, %57, %cst_19 {dimension_numbers = #tpu.dot_dimension_numbers<[1], [0], [0], [1], [0, 0, 1, 1], [], []>} : vector<64x64xbf16>, vector<64x32xbf16>, vector<64x32xf32> -> vector<64x32xf32>
    %71 = tpu.concatenate %22, %38, %54, %70 in 1 : vector<64x32xf32>, vector<64x32xf32>, vector<64x32xf32>, vector<64x32xf32> -> vector<64x128xf32>
    %72 = arith.truncf %71 : vector<64x128xf32> to vector<64x128xbf16>
    %c0_20 = arith.constant 0 : index
    %c0_21 = arith.constant 0 : index
    %73 = vector.load %arg4[%c0_20, %c0_21] : memref<128x128xbf16, #tpu.memory_space<vmem>>, vector<128x128xbf16>
    %cst_22 = arith.constant dense<0.000000e+00> : vector<64x128xf32>
    %74 = tpu.matmul %72, %73, %cst_22 {dimension_numbers = #tpu.dot_dimension_numbers<[1], [0], [0], [1], [0, 0, 1, 1], [], []>} : vector<64x128xbf16>, vector<128x128xbf16>, vector<64x128xf32> -> vector<64x128xf32>
    %c0_23 = arith.constant 0 : index
    %c0_24 = arith.constant 0 : index
    %c0_25 = arith.constant 0 : index
    %75 = vector.load %arg2[%c0_23, %c0_24, %c0_25] : memref<1x64x32xbf16, #tpu.memory_space<vmem>>, vector<1x64x32xbf16>
    %76 = vector.shape_cast %75 : vector<1x64x32xbf16> to vector<64x32xbf16>
    %c0_26 = arith.constant 0 : index
    %c0_27 = arith.constant 0 : index
    %77 = vector.load %arg5[%c0_26, %c0_27] : memref<32x128xbf16, #tpu.memory_space<vmem>>, vector<32x128xbf16>
    %cst_28 = arith.constant dense<0.000000e+00> : vector<64x128xf32>
    %78 = tpu.matmul %76, %77, %cst_28 {dimension_numbers = #tpu.dot_dimension_numbers<[1], [0], [0], [1], [0, 0, 1, 1], [], []>} : vector<64x32xbf16>, vector<32x128xbf16>, vector<64x128xf32> -> vector<64x128xf32>
    %79 = arith.addf %74, %78 : vector<64x128xf32>
    %c0_29 = arith.constant 0 : index
    %c0_30 = arith.constant 0 : index
    %80 = vector.load %arg6[%c0_29, %c0_30] : memref<1x128xf32, #tpu.memory_space<vmem>>, vector<1x128xf32>
    %81 = vector.broadcast %80 : vector<1x128xf32> to vector<64x128xf32>
    %82 = arith.addf %79, %81 : vector<64x128xf32>
    %c0_31 = arith.constant 0 : index
    %c0_32 = arith.constant 0 : index
    %c0_33 = arith.constant 0 : index
    %83 = vector.load %arg7[%c0_31, %c0_32, %c0_33] : memref<1x64x128xf32, #tpu.memory_space<vmem>>, vector<1x64x128xf32>
    %84 = vector.shape_cast %83 : vector<1x64x128xf32> to vector<64x128xf32>
    %85 = vector.shape_cast %82 : vector<64x128xf32> to vector<1x64x128xf32>
    tpu.vector_store %arg7[%c0_31, %c0_32, %c0_33], %85 {strides = array<i32>} : memref<1x64x128xf32, #tpu.memory_space<vmem>>, vector<1x64x128xf32>,
    return
  }
  func.func @transform_0(%arg0: i32) -> (i32, i32, i32) {
    %c0_i32 = arith.constant 0 : i32
    %c0_i32_0 = arith.constant 0 : i32
    %c0_i32_1 = arith.constant 0 : i32
    return %arg0, %c0_i32, %c0_i32_0 : i32, i32, i32
  }
  func.func @transform_1(%arg0: i32) -> (i32, i32, i32) {
    %c0_i32 = arith.constant 0 : i32
    %c0_i32_0 = arith.constant 0 : i32
    %c0_i32_1 = arith.constant 0 : i32
    return %arg0, %c0_i32, %c0_i32_0 : i32, i32, i32
  }
  func.func @transform_2(%arg0: i32) -> (i32, i32) {
    %c0_i32 = arith.constant 0 : i32
    %c0_i32_0 = arith.constant 0 : i32
    %c0_i32_1 = arith.constant 0 : i32
    return %c0_i32, %c0_i32_0 : i32, i32
  }
  func.func @transform_3(%arg0: i32) -> (i32, i32) {
    %c0_i32 = arith.constant 0 : i32
    %c0_i32_0 = arith.constant 0 : i32
    %c0_i32_1 = arith.constant 0 : i32
    return %c0_i32, %c0_i32_0 : i32, i32
  }
  func.func @transform_4(%arg0: i32) -> (i32, i32) {
    %c0_i32 = arith.constant 0 : i32
    %c0_i32_0 = arith.constant 0 : i32
    %c0_i32_1 = arith.constant 0 : i32
    return %c0_i32, %c0_i32_0 : i32, i32
  }
  func.func @transform_5(%arg0: i32) -> (i32, i32) {
    %c0_i32 = arith.constant 0 : i32
    %c0_i32_0 = arith.constant 0 : i32
    %c0_i32_1 = arith.constant 0 : i32
    return %c0_i32, %c0_i32_0 : i32, i32
  }
  func.func @transform_6(%arg0: i32) -> (i32, i32, i32) {
    %c0_i32 = arith.constant 0 : i32
    %c0_i32_0 = arith.constant 0 : i32
    %c0_i32_1 = arith.constant 0 : i32
    return %arg0, %c0_i32, %c0_i32_0 : i32, i32, i32
  }
}

</mosaic_0001>

<llo_original>
// kernel: attention_forward.3
$region0: #{attention_forward.3}
  #allocation0 [shape = 'u32[]', space=smem, size = 0x4, offset = 0x4, fixed_abs, tag = 'smem constant byte address 0x4 - core index']
  #allocation1 [shape = 'u32[144,128]{1,0:T(1,128)}', space=vmem, size = 0x12000, scoped, tag = 'internal scratch']
  %s0 = inlined_call_operand.vmem [shape: f32[2,64,128], index: 0, kind: input, shape index: {}]
  %s1 = inlined_call_operand.vmem [shape: bf16[2,64,32], index: 1, kind: input, shape index: {}]
  %s2 = inlined_call_operand.vmem [shape: bf16[96,384], index: 2, kind: input, shape index: {}]
  %s3 = inlined_call_operand.vmem [shape: bf16[128,128], index: 3, kind: input, shape index: {}]
  %s4 = inlined_call_operand.vmem [shape: bf16[32,128], index: 4, kind: input, shape index: {}]
  %s5 = inlined_call_operand.vmem [shape: f32[1,128], index: 5, kind: input, shape index: {}]
  %s6 = inlined_call_operand.hbm [shape: f32[2,64,128], index: 6, kind: output, shape index: {}]
  %s7 = sld [smem:[#allocation0]]
  $region57: #{attention_forward.3} parent=0
    _
  %s9 = ssub.s32 1, %s7
  %s10 = scalar_select 0, %s9, %s7
  $region1: #{attention_forward.3} parent=0
    #allocation2 [shape = 'u8[65536]{0}', space=vmem, size = 0x10000, scoped, tag = 'output window, operand 0']
    #allocation3 [shape = 's32[2]{0}', space=sflag, size = 0x8, scoped, tag = 'scoped memory for attention_forward.3']
    %11 = vsyncpa [#allocation3], 0
    %s12 = scalar_lea.sflag [#allocation3], 1
    %13 = vsyncpa %s12, 0
    loop: start=0, step=1, limit=4
    $region2: #{attention_forward.3} parent=1 // loop_pre_header
      _
    $region3: #{attention_forward.3} parent=1 // loop_header
      %s15 = sphi 0, %s19
      %p16 = scmp.ge.s32.totalorder %s15, 4
      %s25 = sphi 0, %s27
      %s28 = sphi 0, %s25
      %s29 = sphi 0, %s28
      %s45 = sphi 0, %s29
      %s51 = sphi 0, %s53
      %s54 = sphi 0, %s51
      %s55 = sphi 0, %s54
      %s71 = sphi 0, %s55
      %s75 = sphi 0, %s75
      %s77 = sphi 0, %s75
      %s78 = sphi 0, %s77
      %s92 = sphi 0, %s78
      %s96 = sphi 0, %s96
      %s98 = sphi 0, %s96
      %s99 = sphi 0, %s98
      %s113 = sphi 0, %s99
      %s117 = sphi 0, %s117
      %s119 = sphi 0, %s117
      %s120 = sphi 0, %s119
      %s134 = sphi 0, %s120
      %s138 = sphi 0, %s138
      %s140 = sphi 0, %s138
      %s141 = sphi 0, %s140
      %s155 = sphi 0, %s141
      %s161 = sphi 0, %s163
      %s164 = sphi 0, %s161
      %s165 = sphi 0, %s164
      %s181 = sphi 0, %s165
    $region4: #{attention_forward.3} parent=1 // loop_header_branch
      %18 = sbr.rel (%p16) target = $region8
    $region5: #{attention_forward.3} parent=1 // loop_body
      %s20 = ssub.s32 %s15, 1
      %s21 = ssub.s32 %s15, 2
      %s22 = sadd.s32 %s15, 1
      %s23 = ssub.s32 %s15, %s22
      %p24 = scmp.eq.s32.totalorder %s23, 0
      %s26 = sadd.s32 %s25, 1
      %s27 = scalar_select %p24, %s25, %s26
      %p30 = pneg %p24
      %p31 = scmp.eq.s32.totalorder %s15, 1
      %p32 = por %p30, %p31
      %p33 = scmp.ne.s32.totalorder %s25, %s28
      %p34 = scmp.eq.s32.totalorder %s15, 0
      %p35 = por %p33, %p34
      %p36 = scmp.ne.s32.totalorder %s25, %s28
      %p37 = scmp.eq.s32.totalorder %s20, 1
      %p38 = por %p36, %p37
      %p39 = scmp.ne.s32.totalorder %s28, %s29
      %p40 = scmp.eq.s32.totalorder %s20, 0
      %p41 = por %p39, %p40
      %p42 = scmp.ne.s32.totalorder %s28, %s29
      %p43 = scmp.eq.s32.totalorder %s21, 1
      %p44 = por %p42, %p43
      %p46 = scmp.ne.s32.totalorder %s29, %s45
      %p47 = scmp.eq.s32.totalorder %s21, 0
      %p48 = por %p46, %p47
      %s49 = ssub.s32 %s15, %s22
      %p50 = scmp.eq.s32.totalorder %s49, 0
      %s52 = sadd.s32 %s51, 1
      %s53 = scalar_select %p50, %s51, %s52
      %p56 = pneg %p50
      %p57 = scmp.eq.s32.totalorder %s15, 1
      %p58 = por %p56, %p57
      %p59 = scmp.ne.s32.totalorder %s51, %s54
      %p60 = scmp.eq.s32.totalorder %s15, 0
      %p61 = por %p59, %p60
      %p62 = scmp.ne.s32.totalorder %s51, %s54
      %p63 = scmp.eq.s32.totalorder %s20, 1
      %p64 = por %p62, %p63
      %p65 = scmp.ne.s32.totalorder %s54, %s55
      %p66 = scmp.eq.s32.totalorder %s20, 0
      %p67 = por %p65, %p66
      %p68 = scmp.ne.s32.totalorder %s54, %s55
      %p69 = scmp.eq.s32.totalorder %s21, 1
      %p70 = por %p68, %p69
      %p72 = scmp.ne.s32.totalorder %s55, %s71
      %p73 = scmp.eq.s32.totalorder %s21, 0
      %p74 = por %p72, %p73
      %s76 = sadd.s32 %s75, 1
      %p79 = scmp.eq.s32.totalorder %s15, 1
      %p80 = scmp.ne.s32.totalorder %s75, %s77
      %p81 = scmp.eq.s32.totalorder %s15, 0
      %p82 = por %p80, %p81
      %p83 = scmp.ne.s32.totalorder %s75, %s77
      %p84 = scmp.eq.s32.totalorder %s20, 1
      %p85 = por %p83, %p84
      %p86 = scmp.ne.s32.totalorder %s77, %s78
      %p87 = scmp.eq.s32.totalorder %s20, 0
      %p88 = por %p86, %p87
      %p89 = scmp.ne.s32.totalorder %s77, %s78
      %p90 = scmp.eq.s32.totalorder %s21, 1
      %p91 = por %p89, %p90
      %p93 = scmp.ne.s32.totalorder %s78, %s92
      %p94 = scmp.eq.s32.totalorder %s21, 0
      %p95 = por %p93, %p94
      %s97 = sadd.s32 %s96, 1
      %p100 = scmp.eq.s32.totalorder %s15, 1
      %p101 = scmp.ne.s32.totalorder %s96, %s98
      %p102 = scmp.eq.s32.totalorder %s15, 0
      %p103 = por %p101, %p102
      %p104 = scmp.ne.s32.totalorder %s96, %s98
      %p105 = scmp.eq.s32.totalorder %s20, 1
      %p106 = por %p104, %p105
      %p107 = scmp.ne.s32.totalorder %s98, %s99
      %p108 = scmp.eq.s32.totalorder %s20, 0
      %p109 = por %p107, %p108
      %p110 = scmp.ne.s32.totalorder %s98, %s99
      %p111 = scmp.eq.s32.totalorder %s21, 1
      %p112 = por %p110, %p111
      %p114 = scmp.ne.s32.totalorder %s99, %s113
      %p115 = scmp.eq.s32.totalorder %s21, 0
      %p116 = por %p114, %p115
      %s118 = sadd.s32 %s117, 1
      %p121 = scmp.eq.s32.totalorder %s15, 1
      %p122 = scmp.ne.s32.totalorder %s117, %s119
      %p123 = scmp.eq.s32.totalorder %s15, 0
      %p124 = por %p122, %p123
      %p125 = scmp.ne.s32.totalorder %s117, %s119
      %p126 = scmp.eq.s32.totalorder %s20, 1
      %p127 = por %p125, %p126
      %p128 = scmp.ne.s32.totalorder %s119, %s120
      %p129 = scmp.eq.s32.totalorder %s20, 0
      %p130 = por %p128, %p129
      %p131 = scmp.ne.s32.totalorder %s119, %s120
      %p132 = scmp.eq.s32.totalorder %s21, 1
      %p133 = por %p131, %p132
      %p135 = scmp.ne.s32.totalorder %s120, %s134
      %p136 = scmp.eq.s32.totalorder %s21, 0
      %p137 = por %p135, %p136
      %s139 = sadd.s32 %s138, 1
      %p142 = scmp.eq.s32.totalorder %s15, 1
      %p143 = scmp.ne.s32.totalorder %s138, %s140
      %p144 = scmp.eq.s32.totalorder %s15, 0
      %p145 = por %p143, %p144
      %p146 = scmp.ne.s32.totalorder %s138, %s140
      %p147 = scmp.eq.s32.totalorder %s20, 1
      %p148 = por %p146, %p147
      %p149 = scmp.ne.s32.totalorder %s140, %s141
      %p150 = scmp.eq.s32.totalorder %s20, 0
      %p151 = por %p149, %p150
      %p152 = scmp.ne.s32.totalorder %s140, %s141
      %p153 = scmp.eq.s32.totalorder %s21, 1
      %p154 = por %p152, %p153
      %p156 = scmp.ne.s32.totalorder %s141, %s155
      %p157 = scmp.eq.s32.totalorder %s21, 0
      %p158 = por %p156, %p157
      %s159 = ssub.s32 %s15, %s22
      %p160 = scmp.eq.s32.totalorder %s159, 0
      %s162 = sadd.s32 %s161, 1
      %s163 = scalar_select %p160, %s161, %s162
      %p166 = pneg %p160
      %p167 = scmp.eq.s32.totalorder %s15, 1
      %p168 = por %p166, %p167
      %p169 = scmp.ne.s32.totalorder %s161, %s164
      %p170 = scmp.eq.s32.totalorder %s15, 0
      %p171 = por %p169, %p170
      %p172 = scmp.ne.s32.totalorder %s161, %s164
      %p173 = scmp.eq.s32.totalorder %s20, 1
      %p174 = por %p172, %p173
      %p175 = scmp.ne.s32.totalorder %s164, %s165
      %p176 = scmp.eq.s32.totalorder %s20, 0
      %p177 = por %p175, %p176
      %p178 = scmp.ne.s32.totalorder %s164, %s165
      %p179 = scmp.eq.s32.totalorder %s21, 1
      %p180 = por %p178, %p179
      %p182 = scmp.ne.s32.totalorder %s165, %s181
      %p183 = scmp.eq.s32.totalorder %s21, 0
      %p184 = por %p182, %p183
      %p185 = scmp.le.s32.totalorder 1, %s15
      %p186 = scmp.lt.s32.totalorder %s15, 3
      %p187 = pnand %p185, %p186
      %p188 = pneg %p187
      // Predicated region
      $region9: #{attention_forward.3} parent=5 // pred_check
        _
      $region10: #{attention_forward.3} parent=5 // pred_check_branch
        %190 = sbr.rel (%p187) target = $region12
      $region11: #{attention_forward.3} parent=5 // pred_region
        %s191 = ssub.s32 %s15, 1
        // Predicated region
        $region13: #{attention_forward.3} parent=11 // pred_check
          %p192 = pneg %p88
        $region14: #{attention_forward.3} parent=11 // pred_check_branch
          %194 = sbr.rel (%p192) target = $region16
        $region15: #{attention_forward.3} parent=11 // pred_region
          _
        $region16: #{attention_forward.3} parent=11 // pred_fallthru
          _
        // Predicated region
        $region17: #{attention_forward.3} parent=11 // pred_check
          %p195 = pneg %p109
        $region18: #{attention_forward.3} parent=11 // pred_check_branch
          %197 = sbr.rel (%p195) target = $region20
        $region19: #{attention_forward.3} parent=11 // pred_region
          _
        $region20: #{attention_forward.3} parent=11 // pred_fallthru
          _
        // Predicated region
        $region21: #{attention_forward.3} parent=11 // pred_check
          %p198 = pneg %p130
        $region22: #{attention_forward.3} parent=11 // pred_check_branch
          %200 = sbr.rel (%p198) target = $region24
        $region23: #{attention_forward.3} parent=11 // pred_region
          _
        $region24: #{attention_forward.3} parent=11 // pred_fallthru
          _
        // Predicated region
        $region25: #{attention_forward.3} parent=11 // pred_check
          %p201 = pneg %p151
        $region26: #{attention_forward.3} parent=11 // pred_check_branch
          %203 = sbr.rel (%p201) target = $region28
        $region27: #{attention_forward.3} parent=11 // pred_region
          _
        $region28: #{attention_forward.3} parent=11 // pred_fallthru
          _
      $region12: #{attention_forward.3} parent=5 // pred_fallthru
        _
      %p204 = scmp.lt.s32.totalorder %s15, 2
      // Predicated region
      $region29: #{attention_forward.3} parent=5 // pred_check
        %p205 = pneg %p204
      $region30: #{attention_forward.3} parent=5 // pred_check_branch
        %207 = sbr.rel (%p205) target = $region32
      $region31: #{attention_forward.3} parent=5 // pred_region
        // Predicated region
        $region33: #{attention_forward.3} parent=31 // pred_check
          %p208 = pneg %p35
        $region34: #{attention_forward.3} parent=31 // pred_check_branch
          %210 = sbr.rel (%p208) target = $region36
        $region35: #{attention_forward.3} parent=31 // pred_region
          %p211 = scmp.lt.s32.totalorder %s15, 1
          %s212 = scalar_select %p211, %s15, 1
          %s213 = smul.addr %s212, 8
          %s214 = smul.addr %s213, 8
          %s215 = scalar_lea.vmem %s0, %s214
        $region36: #{attention_forward.3} parent=31 // pred_fallthru
          _
        // Predicated region
        $region37: #{attention_forward.3} parent=31 // pred_check
          %p216 = pneg %p61
        $region38: #{attention_forward.3} parent=31 // pred_check_branch
          %218 = sbr.rel (%p216) target = $region40
        $region39: #{attention_forward.3} parent=31 // pred_region
          %p219 = scmp.lt.s32.totalorder %s15, 1
          %s220 = scalar_select %p219, %s15, 1
          %s221 = smul.addr %s220, 8
          %s222 = smul.addr %s221, 4
          %s223 = scalar_lea.vmem %s1, %s222
        $region40: #{attention_forward.3} parent=31 // pred_fallthru
          _
      $region32: #{attention_forward.3} parent=5 // pred_fallthru
        _
      %p224 = scmp.le.s32.totalorder 1, %s15
      %p225 = scmp.lt.s32.totalorder %s15, 3
      %p226 = pnand %p224, %p225
      %p227 = pneg %p226
      // Predicated region
      $region41: #{attention_forward.3} parent=5 // pred_check
        _
      $region42: #{attention_forward.3} parent=5 // pred_check_branch
        %229 = sbr.rel (%p226) target = $region44
      $region43: #{attention_forward.3} parent=5 // pred_region
        %s230 = ssub.s32 %s15, 1
        %p231 = scmp.lt.s32.totalorder %s20, 1
        %s232 = scalar_select %p231, %s20, 1
        %s233 = smul.addr %s232, 8
        %s234 = smul.addr %s233, 8
        %s235 = scalar_lea.vmem %s0, %s234
        %p236 = pneg %p41
        %p237 = pneg %p38
        %p238 = scmp.lt.s32.totalorder %s20, 1
        %s239 = scalar_select %p238, %s20, 1
        %s240 = smul.addr %s239, 8
        %s241 = smul.addr %s240, 4
        %s242 = scalar_lea.vmem %s1, %s241
        %p243 = pneg %p67
        %p244 = pneg %p64
        %p245 = pneg %p88
        %p246 = pneg %p85
        %p247 = pneg %p109
        %p248 = pneg %p106
        %p249 = pneg %p130
        %p250 = pneg %p127
        %p251 = pneg %p151
        %p252 = pneg %p148
        %p253 = pneg %p177
        %p254 = pneg %p174
        %s255 = sand.u32 %s164, 1
        %s256 = scalar_lea.sflag [#allocation3], %s255
        %s257 = sand.u32 %s164, 1
        %s258 = smul.addr %s257, 64
        %s259 = scalar_lea.vmem [#allocation2], %s258
        %p260 = scmp.lt.s32.totalorder %s20, 1
        %s261 = scalar_select %p260, %s20, 1
        %s262 = smul.addr %s261, 8
        %s263 = smul.addr %s262, 8
        %s264 = scalar_lea.vmem %s0, %s263
        %p265 = scmp.lt.s32.totalorder %s20, 1
        %s266 = scalar_select %p265, %s20, 1
        %s267 = smul.addr %s266, 8
        %s268 = smul.addr %s267, 4
        %s269 = scalar_lea.vmem %s1, %s268
        %v271 = vld [vmem:[%s264] sm:$0xff]
        %v272 = vld [vmem:[%s264 + $0x8] sm:$0xff]
        %v273 = vld [vmem:[%s264 + $0x10] sm:$0xff]
        %v274 = vld [vmem:[%s264 + $0x18] sm:$0xff]
        %v275 = vld [vmem:[%s264 + $0x20] sm:$0xff]
        %v276 = vld [vmem:[%s264 + $0x28] sm:$0xff]
        %v277 = vld [vmem:[%s264 + $0x30] sm:$0xff]
        %v278 = vld [vmem:[%s264 + $0x38] sm:$0xff]
        %v279 = vpack.c.bf16 %v272, %v271
        %v280 = vpack.c.bf16 %v274, %v273
        %v281 = vpack.c.bf16 %v276, %v275
        %v282 = vpack.c.bf16 %v278, %v277
        %v283 = vld [vmem:[%s2] sm:$0xff]
        %v284 = vld [vmem:[%s2 + $0x8] sm:$0xf]
        %v285 = vld [vmem:[%s2 + $0xc] sm:$0xff]
        %v286 = vld [vmem:[%s2 + $0x14] sm:$0xf]
        %v287 = vld [vmem:[%s2 + $0x18] sm:$0xff]
        %v288 = vld [vmem:[%s2 + $0x20] sm:$0xf]
        %v289 = vld [vmem:[%s2 + $0x24] sm:$0xff]
        %v290 = vld [vmem:[%s2 + $0x2c] sm:$0xf]
        %v291 = vld [vmem:[%s2 + $0x30] sm:$0xff]
        %v292 = vld [vmem:[%s2 + $0x38] sm:$0xf]
        %v293 = vld [vmem:[%s2 + $0x3c] sm:$0xff]
        %v294 = vld [vmem:[%s2 + $0x44] sm:$0xf]
        %v295 = vld [vmem:[%s2 + $0x48] sm:$0xff]
        %v296 = vld [vmem:[%s2 + $0x50] sm:$0xf]
        %v297 = vld [vmem:[%s2 + $0x54] sm:$0xff]
        %v298 = vld [vmem:[%s2 + $0x5c] sm:$0xf]
        %v299 = vld [vmem:[%s2 + $0x60] sm:$0xff]
        %v300 = vld [vmem:[%s2 + $0x68] sm:$0xf]
        %v301 = vld [vmem:[%s2 + $0x6c] sm:$0xff]
        %v302 = vld [vmem:[%s2 + $0x74] sm:$0xf]
        %v303 = vld [vmem:[%s2 + $0x78] sm:$0xff]
        %v304 = vld [vmem:[%s2 + $0x80] sm:$0xf]
        %v305 = vld [vmem:[%s2 + $0x84] sm:$0xff]
        %v306 = vld [vmem:[%s2 + $0x8c] sm:$0xf]
        %311 = vrot.lane.b32.xlu0 %v279, 96
        %v312 = vpop.permute.xlu0 %311
        %313 = vrot.lane.b32.xlu0 %v280, 96
        %v314 = vpop.permute.xlu0 %313
        %315 = vrot.lane.b32.xlu0 %v281, 96
        %v316 = vpop.permute.xlu0 %315
        %317 = vrot.lane.b32.xlu0 %v282, 96
        %v318 = vpop.permute.xlu0 %317
        %v343 = vunpack.c.l.b16 %v283
        %v344 = vunpack.c.h.b16 %v283
        %v345 = vunpack.c.l.b16 %v284
        %v346 = vunpack.c.l.b16 %v285
        %v347 = vunpack.c.h.b16 %v285
        %v348 = vunpack.c.l.b16 %v286
        %v349 = vunpack.c.l.b16 %v287
        %v350 = vunpack.c.h.b16 %v287
        %v351 = vunpack.c.l.b16 %v288
        %v352 = vunpack.c.l.b16 %v289
        %v353 = vunpack.c.h.b16 %v289
        %v354 = vunpack.c.l.b16 %v290
        %v355 = vunpack.c.l.b16 %v291
        %v356 = vunpack.c.h.b16 %v291
        %v357 = vunpack.c.l.b16 %v292
        %v358 = vunpack.c.l.b16 %v293
        %v359 = vunpack.c.h.b16 %v293
        %v360 = vunpack.c.l.b16 %v294
        %v361 = vunpack.c.l.b16 %v295
        %v362 = vunpack.c.h.b16 %v295
        %v363 = vunpack.c.l.b16 %v296
        %v364 = vunpack.c.l.b16 %v297
        %v365 = vunpack.c.h.b16 %v297
        %v366 = vunpack.c.l.b16 %v298
        %v367 = vunpack.c.l.b16 %v299
        %v368 = vunpack.c.h.b16 %v299
        %v369 = vunpack.c.l.b16 %v300
        %v370 = vunpack.c.l.b16 %v301
        %v371 = vunpack.c.h.b16 %v301
        %v372 = vunpack.c.l.b16 %v302
        %v373 = vunpack.c.l.b16 %v303
        %v374 = vunpack.c.h.b16 %v303
        %v375 = vunpack.c.l.b16 %v304
        %v376 = vunpack.c.l.b16 %v305
        %v377 = vunpack.c.h.b16 %v305
        %v378 = vunpack.c.l.b16 %v306
        %v379 = vpack.c.b16 %v346, %v343
        %v380 = vpack.c.b16 %v347, %v344
        %v381 = vpack.c.b16 %v348, %v345
        %v382 = vpack.c.b16 %v352, %v349
        %v383 = vpack.c.b16 %v353, %v350
        %v384 = vpack.c.b16 %v354, %v351
        %v385 = vpack.c.b16 %v358, %v355
        %v386 = vpack.c.b16 %v359, %v356
        %v387 = vpack.c.b16 %v360, %v357
        %v388 = vpack.c.b16 %v364, %v361
        %v389 = vpack.c.b16 %v365, %v362
        %v390 = vpack.c.b16 %v366, %v363
        %v391 = vpack.c.b16 %v370, %v367
        %v392 = vpack.c.b16 %v371, %v368
        %v393 = vpack.c.b16 %v372, %v369
        %v394 = vpack.c.b16 %v376, %v373
        %v395 = vpack.c.b16 %v377, %v374
        %v396 = vpack.c.b16 %v378, %v375
        %vm415 = vcmask 785408
        %v417 = vsel %vm415, %v312, 0
        %v420 = vsel %vm415, %v314, 0
        %v423 = vsel %vm415, %v316, 0
        %v426 = vsel %vm415, %v318, 0
        %428 = vmatprep.subr.bf16.mxu0 %v380
        %429 = vmatpush1.bf16.msra.mxu0 %v379
        %430 = vmatprep.subr.bf16.mxu0 %v383
        %431 = vmatpush1.bf16.msra.mxu0 %v382
        %432 = vmatprep.subr.bf16.mxu0 %v386
        %433 = vmatpush1.bf16.msra.mxu0 %v385
        %434 = vmatprep.subr.bf16.mxu0 %v389
        %435 = vmatpush1.bf16.msra.mxu0 %v388
        %436 = vmatprep.subr.bf16.mxu0 %v392
        %437 = vmatpush1.bf16.msra.mxu0 %v391
        %438 = vmatprep.subr.bf16.mxu0 %v395
        %439 = vmatpush1.bf16.msra.mxu0 %v394
        %440 = vmatprep.subr.bf16.mxu0 0
        %441 = vmatpush1.bf16.msra.mxu0 0
        %442 = vmatprep.subr.bf16.mxu0 0
        %443 = vmatpush1.bf16.msra.mxu0 0
        %444 = vmatprep.subr.bf16.mxu0 0
        %445 = vmatpush1.bf16.msra.mxu0 0
        %446 = vmatprep.subr.bf16.mxu0 0
        %447 = vmatpush1.bf16.msra.mxu0 0
        %448 = vmatprep.subr.bf16.mxu0 0
        %449 = vmatpush1.bf16.msra.mxu0 0
        %450 = vmatprep.subr.bf16.mxu0 0
        %451 = vmatpush1.bf16.msra.mxu0 0
        %452 = vmatprep.subr.bf16.mxu0 0
        %453 = vmatpush1.bf16.msra.mxu0 0
        %454 = vmatprep.subr.bf16.mxu0 0
        %455 = vmatpush1.bf16.msra.mxu0 0
        %456 = vmatprep.subr.bf16.mxu0 0
        %457 = vmatpush1.bf16.msra.mxu0 0
        %458 = vmatprep.subr.bf16.mxu0 0
        %459 = vmatpush1.bf16.msra.mxu0 0
        %460 = vmatprep.mubr.bf16.mxu0 0
        %461 = vmatmul.mubr.bf16.gmra.mrb[0].mxu0 %v417
        %v462 = vpop.f32.mrb[0].mxu0
        %v463 = vadd.f32 0.0, %v462
        %v464 = vpop.f32.mrb[0].mxu0
        %v465 = vadd.f32 0.0, %v464
        %v466 = vpop.f32.mrb[0].mxu0
        %v467 = vadd.f32 0.0, %v466
        %v468 = vpop.f32.mrb[0].mxu0
        %v469 = vadd.f32 0.0, %v468
        %470 = vmatprep.mubr.bf16.mxu0 0
        %471 = vmatmul.mubr.bf16.gmra.mrb[0].mxu0 %v420
        %v472 = vpop.f32.mrb[0].mxu0
        %v473 = vadd.f32 0.0, %v472
        %v474 = vpop.f32.mrb[0].mxu0
        %v475 = vadd.f32 0.0, %v474
        %v476 = vpop.f32.mrb[0].mxu0
        %v477 = vadd.f32 0.0, %v476
        %v478 = vpop.f32.mrb[0].mxu0
        %v479 = vadd.f32 0.0, %v478
        %480 = vmatprep.mubr.bf16.mxu0 0
        %481 = vmatmul.mubr.bf16.gmra.mrb[0].mxu0 %v423
        %v482 = vpop.f32.mrb[0].mxu0
        %v483 = vadd.f32 0.0, %v482
        %v484 = vpop.f32.mrb[0].mxu0
        %v485 = vadd.f32 0.0, %v484
        %v486 = vpop.f32.mrb[0].mxu0
        %v487 = vadd.f32 0.0, %v486
        %v488 = vpop.f32.mrb[0].mxu0
        %v489 = vadd.f32 0.0, %v488
        %490 = vmatprep.mubr.bf16.mxu0 0
        %491 = vmatmul.mubr.bf16.gmra.mrb[0].mxu0 %v426
        %v492 = vpop.f32.mrb[0].mxu0
        %v493 = vadd.f32 0.0, %v492
        %v494 = vpop.f32.mrb[0].mxu0
        %v495 = vadd.f32 0.0, %v494
        %v496 = vpop.f32.mrb[0].mxu0
        %v497 = vadd.f32 0.0, %v496
        %v498 = vpop.f32.mrb[0].mxu0
        %v499 = vadd.f32 0.0, %v498
        %500 = vdwg.mxu0
        %501 = vmatprep.subr.bf16.mxu0 0
        %502 = vmatpush1.bf16.msra.mxu0 %v381
        %503 = vmatprep.subr.bf16.mxu0 0
        %504 = vmatpush1.bf16.msra.mxu0 %v384
        %505 = vmatprep.subr.bf16.mxu0 0
        %506 = vmatpush1.bf16.msra.mxu0 %v387
        %507 = vmatprep.subr.bf16.mxu0 0
        %508 = vmatpush1.bf16.msra.mxu0 %v390
        %509 = vmatprep.subr.bf16.mxu0 0
        %510 = vmatpush1.bf16.msra.mxu0 %v393
        %511 = vmatprep.subr.bf16.mxu0 0
        %512 = vmatpush1.bf16.msra.mxu0 %v396
        %513 = vmatprep.subr.bf16.mxu0 0
        %514 = vmatpush1.bf16.msra.mxu0 0
        %515 = vmatprep.subr.bf16.mxu0 0
        %516 = vmatpush1.bf16.msra.mxu0 0
        %517 = vmatprep.subr.bf16.mxu0 0
        %518 = vmatpush1.bf16.msra.mxu0 0
        %519 = vmatprep.subr.bf16.mxu0 0
        %520 = vmatpush1.bf16.msra.mxu0 0
        %521 = vmatprep.subr.bf16.mxu0 0
        %522 = vmatpush1.bf16.msra.mxu0 0
        %523 = vmatprep.subr.bf16.mxu0 0
        %524 = vmatpush1.bf16.msra.mxu0 0
        %525 = vmatprep.subr.bf16.mxu0 0
        %526 = vmatpush1.bf16.msra.mxu0 0
        %527 = vmatprep.subr.bf16.mxu0 0
        %528 = vmatpush1.bf16.msra.mxu0 0
        %529 = vmatprep.subr.bf16.mxu0 0
        %530 = vmatpush1.bf16.msra.mxu0 0
        %531 = vmatprep.subr.bf16.mxu0 0
        %532 = vmatpush1.bf16.msra.mxu0 0
        %533 = vmatprep.mubr.bf16.mxu0 0
        %534 = vmatmul.mubr.bf16.gmra.mrb[0].mxu0 %v417
        %v535 = vpop.f32.mrb[0].mxu0
        %v536 = vadd.f32 0.0, %v535
        %v537 = vpop.f32.mrb[0].mxu0
        %v538 = vpop.f32.mrb[0].mxu0
        %v539 = vadd.f32 0.0, %v538
        %v540 = vpop.f32.mrb[0].mxu0
        %541 = vmatprep.mubr.bf16.mxu0 0
        %542 = vmatmul.mubr.bf16.gmra.mrb[0].mxu0 %v420
        %v543 = vpop.f32.mrb[0].mxu0
        %v544 = vadd.f32 0.0, %v543
        %v545 = vpop.f32.mrb[0].mxu0
        %v546 = vpop.f32.mrb[0].mxu0
        %v547 = vadd.f32 0.0, %v546
        %v548 = vpop.f32.mrb[0].mxu0
        %549 = vmatprep.mubr.bf16.mxu0 0
        %550 = vmatmul.mubr.bf16.gmra.mrb[0].mxu0 %v423
        %v551 = vpop.f32.mrb[0].mxu0
        %v552 = vadd.f32 0.0, %v551
        %v553 = vpop.f32.mrb[0].mxu0
        %v554 = vpop.f32.mrb[0].mxu0
        %v555 = vadd.f32 0.0, %v554
        %v556 = vpop.f32.mrb[0].mxu0
        %557 = vmatprep.mubr.bf16.mxu0 0
        %558 = vmatmul.mubr.bf16.gmra.mrb[0].mxu0 %v426
        %v559 = vpop.f32.mrb[0].mxu0
        %v560 = vadd.f32 0.0, %v559
        %v561 = vpop.f32.mrb[0].mxu0
        %v562 = vpop.f32.mrb[0].mxu0
        %v563 = vadd.f32 0.0, %v562
        %v564 = vpop.f32.mrb[0].mxu0
        %565 = vdwg.mxu0
        %v566 = vpack.c.bf16 %v467, %v463
        %v567 = vpack.c.bf16 %v469, %v465
        %v568 = vpack.c.bf16 %v539, %v536
        %v569 = vpack.c.bf16 %v477, %v473
        %v570 = vpack.c.bf16 %v479, %v475
        %v571 = vpack.c.bf16 %v547, %v544
        %v572 = vpack.c.bf16 %v487, %v483
        %v573 = vpack.c.bf16 %v489, %v485
        %v574 = vpack.c.bf16 %v555, %v552
        %v575 = vpack.c.bf16 %v497, %v493
        %v576 = vpack.c.bf16 %v499, %v495
        %v577 = vpack.c.bf16 %v563, %v560
        %vm578 = vcmask 261120
        %v580 = vsel %vm578, %v566, 0
        %v583 = vsel %vm578, %v569, 0
        %v586 = vsel %vm578, %v572, 0
        %v589 = vsel %vm578, %v575, 0
        %v592 = vsel %vm578, %v567, 0
        %v595 = vsel %vm578, %v570, 0
        %v598 = vsel %vm578, %v573, 0
        %v601 = vsel %vm578, %v576, 0
        %603 = vmatprep.subr.bf16.mxu0 0
        %604 = vmatpush1.bf16.xpose.msra.mxu0 %v592
        %605 = vmatprep.subr.bf16.mxu0 0
        %606 = vmatpush1.bf16.xpose.msra.mxu0 %v595
        %607 = vmatprep.subr.bf16.mxu0 0
        %608 = vmatpush1.bf16.xpose.msra.mxu0 %v598
        %609 = vmatprep.subr.bf16.mxu0 0
        %610 = vmatpush1.bf16.xpose.msra.mxu0 %v601
        %611 = vmatprep.subr.bf16.mxu0 0
        %612 = vmatpush1.bf16.xpose.msra.mxu0 0
        %613 = vmatprep.subr.bf16.mxu0 0
        %614 = vmatpush1.bf16.xpose.msra.mxu0 0
        %615 = vmatprep.subr.bf16.mxu0 0
        %616 = vmatpush1.bf16.xpose.msra.mxu0 0
        %617 = vmatprep.subr.bf16.mxu0 0
        %618 = vmatpush1.bf16.xpose.msra.mxu0 0
        %619 = vmatprep.subr.bf16.mxu0 0
        %620 = vmatpush1.bf16.xpose.msra.mxu0 0
        %621 = vmatprep.subr.bf16.mxu0 0
        %622 = vmatpush1.bf16.xpose.msra.mxu0 0
        %623 = vmatprep.subr.bf16.mxu0 0
        %624 = vmatpush1.bf16.xpose.msra.mxu0 0
        %625 = vmatprep.subr.bf16.mxu0 0
        %626 = vmatpush1.bf16.xpose.msra.mxu0 0
        %627 = vmatprep.subr.bf16.mxu0 0
        %628 = vmatpush1.bf16.xpose.msra.mxu0 0
        %629 = vmatprep.subr.bf16.mxu0 0
        %630 = vmatpush1.bf16.xpose.msra.mxu0 0
        %631 = vmatprep.subr.bf16.mxu0 0
        %632 = vmatpush1.bf16.xpose.msra.mxu0 0
        %633 = vmatprep.subr.bf16.mxu0 0
        %634 = vmatpush1.bf16.xpose.msra.mxu0 0
        %635 = vmatprep.mubr.bf16.mxu0 0
        %636 = vmatmul.mubr.bf16.gmra.mrb[0].mxu0 %v580
        %v637 = vpop.f32.mrb[0].mxu0
        %v638 = vadd.f32 0.0, %v637
        %v639 = vpop.f32.mrb[0].mxu0
        %v640 = vpop.f32.mrb[0].mxu0
        %v641 = vadd.f32 0.0, %v640
        %v642 = vpop.f32.mrb[0].mxu0
        %643 = vmatprep.mubr.bf16.mxu0 0
        %644 = vmatmul.mubr.bf16.gmra.mrb[0].mxu0 %v583
        %v645 = vpop.f32.mrb[0].mxu0
        %v646 = vadd.f32 0.0, %v645
        %v647 = vpop.f32.mrb[0].mxu0
        %v648 = vpop.f32.mrb[0].mxu0
        %v649 = vadd.f32 0.0, %v648
        %v650 = vpop.f32.mrb[0].mxu0
        %651 = vmatprep.mubr.bf16.mxu0 0
        %652 = vmatmul.mubr.bf16.gmra.mrb[0].mxu0 %v586
        %v653 = vpop.f32.mrb[0].mxu0
        %v654 = vadd.f32 0.0, %v653
        %v655 = vpop.f32.mrb[0].mxu0
        %v656 = vpop.f32.mrb[0].mxu0
        %v657 = vadd.f32 0.0, %v656
        %v658 = vpop.f32.mrb[0].mxu0
        %659 = vmatprep.mubr.bf16.mxu0 0
        %660 = vmatmul.mubr.bf16.gmra.mrb[0].mxu0 %v589
        %v661 = vpop.f32.mrb[0].mxu0
        %v662 = vadd.f32 0.0, %v661
        %v663 = vpop.f32.mrb[0].mxu0
        %v664 = vpop.f32.mrb[0].mxu0
        %v665 = vadd.f32 0.0, %v664
        %v666 = vpop.f32.mrb[0].mxu0
        %667 = vdwg.mxu0
        %vm668 = vcmask 523264
        %v669 = vsel %vm668, %v638, -inf
        %670 = vmax.xlane.f32.xlu0 %v669
        %v671 = vpop.xlane.xlu0 %670
        %v672 = vsel %vm668, %v641, -inf
        %673 = vmax.xlane.f32.xlu0 %v672
        %v674 = vpop.xlane.xlu0 %673
        %v675 = vsel %vm668, %v646, -inf
        %676 = vmax.xlane.f32.xlu0 %v675
        %v677 = vpop.xlane.xlu0 %676
        %v678 = vsel %vm668, %v649, -inf
        %679 = vmax.xlane.f32.xlu0 %v678
        %v680 = vpop.xlane.xlu0 %679
        %v681 = vsel %vm668, %v654, -inf
        %682 = vmax.xlane.f32.xlu0 %v681
        %v683 = vpop.xlane.xlu0 %682
        %v684 = vsel %vm668, %v657, -inf
        %685 = vmax.xlane.f32.xlu0 %v684
        %v686 = vpop.xlane.xlu0 %685
        %v687 = vsel %vm668, %v662, -inf
        %688 = vmax.xlane.f32.xlu0 %v687
        %v689 = vpop.xlane.xlu0 %688
        %v690 = vsel %vm668, %v665, -inf
        %691 = vmax.xlane.f32.xlu0 %v690
        %v692 = vpop.xlane.xlu0 %691
        %v693 = vsub.f32 %v638, %v671
        %v694 = vsub.f32 %v641, %v674
        %v695 = vsub.f32 %v646, %v677
        %v696 = vsub.f32 %v649, %v680
        %v697 = vsub.f32 %v654, %v683
        %v698 = vsub.f32 %v657, %v686
        %v699 = vsub.f32 %v662, %v689
        %v700 = vsub.f32 %v665, %v692
        %v701 = vmul.f32 %v693, 1.442695
        %v702 = vpow.pop %v701
        %v703 = vmul.f32 %v694, 1.442695
        %v704 = vpow.pop %v703
        %v705 = vmul.f32 %v695, 1.442695
        %v706 = vpow.pop %v705
        %v707 = vmul.f32 %v696, 1.442695
        %v708 = vpow.pop %v707
        %v709 = vmul.f32 %v697, 1.442695
        %v710 = vpow.pop %v709
        %v711 = vmul.f32 %v698, 1.442695
        %v712 = vpow.pop %v711
        %v713 = vmul.f32 %v699, 1.442695
        %v714 = vpow.pop %v713
        %v715 = vmul.f32 %v700, 1.442695
        %v716 = vpow.pop %v715
        %v717 = vsel %vm668, %v702, 0.0
        %718 = vadd.xlane.f32.xlu0 %v717
        %v719 = vpop.xlane.xlu0 %718
        %v720 = vsel %vm668, %v704, 0.0
        %721 = vadd.xlane.f32.xlu0 %v720
        %v722 = vpop.xlane.xlu0 %721
        %v723 = vsel %vm668, %v706, 0.0
        %724 = vadd.xlane.f32.xlu0 %v723
        %v725 = vpop.xlane.xlu0 %724
        %v726 = vsel %vm668, %v708, 0.0
        %727 = vadd.xlane.f32.xlu0 %v726
        %v728 = vpop.xlane.xlu0 %727
        %v729 = vsel %vm668, %v710, 0.0
        %730 = vadd.xlane.f32.xlu0 %v729
        %v731 = vpop.xlane.xlu0 %730
        %v732 = vsel %vm668, %v712, 0.0
        %733 = vadd.xlane.f32.xlu0 %v732
        %v734 = vpop.xlane.xlu0 %733
        %v735 = vsel %vm668, %v714, 0.0
        %736 = vadd.xlane.f32.xlu0 %v735
        %v737 = vpop.xlane.xlu0 %736
        %v738 = vsel %vm668, %v716, 0.0
        %739 = vadd.xlane.f32.xlu0 %v738
        %v740 = vpop.xlane.xlu0 %739
        %v741 = vrcp.pop %v719
        %v742 = vrcp.pop %v722
        %v743 = vrcp.pop %v725
        %v744 = vrcp.pop %v728
        %v745 = vrcp.pop %v731
        %v746 = vrcp.pop %v734
        %v747 = vrcp.pop %v737
        %v748 = vrcp.pop %v740
        %v749 = vmul.f32 %v702, %v741
        %v750 = vmul.f32 %v704, %v742
        %v751 = vmul.f32 %v706, %v743
        %v752 = vmul.f32 %v708, %v744
        %v753 = vmul.f32 %v710, %v745
        %v754 = vmul.f32 %v712, %v746
        %v755 = vmul.f32 %v714, %v747
        %v756 = vmul.f32 %v716, %v748
        %v757 = vpack.c.bf16 %v750, %v749
        %v758 = vpack.c.bf16 %v752, %v751
        %v759 = vpack.c.bf16 %v754, %v753
        %v760 = vpack.c.bf16 %v756, %v755
        %v762 = vsel %vm668, %v757, 0
        %v765 = vsel %vm668, %v758, 0
        %v768 = vsel %vm668, %v759, 0
        %v771 = vsel %vm668, %v760, 0
        %773 = vmatprep.subr.bf16.mxu0 0
        %774 = vmatpush1.bf16.msra.mxu0 %v568
        %775 = vmatprep.subr.bf16.mxu0 0
        %776 = vmatpush1.bf16.msra.mxu0 %v571
        %777 = vmatprep.subr.bf16.mxu0 0
        %778 = vmatpush1.bf16.msra.mxu0 %v574
        %779 = vmatprep.subr.bf16.mxu0 0
        %780 = vmatpush1.bf16.msra.mxu0 %v577
        %781 = vmatprep.subr.bf16.mxu0 0
        %782 = vmatpush1.bf16.msra.mxu0 0
        %783 = vmatprep.subr.bf16.mxu0 0
        %784 = vmatpush1.bf16.msra.mxu0 0
        %785 = vmatprep.subr.bf16.mxu0 0
        %786 = vmatpush1.bf16.msra.mxu0 0
        %787 = vmatprep.subr.bf16.mxu0 0
        %788 = vmatpush1.bf16.msra.mxu0 0
        %789 = vmatprep.subr.bf16.mxu0 0
        %790 = vmatpush1.bf16.msra.mxu0 0
        %791 = vmatprep.subr.bf16.mxu0 0
        %792 = vmatpush1.bf16.msra.mxu0 0
        %793 = vmatprep.subr.bf16.mxu0 0
        %794 = vmatpush1.bf16.msra.mxu0 0
        %795 = vmatprep.subr.bf16.mxu0 0
        %796 = vmatpush1.bf16.msra.mxu0 0
        %797 = vmatprep.subr.bf16.mxu0 0
        %798 = vmatpush1.bf16.msra.mxu0 0
        %799 = vmatprep.subr.bf16.mxu0 0
        %800 = vmatpush1.bf16.msra.mxu0 0
        %801 = vmatprep.subr.bf16.mxu0 0
        %802 = vmatpush1.bf16.msra.mxu0 0
        %803 = vmatprep.subr.bf16.mxu0 0
        %804 = vmatpush1.bf16.msra.mxu0 0
        %805 = vmatprep.mubr.bf16.mxu0 0
        %806 = vmatmul.mubr.bf16.gmra.mrb[0].mxu0 %v762
        %v807 = vpop.f32.mrb[0].mxu0
        %v808 = vadd.f32 0.0, %v807
        %v809 = vpop.f32.mrb[0].mxu0
        %v810 = vpop.f32.mrb[0].mxu0
        %v811 = vadd.f32 0.0, %v810
        %v812 = vpop.f32.mrb[0].mxu0
        %813 = vmatprep.mubr.bf16.mxu0 0
        %814 = vmatmul.mubr.bf16.gmra.mrb[0].mxu0 %v765
        %v815 = vpop.f32.mrb[0].mxu0
        %v816 = vadd.f32 0.0, %v815
        %v817 = vpop.f32.mrb[0].mxu0
        %v818 = vpop.f32.mrb[0].mxu0
        %v819 = vadd.f32 0.0, %v818
        %v820 = vpop.f32.mrb[0].mxu0
        %821 = vmatprep.mubr.bf16.mxu0 0
        %822 = vmatmul.mubr.bf16.gmra.mrb[0].mxu0 %v768
        %v823 = vpop.f32.mrb[0].mxu0
        %v824 = vadd.f32 0.0, %v823
        %v825 = vpop.f32.mrb[0].mxu0
        %v826 = vpop.f32.mrb[0].mxu0
        %v827 = vadd.f32 0.0, %v826
        %v828 = vpop.f32.mrb[0].mxu0
        %829 = vmatprep.mubr.bf16.mxu0 0
        %830 = vmatmul.mubr.bf16.gmra.mrb[0].mxu0 %v771
        %v831 = vpop.f32.mrb[0].mxu0
        %v832 = vadd.f32 0.0, %v831
        %v833 = vpop.f32.mrb[0].mxu0
        %v834 = vpop.f32.mrb[0].mxu0
        %v835 = vadd.f32 0.0, %v834
        %v836 = vpop.f32.mrb[0].mxu0
        %837 = vdwg.mxu0
        %842 = vrot.lane.b32.xlu0 %v566, 96
        %v843 = vpop.permute.xlu0 %842
        %844 = vrot.lane.b32.xlu0 %v569, 96
        %v845 = vpop.permute.xlu0 %844
        %846 = vrot.lane.b32.xlu0 %v572, 96
        %v847 = vpop.permute.xlu0 %846
        %848 = vrot.lane.b32.xlu0 %v575, 96
        %v849 = vpop.permute.xlu0 %848
        %854 = vrot.lane.b32.xlu0 %v567, 96
        %v855 = vpop.permute.xlu0 %854
        %856 = vrot.lane.b32.xlu0 %v570, 96
        %v857 = vpop.permute.xlu0 %856
        %858 = vrot.lane.b32.xlu0 %v573, 96
        %v859 = vpop.permute.xlu0 %858
        %860 = vrot.lane.b32.xlu0 %v576, 96
        %v861 = vpop.permute.xlu0 %860
        %v863 = vsel %vm578, %v843, 0
        %v866 = vsel %vm578, %v845, 0
        %v869 = vsel %vm578, %v847, 0
        %v872 = vsel %vm578, %v849, 0
        %v875 = vsel %vm578, %v855, 0
        %v878 = vsel %vm578, %v857, 0
        %v881 = vsel %vm578, %v859, 0
        %v884 = vsel %vm578, %v861, 0
        %886 = vmatprep.subr.bf16.mxu0 0
        %887 = vmatpush1.bf16.xpose.msra.mxu0 %v875
        %888 = vmatprep.subr.bf16.mxu0 0
        %889 = vmatpush1.bf16.xpose.msra.mxu0 %v878
        %890 = vmatprep.subr.bf16.mxu0 0
        %891 = vmatpush1.bf16.xpose.msra.mxu0 %v881
        %892 = vmatprep.subr.bf16.mxu0 0
        %893 = vmatpush1.bf16.xpose.msra.mxu0 %v884
        %894 = vmatprep.subr.bf16.mxu0 0
        %895 = vmatpush1.bf16.xpose.msra.mxu0 0
        %896 = vmatprep.subr.bf16.mxu0 0
        %897 = vmatpush1.bf16.xpose.msra.mxu0 0
        %898 = vmatprep.subr.bf16.mxu0 0
        %899 = vmatpush1.bf16.xpose.msra.mxu0 0
        %900 = vmatprep.subr.bf16.mxu0 0
        %901 = vmatpush1.bf16.xpose.msra.mxu0 0
        %902 = vmatprep.subr.bf16.mxu0 0
        %903 = vmatpush1.bf16.xpose.msra.mxu0 0
        %904 = vmatprep.subr.bf16.mxu0 0
        %905 = vmatpush1.bf16.xpose.msra.mxu0 0
        %906 = vmatprep.subr.bf16.mxu0 0
        %907 = vmatpush1.bf16.xpose.msra.mxu0 0
        %908 = vmatprep.subr.bf16.mxu0 0
        %909 = vmatpush1.bf16.xpose.msra.mxu0 0
        %910 = vmatprep.subr.bf16.mxu0 0
        %911 = vmatpush1.bf16.xpose.msra.mxu0 0
        %912 = vmatprep.subr.bf16.mxu0 0
        %913 = vmatpush1.bf16.xpose.msra.mxu0 0
        %914 = vmatprep.subr.bf16.mxu0 0
        %915 = vmatpush1.bf16.xpose.msra.mxu0 0
        %916 = vmatprep.subr.bf16.mxu0 0
        %917 = vmatpush1.bf16.xpose.msra.mxu0 0
        %918 = vmatprep.mubr.bf16.mxu0 0
        %919 = vmatmul.mubr.bf16.gmra.mrb[0].mxu0 %v863
        %v920 = vpop.f32.mrb[0].mxu0
        %v921 = vadd.f32 0.0, %v920
        %v922 = vpop.f32.mrb[0].mxu0
        %v923 = vpop.f32.mrb[0].mxu0
        %v924 = vadd.f32 0.0, %v923
        %v925 = vpop.f32.mrb[0].mxu0
        %926 = vmatprep.mubr.bf16.mxu0 0
        %927 = vmatmul.mubr.bf16.gmra.mrb[0].mxu0 %v866
        %v928 = vpop.f32.mrb[0].mxu0
        %v929 = vadd.f32 0.0, %v928
        %v930 = vpop.f32.mrb[0].mxu0
        %v931 = vpop.f32.mrb[0].mxu0
        %v932 = vadd.f32 0.0, %v931
        %v933 = vpop.f32.mrb[0].mxu0
        %934 = vmatprep.mubr.bf16.mxu0 0
        %935 = vmatmul.mubr.bf16.gmra.mrb[0].mxu0 %v869
        %v936 = vpop.f32.mrb[0].mxu0
        %v937 = vadd.f32 0.0, %v936
        %v938 = vpop.f32.mrb[0].mxu0
        %v939 = vpop.f32.mrb[0].mxu0
        %v940 = vadd.f32 0.0, %v939
        %v941 = vpop.f32.mrb[0].mxu0
        %942 = vmatprep.mubr.bf16.mxu0 0
        %943 = vmatmul.mubr.bf16.gmra.mrb[0].mxu0 %v872
        %v944 = vpop.f32.mrb[0].mxu0
        %v945 = vadd.f32 0.0, %v944
        %v946 = vpop.f32.mrb[0].mxu0
        %v947 = vpop.f32.mrb[0].mxu0
        %v948 = vadd.f32 0.0, %v947
        %v949 = vpop.f32.mrb[0].mxu0
        %950 = vdwg.mxu0
        %v951 = vsel %vm668, %v921, -inf
        %952 = vmax.xlane.f32.xlu0 %v951
        %v953 = vpop.xlane.xlu0 %952
        %v954 = vsel %vm668, %v924, -inf
        %955 = vmax.xlane.f32.xlu0 %v954
        %v956 = vpop.xlane.xlu0 %955
        %v957 = vsel %vm668, %v929, -inf
        %958 = vmax.xlane.f32.xlu0 %v957
        %v959 = vpop.xlane.xlu0 %958
        %v960 = vsel %vm668, %v932, -inf
        %961 = vmax.xlane.f32.xlu0 %v960
        %v962 = vpop.xlane.xlu0 %961
        %v963 = vsel %vm668, %v937, -inf
        %964 = vmax.xlane.f32.xlu0 %v963
        %v965 = vpop.xlane.xlu0 %964
        %v966 = vsel %vm668, %v940, -inf
        %967 = vmax.xlane.f32.xlu0 %v966
        %v968 = vpop.xlane.xlu0 %967
        %v969 = vsel %vm668, %v945, -inf
        %970 = vmax.xlane.f32.xlu0 %v969
        %v971 = vpop.xlane.xlu0 %970
        %v972 = vsel %vm668, %v948, -inf
        %973 = vmax.xlane.f32.xlu0 %v972
        %v974 = vpop.xlane.xlu0 %973
        %v975 = vsub.f32 %v921, %v953
        %v976 = vsub.f32 %v924, %v956
        %v977 = vsub.f32 %v929, %v959
        %v978 = vsub.f32 %v932, %v962
        %v979 = vsub.f32 %v937, %v965
        %v980 = vsub.f32 %v940, %v968
        %v981 = vsub.f32 %v945, %v971
        %v982 = vsub.f32 %v948, %v974
        %v983 = vmul.f32 %v975, 1.442695
        %v984 = vpow.pop %v983
        %v985 = vmul.f32 %v976, 1.442695
        %v986 = vpow.pop %v985
        %v987 = vmul.f32 %v977, 1.442695
        %v988 = vpow.pop %v987
        %v989 = vmul.f32 %v978, 1.442695
        %v990 = vpow.pop %v989
        %v991 = vmul.f32 %v979, 1.442695
        %v992 = vpow.pop %v991
        %v993 = vmul.f32 %v980, 1.442695
        %v994 = vpow.pop %v993
        %v995 = vmul.f32 %v981, 1.442695
        %v996 = vpow.pop %v995
        %v997 = vmul.f32 %v982, 1.442695
        %v998 = vpow.pop %v997
        %v999 = vsel %vm668, %v984, 0.0
        %1000 = vadd.xlane.f32.xlu0 %v999
        %v1001 = vpop.xlane.xlu0 %1000
        %v1002 = vsel %vm668, %v986, 0.0
        %1003 = vadd.xlane.f32.xlu0 %v1002
        %v1004 = vpop.xlane.xlu0 %1003
        %v1005 = vsel %vm668, %v988, 0.0
        %1006 = vadd.xlane.f32.xlu0 %v1005
        %v1007 = vpop.xlane.xlu0 %1006
        %v1008 = vsel %vm668, %v990, 0.0
        %1009 = vadd.xlane.f32.xlu0 %v1008
        %v1010 = vpop.xlane.xlu0 %1009
        %v1011 = vsel %vm668, %v992, 0.0
        %1012 = vadd.xlane.f32.xlu0 %v1011
        %v1013 = vpop.xlane.xlu0 %1012
        %v1014 = vsel %vm668, %v994, 0.0
        %1015 = vadd.xlane.f32.xlu0 %v1014
        %v1016 = vpop.xlane.xlu0 %1015
        %v1017 = vsel %vm668, %v996, 0.0
        %1018 = vadd.xlane.f32.xlu0 %v1017
        %v1019 = vpop.xlane.xlu0 %1018
        %v1020 = vsel %vm668, %v998, 0.0
        %1021 = vadd.xlane.f32.xlu0 %v1020
        %v1022 = vpop.xlane.xlu0 %1021
        %v1023 = vrcp.pop %v1001
        %v1024 = vrcp.pop %v1004
        %v1025 = vrcp.pop %v1007
        %v1026 = vrcp.pop %v1010
        %v1027 = vrcp.pop %v1013
        %v1028 = vrcp.pop %v1016
        %v1029 = vrcp.pop %v1019
        %v1030 = vrcp.pop %v1022
        %v1031 = vmul.f32 %v984, %v1023
        %v1032 = vmul.f32 %v986, %v1024
        %v1033 = vmul.f32 %v988, %v1025
        %v1034 = vmul.f32 %v990, %v1026
        %v1035 = vmul.f32 %v992, %v1027
        %v1036 = vmul.f32 %v994, %v1028
        %v1037 = vmul.f32 %v996, %v1029
        %v1038 = vmul.f32 %v998, %v1030
        %v1039 = vpack.c.bf16 %v1032, %v1031
        %v1040 = vpack.c.bf16 %v1034, %v1033
        %v1041 = vpack.c.bf16 %v1036, %v1035
        %v1042 = vpack.c.bf16 %v1038, %v1037
        %1047 = vrot.lane.b32.xlu0 %v568, 96
        %v1048 = vpop.permute.xlu0 %1047
        %1049 = vrot.lane.b32.xlu0 %v571, 96
        %v1050 = vpop.permute.xlu0 %1049
        %1051 = vrot.lane.b32.xlu0 %v574, 96
        %v1052 = vpop.permute.xlu0 %1051
        %1053 = vrot.lane.b32.xlu0 %v577, 96
        %v1054 = vpop.permute.xlu0 %1053
        %v1060 = vsel %vm668, %v1039, 0
        %v1063 = vsel %vm668, %v1040, 0
        %v1066 = vsel %vm668, %v1041, 0
        %v1069 = vsel %vm668, %v1042, 0
        %1071 = vmatprep.subr.bf16.mxu0 0
        %1072 = vmatpush1.bf16.msra.mxu0 %v1048
        %1073 = vmatprep.subr.bf16.mxu0 0
        %1074 = vmatpush1.bf16.msra.mxu0 %v1050
        %1075 = vmatprep.subr.bf16.mxu0 0
        %1076 = vmatpush1.bf16.msra.mxu0 %v1052
        %1077 = vmatprep.subr.bf16.mxu0 0
        %1078 = vmatpush1.bf16.msra.mxu0 %v1054
        %1079 = vmatprep.subr.bf16.mxu0 0
        %1080 = vmatpush1.bf16.msra.mxu0 0
        %1081 = vmatprep.subr.bf16.mxu0 0
        %1082 = vmatpush1.bf16.msra.mxu0 0
        %1083 = vmatprep.subr.bf16.mxu0 0
        %1084 = vmatpush1.bf16.msra.mxu0 0
        %1085 = vmatprep.subr.bf16.mxu0 0
        %1086 = vmatpush1.bf16.msra.mxu0 0
        %1087 = vmatprep.subr.bf16.mxu0 0
        %1088 = vmatpush1.bf16.msra.mxu0 0
        %1089 = vmatprep.subr.bf16.mxu0 0
        %1090 = vmatpush1.bf16.msra.mxu0 0
        %1091 = vmatprep.subr.bf16.mxu0 0
        %1092 = vmatpush1.bf16.msra.mxu0 0
        %1093 = vmatprep.subr.bf16.mxu0 0
        %1094 = vmatpush1.bf16.msra.mxu0 0
        %1095 = vmatprep.subr.bf16.mxu0 0
        %1096 = vmatpush1.bf16.msra.mxu0 0
        %1097 = vmatprep.subr.bf16.mxu0 0
        %1098 = vmatpush1.bf16.msra.mxu0 0
        %1099 = vmatprep.subr.bf16.mxu0 0
        %1100 = vmatpush1.bf16.msra.mxu0 0
        %1101 = vmatprep.subr.bf16.mxu0 0
        %1102 = vmatpush1.bf16.msra.mxu0 0
        %1103 = vmatprep.mubr.bf16.mxu0 0
        %1104 = vmatmul.mubr.bf16.gmra.mrb[0].mxu0 %v1060
        %v1105 = vpop.f32.mrb[0].mxu0
        %v1106 = vadd.f32 0.0, %v1105
        %v1107 = vpop.f32.mrb[0].mxu0
        %v1108 = vpop.f32.mrb[0].mxu0
        %v1109 = vadd.f32 0.0, %v1108
        %v1110 = vpop.f32.mrb[0].mxu0
        %1111 = vmatprep.mubr.bf16.mxu0 0
        %1112 = vmatmul.mubr.bf16.gmra.mrb[0].mxu0 %v1063
        %v1113 = vpop.f32.mrb[0].mxu0
        %v1114 = vadd.f32 0.0, %v1113
        %v1115 = vpop.f32.mrb[0].mxu0
        %v1116 = vpop.f32.mrb[0].mxu0
        %v1117 = vadd.f32 0.0, %v1116
        %v1118 = vpop.f32.mrb[0].mxu0
        %1119 = vmatprep.mubr.bf16.mxu0 0
        %1120 = vmatmul.mubr.bf16.gmra.mrb[0].mxu0 %v1066
        %v1121 = vpop.f32.mrb[0].mxu0
        %v1122 = vadd.f32 0.0, %v1121
        %v1123 = vpop.f32.mrb[0].mxu0
        %v1124 = vpop.f32.mrb[0].mxu0
        %v1125 = vadd.f32 0.0, %v1124
        %v1126 = vpop.f32.mrb[0].mxu0
        %1127 = vmatprep.mubr.bf16.mxu0 0
        %1128 = vmatmul.mubr.bf16.gmra.mrb[0].mxu0 %v1069
        %v1129 = vpop.f32.mrb[0].mxu0
        %v1130 = vadd.f32 0.0, %v1129
        %v1131 = vpop.f32.mrb[0].mxu0
        %v1132 = vpop.f32.mrb[0].mxu0
        %v1133 = vadd.f32 0.0, %v1132
        %v1134 = vpop.f32.mrb[0].mxu0
        %1135 = vdwg.mxu0
        %1136 = vrot.lane.b32.xlu0 %v566, 64
        %v1137 = vpop.permute.xlu0 %1136
        %1138 = vrot.lane.b32.xlu0 %v569, 64
        %v1139 = vpop.permute.xlu0 %1138
        %1140 = vrot.lane.b32.xlu0 %v572, 64
        %v1141 = vpop.permute.xlu0 %1140
        %1142 = vrot.lane.b32.xlu0 %v575, 64
        %v1143 = vpop.permute.xlu0 %1142
        %1144 = vrot.lane.b32.xlu0 %v567, 64
        %v1145 = vpop.permute.xlu0 %1144
        %1146 = vrot.lane.b32.xlu0 %v570, 64
        %v1147 = vpop.permute.xlu0 %1146
        %1148 = vrot.lane.b32.xlu0 %v573, 64
        %v1149 = vpop.permute.xlu0 %1148
        %1150 = vrot.lane.b32.xlu0 %v576, 64
        %v1151 = vpop.permute.xlu0 %1150
        %v1153 = vsel %vm578, %v1137, 0
        %v1156 = vsel %vm578, %v1139, 0
        %v1159 = vsel %vm578, %v1141, 0
        %v1162 = vsel %vm578, %v1143, 0
        %v1165 = vsel %vm578, %v1145, 0
        %v1168 = vsel %vm578, %v1147, 0
        %v1171 = vsel %vm578, %v1149, 0
        %v1174 = vsel %vm578, %v1151, 0
        %1176 = vmatprep.subr.bf16.mxu0 0
        %1177 = vmatpush1.bf16.xpose.msra.mxu0 %v1165
        %1178 = vmatprep.subr.bf16.mxu0 0
        %1179 = vmatpush1.bf16.xpose.msra.mxu0 %v1168
        %1180 = vmatprep.subr.bf16.mxu0 0
        %1181 = vmatpush1.bf16.xpose.msra.mxu0 %v1171
        %1182 = vmatprep.subr.bf16.mxu0 0
        %1183 = vmatpush1.bf16.xpose.msra.mxu0 %v1174
        %1184 = vmatprep.subr.bf16.mxu0 0
        %1185 = vmatpush1.bf16.xpose.msra.mxu0 0
        %1186 = vmatprep.subr.bf16.mxu0 0
        %1187 = vmatpush1.bf16.xpose.msra.mxu0 0
        %1188 = vmatprep.subr.bf16.mxu0 0
        %1189 = vmatpush1.bf16.xpose.msra.mxu0 0
        %1190 = vmatprep.subr.bf16.mxu0 0
        %1191 = vmatpush1.bf16.xpose.msra.mxu0 0
        %1192 = vmatprep.subr.bf16.mxu0 0
        %1193 = vmatpush1.bf16.xpose.msra.mxu0 0
        %1194 = vmatprep.subr.bf16.mxu0 0
        %1195 = vmatpush1.bf16.xpose.msra.mxu0 0
        %1196 = vmatprep.subr.bf16.mxu0 0
        %1197 = vmatpush1.bf16.xpose.msra.mxu0 0
        %1198 = vmatprep.subr.bf16.mxu0 0
        %1199 = vmatpush1.bf16.xpose.msra.mxu0 0
        %1200 = vmatprep.subr.bf16.mxu0 0
        %1201 = vmatpush1.bf16.xpose.msra.mxu0 0
        %1202 = vmatprep.subr.bf16.mxu0 0
        %1203 = vmatpush1.bf16.xpose.msra.mxu0 0
        %1204 = vmatprep.subr.bf16.mxu0 0
        %1205 = vmatpush1.bf16.xpose.msra.mxu0 0
        %1206 = vmatprep.subr.bf16.mxu0 0
        %1207 = vmatpush1.bf16.xpose.msra.mxu0 0
        %1208 = vmatprep.mubr.bf16.mxu0 0
        %1209 = vmatmul.mubr.bf16.gmra.mrb[0].mxu0 %v1153
        %v1210 = vpop.f32.mrb[0].mxu0
        %v1211 = vadd.f32 0.0, %v1210
        %v1212 = vpop.f32.mrb[0].mxu0
        %v1213 = vpop.f32.mrb[0].mxu0
        %v1214 = vadd.f32 0.0, %v1213
        %v1215 = vpop.f32.mrb[0].mxu0
        %1216 = vmatprep.mubr.bf16.mxu0 0
        %1217 = vmatmul.mubr.bf16.gmra.mrb[0].mxu0 %v1156
        %v1218 = vpop.f32.mrb[0].mxu0
        %v1219 = vadd.f32 0.0, %v1218
        %v1220 = vpop.f32.mrb[0].mxu0
        %v1221 = vpop.f32.mrb[0].mxu0
        %v1222 = vadd.f32 0.0, %v1221
        %v1223 = vpop.f32.mrb[0].mxu0
        %1224 = vmatprep.mubr.bf16.mxu0 0
        %1225 = vmatmul.mubr.bf16.gmra.mrb[0].mxu0 %v1159
        %v1226 = vpop.f32.mrb[0].mxu0
        %v1227 = vadd.f32 0.0, %v1226
        %v1228 = vpop.f32.mrb[0].mxu0
        %v1229 = vpop.f32.mrb[0].mxu0
        %v1230 = vadd.f32 0.0, %v1229
        %v1231 = vpop.f32.mrb[0].mxu0
        %1232 = vmatprep.mubr.bf16.mxu0 0
        %1233 = vmatmul.mubr.bf16.gmra.mrb[0].mxu0 %v1162
        %v1234 = vpop.f32.mrb[0].mxu0
        %v1235 = vadd.f32 0.0, %v1234
        %v1236 = vpop.f32.mrb[0].mxu0
        %v1237 = vpop.f32.mrb[0].mxu0
        %v1238 = vadd.f32 0.0, %v1237
        %v1239 = vpop.f32.mrb[0].mxu0
        %1240 = vdwg.mxu0
        %v1241 = vsel %vm668, %v1211, -inf
        %1242 = vmax.xlane.f32.xlu0 %v1241
        %v1243 = vpop.xlane.xlu0 %1242
        %v1244 = vsel %vm668, %v1214, -inf
        %1245 = vmax.xlane.f32.xlu0 %v1244
        %v1246 = vpop.xlane.xlu0 %1245
        %v1247 = vsel %vm668, %v1219, -inf
        %1248 = vmax.xlane.f32.xlu0 %v1247
        %v1249 = vpop.xlane.xlu0 %1248
        %v1250 = vsel %vm668, %v1222, -inf
        %1251 = vmax.xlane.f32.xlu0 %v1250
        %v1252 = vpop.xlane.xlu0 %1251
        %v1253 = vsel %vm668, %v1227, -inf
        %1254 = vmax.xlane.f32.xlu0 %v1253
        %v1255 = vpop.xlane.xlu0 %1254
        %v1256 = vsel %vm668, %v1230, -inf
        %1257 = vmax.xlane.f32.xlu0 %v1256
        %v1258 = vpop.xlane.xlu0 %1257
        %v1259 = vsel %vm668, %v1235, -inf
        %1260 = vmax.xlane.f32.xlu0 %v1259
        %v1261 = vpop.xlane.xlu0 %1260
        %v1262 = vsel %vm668, %v1238, -inf
        %1263 = vmax.xlane.f32.xlu0 %v1262
        %v1264 = vpop.xlane.xlu0 %1263
        %v1265 = vsub.f32 %v1211, %v1243
        %v1266 = vsub.f32 %v1214, %v1246
        %v1267 = vsub.f32 %v1219, %v1249
        %v1268 = vsub.f32 %v1222, %v1252
        %v1269 = vsub.f32 %v1227, %v1255
        %v1270 = vsub.f32 %v1230, %v1258
        %v1271 = vsub.f32 %v1235, %v1261
        %v1272 = vsub.f32 %v1238, %v1264
        %v1273 = vmul.f32 %v1265, 1.442695
        %v1274 = vpow.pop %v1273
        %v1275 = vmul.f32 %v1266, 1.442695
        %v1276 = vpow.pop %v1275
        %v1277 = vmul.f32 %v1267, 1.442695
        %v1278 = vpow.pop %v1277
        %v1279 = vmul.f32 %v1268, 1.442695
        %v1280 = vpow.pop %v1279
        %v1281 = vmul.f32 %v1269, 1.442695
        %v1282 = vpow.pop %v1281
        %v1283 = vmul.f32 %v1270, 1.442695
        %v1284 = vpow.pop %v1283
        %v1285 = vmul.f32 %v1271, 1.442695
        %v1286 = vpow.pop %v1285
        %v1287 = vmul.f32 %v1272, 1.442695
        %v1288 = vpow.pop %v1287
        %v1289 = vsel %vm668, %v1274, 0.0
        %1290 = vadd.xlane.f32.xlu0 %v1289
        %v1291 = vpop.xlane.xlu0 %1290
        %v1292 = vsel %vm668, %v1276, 0.0
        %1293 = vadd.xlane.f32.xlu0 %v1292
        %v1294 = vpop.xlane.xlu0 %1293
        %v1295 = vsel %vm668, %v1278, 0.0
        %1296 = vadd.xlane.f32.xlu0 %v1295
        %v1297 = vpop.xlane.xlu0 %1296
        %v1298 = vsel %vm668, %v1280, 0.0
        %1299 = vadd.xlane.f32.xlu0 %v1298
        %v1300 = vpop.xlane.xlu0 %1299
        %v1301 = vsel %vm668, %v1282, 0.0
        %1302 = vadd.xlane.f32.xlu0 %v1301
        %v1303 = vpop.xlane.xlu0 %1302
        %v1304 = vsel %vm668, %v1284, 0.0
        %1305 = vadd.xlane.f32.xlu0 %v1304
        %v1306 = vpop.xlane.xlu0 %1305
        %v1307 = vsel %vm668, %v1286, 0.0
        %1308 = vadd.xlane.f32.xlu0 %v1307
        %v1309 = vpop.xlane.xlu0 %1308
        %v1310 = vsel %vm668, %v1288, 0.0
        %1311 = vadd.xlane.f32.xlu0 %v1310
        %v1312 = vpop.xlane.xlu0 %1311
        %v1313 = vrcp.pop %v1291
        %v1314 = vrcp.pop %v1294
        %v1315 = vrcp.pop %v1297
        %v1316 = vrcp.pop %v1300
        %v1317 = vrcp.pop %v1303
        %v1318 = vrcp.pop %v1306
        %v1319 = vrcp.pop %v1309
        %v1320 = vrcp.pop %v1312
        %v1321 = vmul.f32 %v1274, %v1313
        %v1322 = vmul.f32 %v1276, %v1314
        %v1323 = vmul.f32 %v1278, %v1315
        %v1324 = vmul.f32 %v1280, %v1316
        %v1325 = vmul.f32 %v1282, %v1317
        %v1326 = vmul.f32 %v1284, %v1318
        %v1327 = vmul.f32 %v1286, %v1319
        %v1328 = vmul.f32 %v1288, %v1320
        %v1329 = vpack.c.bf16 %v1322, %v1321
        %v1330 = vpack.c.bf16 %v1324, %v1323
        %v1331 = vpack.c.bf16 %v1326, %v1325
        %v1332 = vpack.c.bf16 %v1328, %v1327
        %1333 = vrot.lane.b32.xlu0 %v568, 64
        %v1334 = vpop.permute.xlu0 %1333
        %1335 = vrot.lane.b32.xlu0 %v571, 64
        %v1336 = vpop.permute.xlu0 %1335
        %1337 = vrot.lane.b32.xlu0 %v574, 64
        %v1338 = vpop.permute.xlu0 %1337
        %1339 = vrot.lane.b32.xlu0 %v577, 64
        %v1340 = vpop.permute.xlu0 %1339
        %v1346 = vsel %vm668, %v1329, 0
        %v1349 = vsel %vm668, %v1330, 0
        %v1352 = vsel %vm668, %v1331, 0
        %v1355 = vsel %vm668, %v1332, 0
        %1357 = vmatprep.subr.bf16.mxu0 0
        %1358 = vmatpush1.bf16.msra.mxu0 %v1334
        %1359 = vmatprep.subr.bf16.mxu0 0
        %1360 = vmatpush1.bf16.msra.mxu0 %v1336
        %1361 = vmatprep.subr.bf16.mxu0 0
        %1362 = vmatpush1.bf16.msra.mxu0 %v1338
        %1363 = vmatprep.subr.bf16.mxu0 0
        %1364 = vmatpush1.bf16.msra.mxu0 %v1340
        %1365 = vmatprep.subr.bf16.mxu0 0
        %1366 = vmatpush1.bf16.msra.mxu0 0
        %1367 = vmatprep.subr.bf16.mxu0 0
        %1368 = vmatpush1.bf16.msra.mxu0 0
        %1369 = vmatprep.subr.bf16.mxu0 0
        %1370 = vmatpush1.bf16.msra.mxu0 0
        %1371 = vmatprep.subr.bf16.mxu0 0
        %1372 = vmatpush1.bf16.msra.mxu0 0
        %1373 = vmatprep.subr.bf16.mxu0 0
        %1374 = vmatpush1.bf16.msra.mxu0 0
        %1375 = vmatprep.subr.bf16.mxu0 0
        %1376 = vmatpush1.bf16.msra.mxu0 0
        %1377 = vmatprep.subr.bf16.mxu0 0
        %1378 = vmatpush1.bf16.msra.mxu0 0
        %1379 = vmatprep.subr.bf16.mxu0 0
        %1380 = vmatpush1.bf16.msra.mxu0 0
        %1381 = vmatprep.subr.bf16.mxu0 0
        %1382 = vmatpush1.bf16.msra.mxu0 0
        %1383 = vmatprep.subr.bf16.mxu0 0
        %1384 = vmatpush1.bf16.msra.mxu0 0
        %1385 = vmatprep.subr.bf16.mxu0 0
        %1386 = vmatpush1.bf16.msra.mxu0 0
        %1387 = vmatprep.subr.bf16.mxu0 0
        %1388 = vmatpush1.bf16.msra.mxu0 0
        %1389 = vmatprep.mubr.bf16.mxu0 0
        %1390 = vmatmul.mubr.bf16.gmra.mrb[0].mxu0 %v1346
        %v1391 = vpop.f32.mrb[0].mxu0
        %v1392 = vadd.f32 0.0, %v1391
        %v1393 = vpop.f32.mrb[0].mxu0
        %v1394 = vpop.f32.mrb[0].mxu0
        %v1395 = vadd.f32 0.0, %v1394
        %v1396 = vpop.f32.mrb[0].mxu0
        %1397 = vmatprep.mubr.bf16.mxu0 0
        %1398 = vmatmul.mubr.bf16.gmra.mrb[0].mxu0 %v1349
        %v1399 = vpop.f32.mrb[0].mxu0
        %v1400 = vadd.f32 0.0, %v1399
        %v1401 = vpop.f32.mrb[0].mxu0
        %v1402 = vpop.f32.mrb[0].mxu0
        %v1403 = vadd.f32 0.0, %v1402
        %v1404 = vpop.f32.mrb[0].mxu0
        %1405 = vmatprep.mubr.bf16.mxu0 0
        %1406 = vmatmul.mubr.bf16.gmra.mrb[0].mxu0 %v1352
        %v1407 = vpop.f32.mrb[0].mxu0
        %v1408 = vadd.f32 0.0, %v1407
        %v1409 = vpop.f32.mrb[0].mxu0
        %v1410 = vpop.f32.mrb[0].mxu0
        %v1411 = vadd.f32 0.0, %v1410
        %v1412 = vpop.f32.mrb[0].mxu0
        %1413 = vmatprep.mubr.bf16.mxu0 0
        %1414 = vmatmul.mubr.bf16.gmra.mrb[0].mxu0 %v1355
        %v1415 = vpop.f32.mrb[0].mxu0
        %v1416 = vadd.f32 0.0, %v1415
        %v1417 = vpop.f32.mrb[0].mxu0
        %v1418 = vpop.f32.mrb[0].mxu0
        %v1419 = vadd.f32 0.0, %v1418
        %v1420 = vpop.f32.mrb[0].mxu0
        %1421 = vdwg.mxu0
        %1422 = vrot.lane.b32.xlu0 %v566, 32
        %v1423 = vpop.permute.xlu0 %1422
        %1424 = vrot.lane.b32.xlu0 %v569, 32
        %v1425 = vpop.permute.xlu0 %1424
        %1426 = vrot.lane.b32.xlu0 %v572, 32
        %v1427 = vpop.permute.xlu0 %1426
        %1428 = vrot.lane.b32.xlu0 %v575, 32
        %v1429 = vpop.permute.xlu0 %1428
        %1430 = vrot.lane.b32.xlu0 %v567, 32
        %v1431 = vpop.permute.xlu0 %1430
        %1432 = vrot.lane.b32.xlu0 %v570, 32
        %v1433 = vpop.permute.xlu0 %1432
        %1434 = vrot.lane.b32.xlu0 %v573, 32
        %v1435 = vpop.permute.xlu0 %1434
        %1436 = vrot.lane.b32.xlu0 %v576, 32
        %v1437 = vpop.permute.xlu0 %1436
        %v1439 = vsel %vm578, %v1423, 0
        %v1442 = vsel %vm578, %v1425, 0
        %v1445 = vsel %vm578, %v1427, 0
        %v1448 = vsel %vm578, %v1429, 0
        %v1451 = vsel %vm578, %v1431, 0
        %v1454 = vsel %vm578, %v1433, 0
        %v1457 = vsel %vm578, %v1435, 0
        %v1460 = vsel %vm578, %v1437, 0
        %1462 = vmatprep.subr.bf16.mxu0 0
        %1463 = vmatpush1.bf16.xpose.msra.mxu0 %v1451
        %1464 = vmatprep.subr.bf16.mxu0 0
        %1465 = vmatpush1.bf16.xpose.msra.mxu0 %v1454
        %1466 = vmatprep.subr.bf16.mxu0 0
        %1467 = vmatpush1.bf16.xpose.msra.mxu0 %v1457
        %1468 = vmatprep.subr.bf16.mxu0 0
        %1469 = vmatpush1.bf16.xpose.msra.mxu0 %v1460
        %1470 = vmatprep.subr.bf16.mxu0 0
        %1471 = vmatpush1.bf16.xpose.msra.mxu0 0
        %1472 = vmatprep.subr.bf16.mxu0 0
        %1473 = vmatpush1.bf16.xpose.msra.mxu0 0
        %1474 = vmatprep.subr.bf16.mxu0 0
        %1475 = vmatpush1.bf16.xpose.msra.mxu0 0
        %1476 = vmatprep.subr.bf16.mxu0 0
        %1477 = vmatpush1.bf16.xpose.msra.mxu0 0
        %1478 = vmatprep.subr.bf16.mxu0 0
        %1479 = vmatpush1.bf16.xpose.msra.mxu0 0
        %1480 = vmatprep.subr.bf16.mxu0 0
        %1481 = vmatpush1.bf16.xpose.msra.mxu0 0
        %1482 = vmatprep.subr.bf16.mxu0 0
        %1483 = vmatpush1.bf16.xpose.msra.mxu0 0
        %1484 = vmatprep.subr.bf16.mxu0 0
        %1485 = vmatpush1.bf16.xpose.msra.mxu0 0
        %1486 = vmatprep.subr.bf16.mxu0 0
        %1487 = vmatpush1.bf16.xpose.msra.mxu0 0
        %1488 = vmatprep.subr.bf16.mxu0 0
        %1489 = vmatpush1.bf16.xpose.msra.mxu0 0
        %1490 = vmatprep.subr.bf16.mxu0 0
        %1491 = vmatpush1.bf16.xpose.msra.mxu0 0
        %1492 = vmatprep.subr.bf16.mxu0 0
        %1493 = vmatpush1.bf16.xpose.msra.mxu0 0
        %1494 = vmatprep.mubr.bf16.mxu0 0
        %1495 = vmatmul.mubr.bf16.gmra.mrb[0].mxu0 %v1439
        %v1496 = vpop.f32.mrb[0].mxu0
        %v1497 = vadd.f32 0.0, %v1496
        %v1498 = vpop.f32.mrb[0].mxu0
        %v1499 = vpop.f32.mrb[0].mxu0
        %v1500 = vadd.f32 0.0, %v1499
        %v1501 = vpop.f32.mrb[0].mxu0
        %1502 = vmatprep.mubr.bf16.mxu0 0
        %1503 = vmatmul.mubr.bf16.gmra.mrb[0].mxu0 %v1442
        %v1504 = vpop.f32.mrb[0].mxu0
        %v1505 = vadd.f32 0.0, %v1504
        %v1506 = vpop.f32.mrb[0].mxu0
        %v1507 = vpop.f32.mrb[0].mxu0
        %v1508 = vadd.f32 0.0, %v1507
        %v1509 = vpop.f32.mrb[0].mxu0
        %1510 = vmatprep.mubr.bf16.mxu0 0
        %1511 = vmatmul.mubr.bf16.gmra.mrb[0].mxu0 %v1445
        %v1512 = vpop.f32.mrb[0].mxu0
        %v1513 = vadd.f32 0.0, %v1512
        %v1514 = vpop.f32.mrb[0].mxu0
        %v1515 = vpop.f32.mrb[0].mxu0
        %v1516 = vadd.f32 0.0, %v1515
        %v1517 = vpop.f32.mrb[0].mxu0
        %1518 = vmatprep.mubr.bf16.mxu0 0
        %1519 = vmatmul.mubr.bf16.gmra.mrb[0].mxu0 %v1448
        %v1520 = vpop.f32.mrb[0].mxu0
        %v1521 = vadd.f32 0.0, %v1520
        %v1522 = vpop.f32.mrb[0].mxu0
        %v1523 = vpop.f32.mrb[0].mxu0
        %v1524 = vadd.f32 0.0, %v1523
        %v1525 = vpop.f32.mrb[0].mxu0
        %1526 = vdwg.mxu0
        %v1527 = vsel %vm668, %v1497, -inf
        %1528 = vmax.xlane.f32.xlu0 %v1527
        %v1529 = vpop.xlane.xlu0 %1528
        %v1530 = vsel %vm668, %v1500, -inf
        %1531 = vmax.xlane.f32.xlu0 %v1530
        %v1532 = vpop.xlane.xlu0 %1531
        %v1533 = vsel %vm668, %v1505, -inf
        %1534 = vmax.xlane.f32.xlu0 %v1533
        %v1535 = vpop.xlane.xlu0 %1534
        %v1536 = vsel %vm668, %v1508, -inf
        %1537 = vmax.xlane.f32.xlu0 %v1536
        %v1538 = vpop.xlane.xlu0 %1537
        %v1539 = vsel %vm668, %v1513, -inf
        %1540 = vmax.xlane.f32.xlu0 %v1539
        %v1541 = vpop.xlane.xlu0 %1540
        %v1542 = vsel %vm668, %v1516, -inf
        %1543 = vmax.xlane.f32.xlu0 %v1542
        %v1544 = vpop.xlane.xlu0 %1543
        %v1545 = vsel %vm668, %v1521, -inf
        %1546 = vmax.xlane.f32.xlu0 %v1545
        %v1547 = vpop.xlane.xlu0 %1546
        %v1548 = vsel %vm668, %v1524, -inf
        %1549 = vmax.xlane.f32.xlu0 %v1548
        %v1550 = vpop.xlane.xlu0 %1549
        %v1551 = vsub.f32 %v1497, %v1529
        %v1552 = vsub.f32 %v1500, %v1532
        %v1553 = vsub.f32 %v1505, %v1535
        %v1554 = vsub.f32 %v1508, %v1538
        %v1555 = vsub.f32 %v1513, %v1541
        %v1556 = vsub.f32 %v1516, %v1544
        %v1557 = vsub.f32 %v1521, %v1547
        %v1558 = vsub.f32 %v1524, %v1550
        %v1559 = vmul.f32 %v1551, 1.442695
        %v1560 = vpow.pop %v1559
        %v1561 = vmul.f32 %v1552, 1.442695
        %v1562 = vpow.pop %v1561
        %v1563 = vmul.f32 %v1553, 1.442695
        %v1564 = vpow.pop %v1563
        %v1565 = vmul.f32 %v1554, 1.442695
        %v1566 = vpow.pop %v1565
        %v1567 = vmul.f32 %v1555, 1.442695
        %v1568 = vpow.pop %v1567
        %v1569 = vmul.f32 %v1556, 1.442695
        %v1570 = vpow.pop %v1569
        %v1571 = vmul.f32 %v1557, 1.442695
        %v1572 = vpow.pop %v1571
        %v1573 = vmul.f32 %v1558, 1.442695
        %v1574 = vpow.pop %v1573
        %v1575 = vsel %vm668, %v1560, 0.0
        %1576 = vadd.xlane.f32.xlu0 %v1575
        %v1577 = vpop.xlane.xlu0 %1576
        %v1578 = vsel %vm668, %v1562, 0.0
        %1579 = vadd.xlane.f32.xlu0 %v1578
        %v1580 = vpop.xlane.xlu0 %1579
        %v1581 = vsel %vm668, %v1564, 0.0
        %1582 = vadd.xlane.f32.xlu0 %v1581
        %v1583 = vpop.xlane.xlu0 %1582
        %v1584 = vsel %vm668, %v1566, 0.0
        %1585 = vadd.xlane.f32.xlu0 %v1584
        %v1586 = vpop.xlane.xlu0 %1585
        %v1587 = vsel %vm668, %v1568, 0.0
        %1588 = vadd.xlane.f32.xlu0 %v1587
        %v1589 = vpop.xlane.xlu0 %1588
        %v1590 = vsel %vm668, %v1570, 0.0
        %1591 = vadd.xlane.f32.xlu0 %v1590
        %v1592 = vpop.xlane.xlu0 %1591
        %v1593 = vsel %vm668, %v1572, 0.0
        %1594 = vadd.xlane.f32.xlu0 %v1593
        %v1595 = vpop.xlane.xlu0 %1594
        %v1596 = vsel %vm668, %v1574, 0.0
        %1597 = vadd.xlane.f32.xlu0 %v1596
        %v1598 = vpop.xlane.xlu0 %1597
        %v1599 = vrcp.pop %v1577
        %v1600 = vrcp.pop %v1580
        %v1601 = vrcp.pop %v1583
        %v1602 = vrcp.pop %v1586
        %v1603 = vrcp.pop %v1589
        %v1604 = vrcp.pop %v1592
        %v1605 = vrcp.pop %v1595
        %v1606 = vrcp.pop %v1598
        %v1607 = vmul.f32 %v1560, %v1599
        %v1608 = vmul.f32 %v1562, %v1600
        %v1609 = vmul.f32 %v1564, %v1601
        %v1610 = vmul.f32 %v1566, %v1602
        %v1611 = vmul.f32 %v1568, %v1603
        %v1612 = vmul.f32 %v1570, %v1604
        %v1613 = vmul.f32 %v1572, %v1605
        %v1614 = vmul.f32 %v1574, %v1606
        %v1615 = vpack.c.bf16 %v1608, %v1607
        %v1616 = vpack.c.bf16 %v1610, %v1609
        %v1617 = vpack.c.bf16 %v1612, %v1611
        %v1618 = vpack.c.bf16 %v1614, %v1613
        %1619 = vrot.lane.b32.xlu0 %v568, 32
        %v1620 = vpop.permute.xlu0 %1619
        %1621 = vrot.lane.b32.xlu0 %v571, 32
        %v1622 = vpop.permute.xlu0 %1621
        %1623 = vrot.lane.b32.xlu0 %v574, 32
        %v1624 = vpop.permute.xlu0 %1623
        %1625 = vrot.lane.b32.xlu0 %v577, 32
        %v1626 = vpop.permute.xlu0 %1625
        %v1632 = vsel %vm668, %v1615, 0
        %v1635 = vsel %vm668, %v1616, 0
        %v1638 = vsel %vm668, %v1617, 0
        %v1641 = vsel %vm668, %v1618, 0
        %1643 = vmatprep.subr.bf16.mxu0 0
        %1644 = vmatpush1.bf16.msra.mxu0 %v1620
        %1645 = vmatprep.subr.bf16.mxu0 0
        %1646 = vmatpush1.bf16.msra.mxu0 %v1622
        %1647 = vmatprep.subr.bf16.mxu0 0
        %1648 = vmatpush1.bf16.msra.mxu0 %v1624
        %1649 = vmatprep.subr.bf16.mxu0 0
        %1650 = vmatpush1.bf16.msra.mxu0 %v1626
        %1651 = vmatprep.subr.bf16.mxu0 0
        %1652 = vmatpush1.bf16.msra.mxu0 0
        %1653 = vmatprep.subr.bf16.mxu0 0
        %1654 = vmatpush1.bf16.msra.mxu0 0
        %1655 = vmatprep.subr.bf16.mxu0 0
        %1656 = vmatpush1.bf16.msra.mxu0 0
        %1657 = vmatprep.subr.bf16.mxu0 0
        %1658 = vmatpush1.bf16.msra.mxu0 0
        %1659 = vmatprep.subr.bf16.mxu0 0
        %1660 = vmatpush1.bf16.msra.mxu0 0
        %1661 = vmatprep.subr.bf16.mxu0 0
        %1662 = vmatpush1.bf16.msra.mxu0 0
        %1663 = vmatprep.subr.bf16.mxu0 0
        %1664 = vmatpush1.bf16.msra.mxu0 0
        %1665 = vmatprep.subr.bf16.mxu0 0
        %1666 = vmatpush1.bf16.msra.mxu0 0
        %1667 = vmatprep.subr.bf16.mxu0 0
        %1668 = vmatpush1.bf16.msra.mxu0 0
        %1669 = vmatprep.subr.bf16.mxu0 0
        %1670 = vmatpush1.bf16.msra.mxu0 0
        %1671 = vmatprep.subr.bf16.mxu0 0
        %1672 = vmatpush1.bf16.msra.mxu0 0
        %1673 = vmatprep.subr.bf16.mxu0 0
        %1674 = vmatpush1.bf16.msra.mxu0 0
        %1675 = vmatprep.mubr.bf16.mxu0 0
        %1676 = vmatmul.mubr.bf16.gmra.mrb[0].mxu0 %v1632
        %v1677 = vpop.f32.mrb[0].mxu0
        %v1678 = vadd.f32 0.0, %v1677
        %v1679 = vpop.f32.mrb[0].mxu0
        %v1680 = vpop.f32.mrb[0].mxu0
        %v1681 = vadd.f32 0.0, %v1680
        %v1682 = vpop.f32.mrb[0].mxu0
        %1683 = vmatprep.mubr.bf16.mxu0 0
        %1684 = vmatmul.mubr.bf16.gmra.mrb[0].mxu0 %v1635
        %v1685 = vpop.f32.mrb[0].mxu0
        %v1686 = vadd.f32 0.0, %v1685
        %v1687 = vpop.f32.mrb[0].mxu0
        %v1688 = vpop.f32.mrb[0].mxu0
        %v1689 = vadd.f32 0.0, %v1688
        %v1690 = vpop.f32.mrb[0].mxu0
        %1691 = vmatprep.mubr.bf16.mxu0 0
        %1692 = vmatmul.mubr.bf16.gmra.mrb[0].mxu0 %v1638
        %v1693 = vpop.f32.mrb[0].mxu0
        %v1694 = vadd.f32 0.0, %v1693
        %v1695 = vpop.f32.mrb[0].mxu0
        %v1696 = vpop.f32.mrb[0].mxu0
        %v1697 = vadd.f32 0.0, %v1696
        %v1698 = vpop.f32.mrb[0].mxu0
        %1699 = vmatprep.mubr.bf16.mxu0 0
        %1700 = vmatmul.mubr.bf16.gmra.mrb[0].mxu0 %v1641
        %v1701 = vpop.f32.mrb[0].mxu0
        %v1702 = vadd.f32 0.0, %v1701
        %v1703 = vpop.f32.mrb[0].mxu0
        %v1704 = vpop.f32.mrb[0].mxu0
        %v1705 = vadd.f32 0.0, %v1704
        %v1706 = vpop.f32.mrb[0].mxu0
        %1707 = vdwg.mxu0
        %1716 = vrot.lane.b32.xlu0 %v1106, 32
        %v1717 = vpop.permute.xlu0 %1716
        %1718 = vrot.lane.b32.xlu0 %v1109, 32
        %v1719 = vpop.permute.xlu0 %1718
        %1720 = vrot.lane.b32.xlu0 %v1114, 32
        %v1721 = vpop.permute.xlu0 %1720
        %1722 = vrot.lane.b32.xlu0 %v1117, 32
        %v1723 = vpop.permute.xlu0 %1722
        %1724 = vrot.lane.b32.xlu0 %v1122, 32
        %v1725 = vpop.permute.xlu0 %1724
        %1726 = vrot.lane.b32.xlu0 %v1125, 32
        %v1727 = vpop.permute.xlu0 %1726
        %1728 = vrot.lane.b32.xlu0 %v1130, 32
        %v1729 = vpop.permute.xlu0 %1728
        %1730 = vrot.lane.b32.xlu0 %v1133, 32
        %v1731 = vpop.permute.xlu0 %1730
        %1748 = vrot.lane.b32.xlu0 %v1392, 64
        %v1749 = vpop.permute.xlu0 %1748
        %1750 = vrot.lane.b32.xlu0 %v1395, 64
        %v1751 = vpop.permute.xlu0 %1750
        %1752 = vrot.lane.b32.xlu0 %v1400, 64
        %v1753 = vpop.permute.xlu0 %1752
        %1754 = vrot.lane.b32.xlu0 %v1403, 64
        %v1755 = vpop.permute.xlu0 %1754
        %1756 = vrot.lane.b32.xlu0 %v1408, 64
        %v1757 = vpop.permute.xlu0 %1756
        %1758 = vrot.lane.b32.xlu0 %v1411, 64
        %v1759 = vpop.permute.xlu0 %1758
        %1760 = vrot.lane.b32.xlu0 %v1416, 64
        %v1761 = vpop.permute.xlu0 %1760
        %1762 = vrot.lane.b32.xlu0 %v1419, 64
        %v1763 = vpop.permute.xlu0 %1762
        %1780 = vrot.lane.b32.xlu0 %v1678, 96
        %v1781 = vpop.permute.xlu0 %1780
        %1782 = vrot.lane.b32.xlu0 %v1681, 96
        %v1783 = vpop.permute.xlu0 %1782
        %1784 = vrot.lane.b32.xlu0 %v1686, 96
        %v1785 = vpop.permute.xlu0 %1784
        %1786 = vrot.lane.b32.xlu0 %v1689, 96
        %v1787 = vpop.permute.xlu0 %1786
        %1788 = vrot.lane.b32.xlu0 %v1694, 96
        %v1789 = vpop.permute.xlu0 %1788
        %1790 = vrot.lane.b32.xlu0 %v1697, 96
        %v1791 = vpop.permute.xlu0 %1790
        %1792 = vrot.lane.b32.xlu0 %v1702, 96
        %v1793 = vpop.permute.xlu0 %1792
        %1794 = vrot.lane.b32.xlu0 %v1705, 96
        %v1795 = vpop.permute.xlu0 %1794
        %v1804 = vsel %vm578, %v808, %v1717
        %v1805 = vsel %vm578, %v811, %v1719
        %v1806 = vsel %vm578, %v816, %v1721
        %v1807 = vsel %vm578, %v819, %v1723
        %v1808 = vsel %vm578, %v824, %v1725
        %v1809 = vsel %vm578, %v827, %v1727
        %v1810 = vsel %vm578, %v832, %v1729
        %v1811 = vsel %vm578, %v835, %v1731
        %v1812 = vsel %vm668, %v1804, %v1749
        %v1813 = vsel %vm668, %v1805, %v1751
        %v1814 = vsel %vm668, %v1806, %v1753
        %v1815 = vsel %vm668, %v1807, %v1755
        %v1816 = vsel %vm668, %v1808, %v1757
        %v1817 = vsel %vm668, %v1809, %v1759
        %v1818 = vsel %vm668, %v1810, %v1761
        %v1819 = vsel %vm668, %v1811, %v1763
        %v1820 = vsel %vm415, %v1812, %v1781
        %v1821 = vsel %vm415, %v1813, %v1783
        %v1822 = vsel %vm415, %v1814, %v1785
        %v1823 = vsel %vm415, %v1815, %v1787
        %v1824 = vsel %vm415, %v1816, %v1789
        %v1825 = vsel %vm415, %v1817, %v1791
        %v1826 = vsel %vm415, %v1818, %v1793
        %v1827 = vsel %vm415, %v1819, %v1795
        %v1828 = vpack.c.bf16 %v1821, %v1820
        %v1829 = vpack.c.bf16 %v1823, %v1822
        %v1830 = vpack.c.bf16 %v1825, %v1824
        %v1831 = vpack.c.bf16 %v1827, %v1826
        %v1832 = vld [vmem:[%s3] sm:$0xf]
        %v1833 = vld [vmem:[%s3 + $0x4] sm:$0xf]
        %v1834 = vld [vmem:[%s3 + $0x8] sm:$0xf]
        %v1835 = vld [vmem:[%s3 + $0xc] sm:$0xf]
        %v1836 = vld [vmem:[%s3 + $0x10] sm:$0xf]
        %v1837 = vld [vmem:[%s3 + $0x14] sm:$0xf]
        %v1838 = vld [vmem:[%s3 + $0x18] sm:$0xf]
        %v1839 = vld [vmem:[%s3 + $0x1c] sm:$0xf]
        %v1840 = vld [vmem:[%s3 + $0x20] sm:$0xf]
        %v1841 = vld [vmem:[%s3 + $0x24] sm:$0xf]
        %v1842 = vld [vmem:[%s3 + $0x28] sm:$0xf]
        %v1843 = vld [vmem:[%s3 + $0x2c] sm:$0xf]
        %v1844 = vld [vmem:[%s3 + $0x30] sm:$0xf]
        %v1845 = vld [vmem:[%s3 + $0x34] sm:$0xf]
        %v1846 = vld [vmem:[%s3 + $0x38] sm:$0xf]
        %v1847 = vld [vmem:[%s3 + $0x3c] sm:$0xf]
        %v1848 = vld [vmem:[%s269] sm:$0xf]
        %v1849 = vld [vmem:[%s269 + $0x4] sm:$0xf]
        %v1850 = vld [vmem:[%s269 + $0x8] sm:$0xf]
        %v1851 = vld [vmem:[%s269 + $0xc] sm:$0xf]
        %v1852 = vld [vmem:[%s269 + $0x10] sm:$0xf]
        %v1853 = vld [vmem:[%s269 + $0x14] sm:$0xf]
        %v1854 = vld [vmem:[%s269 + $0x18] sm:$0xf]
        %v1855 = vld [vmem:[%s269 + $0x1c] sm:$0xf]
        %v1856 = vld [vmem:[%s4] sm:$0xf]
        %v1857 = vld [vmem:[%s4 + $0x4] sm:$0xf]
        %v1858 = vld [vmem:[%s4 + $0x8] sm:$0xf]
        %v1859 = vld [vmem:[%s4 + $0xc] sm:$0xf]
        %v1868 = vunpack.c.l.b16 %v1848
        %v1869 = vunpack.c.l.b16 %v1849
        %v1870 = vunpack.c.l.b16 %v1850
        %v1871 = vunpack.c.l.b16 %v1851
        %v1872 = vunpack.c.l.b16 %v1852
        %v1873 = vunpack.c.l.b16 %v1853
        %v1874 = vunpack.c.l.b16 %v1854
        %v1875 = vunpack.c.l.b16 %v1855
        %v1876 = vpack.c.b16 %v1869, %v1868
        %v1877 = vpack.c.b16 %v1871, %v1870
        %v1878 = vpack.c.b16 %v1873, %v1872
        %v1879 = vpack.c.b16 %v1875, %v1874
        %v1884 = vunpack.c.l.b16 %v1856
        %v1885 = vunpack.c.l.b16 %v1857
        %v1886 = vunpack.c.l.b16 %v1858
        %v1887 = vunpack.c.l.b16 %v1859
        %v1888 = vpack.c.b16 %v1885, %v1884
        %v1889 = vpack.c.b16 %v1887, %v1886
        %v1893 = vsel %vm578, %v1876, 0
        %v1896 = vsel %vm578, %v1877, 0
        %v1899 = vsel %vm578, %v1878, 0
        %v1902 = vsel %vm578, %v1879, 0
        %1904 = vmatprep.subr.bf16.mxu0 0
        %1905 = vmatpush1.bf16.msra.mxu0 %v1888
        %1906 = vmatprep.subr.bf16.mxu0 0
        %1907 = vmatpush1.bf16.msra.mxu0 %v1889
        %1908 = vmatprep.subr.bf16.mxu0 0
        %1909 = vmatpush1.bf16.msra.mxu0 0
        %1910 = vmatprep.subr.bf16.mxu0 0
        %1911 = vmatpush1.bf16.msra.mxu0 0
        %1912 = vmatprep.subr.bf16.mxu0 0
        %1913 = vmatpush1.bf16.msra.mxu0 0
        %1914 = vmatprep.subr.bf16.mxu0 0
        %1915 = vmatpush1.bf16.msra.mxu0 0
        %1916 = vmatprep.subr.bf16.mxu0 0
        %1917 = vmatpush1.bf16.msra.mxu0 0
        %1918 = vmatprep.subr.bf16.mxu0 0
        %1919 = vmatpush1.bf16.msra.mxu0 0
        %1920 = vmatprep.subr.bf16.mxu0 0
        %1921 = vmatpush1.bf16.msra.mxu0 0
        %1922 = vmatprep.subr.bf16.mxu0 0
        %1923 = vmatpush1.bf16.msra.mxu0 0
        %1924 = vmatprep.subr.bf16.mxu0 0
        %1925 = vmatpush1.bf16.msra.mxu0 0
        %1926 = vmatprep.subr.bf16.mxu0 0
        %1927 = vmatpush1.bf16.msra.mxu0 0
        %1928 = vmatprep.subr.bf16.mxu0 0
        %1929 = vmatpush1.bf16.msra.mxu0 0
        %1930 = vmatprep.subr.bf16.mxu0 0
        %1931 = vmatpush1.bf16.msra.mxu0 0
        %1932 = vmatprep.subr.bf16.mxu0 0
        %1933 = vmatpush1.bf16.msra.mxu0 0
        %1934 = vmatprep.subr.bf16.mxu0 0
        %1935 = vmatpush1.bf16.msra.mxu0 0
        %1936 = vmatprep.mubr.bf16.mxu0 0
        %1937 = vmatmul.mubr.bf16.gmra.mrb[0].mxu0 %v1893
        %v1938 = vpop.f32.mrb[0].mxu0
        %v1939 = vadd.f32 0.0, %v1938
        %v1940 = vpop.f32.mrb[0].mxu0
        %v1941 = vpop.f32.mrb[0].mxu0
        %v1942 = vadd.f32 0.0, %v1941
        %v1943 = vpop.f32.mrb[0].mxu0
        %1944 = vmatprep.mubr.bf16.mxu0 0
        %1945 = vmatmul.mubr.bf16.gmra.mrb[0].mxu0 %v1896
        %v1946 = vpop.f32.mrb[0].mxu0
        %v1947 = vadd.f32 0.0, %v1946
        %v1948 = vpop.f32.mrb[0].mxu0
        %v1949 = vpop.f32.mrb[0].mxu0
        %v1950 = vadd.f32 0.0, %v1949
        %v1951 = vpop.f32.mrb[0].mxu0
        %1952 = vmatprep.mubr.bf16.mxu0 0
        %1953 = vmatmul.mubr.bf16.gmra.mrb[0].mxu0 %v1899
        %v1954 = vpop.f32.mrb[0].mxu0
        %v1955 = vadd.f32 0.0, %v1954
        %v1956 = vpop.f32.mrb[0].mxu0
        %v1957 = vpop.f32.mrb[0].mxu0
        %v1958 = vadd.f32 0.0, %v1957
        %v1959 = vpop.f32.mrb[0].mxu0
        %1960 = vmatprep.mubr.bf16.mxu0 0
        %1961 = vmatmul.mubr.bf16.gmra.mrb[0].mxu0 %v1902
        %v1962 = vpop.f32.mrb[0].mxu0
        %v1963 = vadd.f32 0.0, %v1962
        %v1964 = vpop.f32.mrb[0].mxu0
        %v1965 = vpop.f32.mrb[0].mxu0
        %v1966 = vadd.f32 0.0, %v1965
        %v1967 = vpop.f32.mrb[0].mxu0
        %1968 = vdwg.mxu0
        %v1985 = vunpack.c.l.b16 %v1832
        %v1986 = vunpack.c.l.b16 %v1833
        %v1987 = vunpack.c.l.b16 %v1834
        %v1988 = vunpack.c.l.b16 %v1835
        %v1989 = vunpack.c.l.b16 %v1836
        %v1990 = vunpack.c.l.b16 %v1837
        %v1991 = vunpack.c.l.b16 %v1838
        %v1992 = vunpack.c.l.b16 %v1839
        %v1993 = vunpack.c.l.b16 %v1840
        %v1994 = vunpack.c.l.b16 %v1841
        %v1995 = vunpack.c.l.b16 %v1842
        %v1996 = vunpack.c.l.b16 %v1843
        %v1997 = vunpack.c.l.b16 %v1844
        %v1998 = vunpack.c.l.b16 %v1845
        %v1999 = vunpack.c.l.b16 %v1846
        %v2000 = vunpack.c.l.b16 %v1847
        %v2001 = vpack.c.b16 %v1986, %v1985
        %v2002 = vpack.c.b16 %v1988, %v1987
        %v2003 = vpack.c.b16 %v1990, %v1989
        %v2004 = vpack.c.b16 %v1992, %v1991
        %v2005 = vpack.c.b16 %v1994, %v1993
        %v2006 = vpack.c.b16 %v1996, %v1995
        %v2007 = vpack.c.b16 %v1998, %v1997
        %v2008 = vpack.c.b16 %v2000, %v1999
        %2017 = vmatprep.subr.bf16.mxu0 0
        %2018 = vmatpush1.bf16.msra.mxu0 %v2001
        %2019 = vmatprep.subr.bf16.mxu0 0
        %2020 = vmatpush1.bf16.msra.mxu0 %v2002
        %2021 = vmatprep.subr.bf16.mxu0 0
        %2022 = vmatpush1.bf16.msra.mxu0 %v2003
        %2023 = vmatprep.subr.bf16.mxu0 0
        %2024 = vmatpush1.bf16.msra.mxu0 %v2004
        %2025 = vmatprep.subr.bf16.mxu0 0
        %2026 = vmatpush1.bf16.msra.mxu0 %v2005
        %2027 = vmatprep.subr.bf16.mxu0 0
        %2028 = vmatpush1.bf16.msra.mxu0 %v2006
        %2029 = vmatprep.subr.bf16.mxu0 0
        %2030 = vmatpush1.bf16.msra.mxu0 %v2007
        %2031 = vmatprep.subr.bf16.mxu0 0
        %2032 = vmatpush1.bf16.msra.mxu0 %v2008
        %2033 = vmatprep.subr.bf16.mxu0 0
        %2034 = vmatpush1.bf16.msra.mxu0 0
        %2035 = vmatprep.subr.bf16.mxu0 0
        %2036 = vmatpush1.bf16.msra.mxu0 0
        %2037 = vmatprep.subr.bf16.mxu0 0
        %2038 = vmatpush1.bf16.msra.mxu0 0
        %2039 = vmatprep.subr.bf16.mxu0 0
        %2040 = vmatpush1.bf16.msra.mxu0 0
        %2041 = vmatprep.subr.bf16.mxu0 0
        %2042 = vmatpush1.bf16.msra.mxu0 0
        %2043 = vmatprep.subr.bf16.mxu0 0
        %2044 = vmatpush1.bf16.msra.mxu0 0
        %2045 = vmatprep.subr.bf16.mxu0 0
        %2046 = vmatpush1.bf16.msra.mxu0 0
        %2047 = vmatprep.subr.bf16.mxu0 0
        %2048 = vmatpush1.bf16.msra.mxu0 0
        %2049 = vmatprep.mubr.bf16.mxu0 0
        %2050 = vmatmul.mubr.bf16.gmra.mrb[0].mxu0 %v1828
        %v2051 = vpop.f32.mrb[0].mxu0
        %v2052 = vadd.f32 %v1939, %v2051
        %v2053 = vpop.f32.mrb[0].mxu0
        %v2054 = vpop.f32.mrb[0].mxu0
        %v2055 = vadd.f32 %v1942, %v2054
        %v2056 = vpop.f32.mrb[0].mxu0
        %2057 = vmatprep.mubr.bf16.mxu0 0
        %2058 = vmatmul.mubr.bf16.gmra.mrb[0].mxu0 %v1829
        %v2059 = vpop.f32.mrb[0].mxu0
        %v2060 = vadd.f32 %v1947, %v2059
        %v2061 = vpop.f32.mrb[0].mxu0
        %v2062 = vpop.f32.mrb[0].mxu0
        %v2063 = vadd.f32 %v1950, %v2062
        %v2064 = vpop.f32.mrb[0].mxu0
        %2065 = vmatprep.mubr.bf16.mxu0 0
        %2066 = vmatmul.mubr.bf16.gmra.mrb[0].mxu0 %v1830
        %v2067 = vpop.f32.mrb[0].mxu0
        %v2068 = vadd.f32 %v1955, %v2067
        %v2069 = vpop.f32.mrb[0].mxu0
        %v2070 = vpop.f32.mrb[0].mxu0
        %v2071 = vadd.f32 %v1958, %v2070
        %v2072 = vpop.f32.mrb[0].mxu0
        %2073 = vmatprep.mubr.bf16.mxu0 0
        %2074 = vmatmul.mubr.bf16.gmra.mrb[0].mxu0 %v1831
        %v2075 = vpop.f32.mrb[0].mxu0
        %v2076 = vadd.f32 %v1963, %v2075
        %v2077 = vpop.f32.mrb[0].mxu0
        %v2078 = vpop.f32.mrb[0].mxu0
        %v2079 = vadd.f32 %v1966, %v2078
        %v2080 = vpop.f32.mrb[0].mxu0
        %2081 = vdwg.mxu0
        %v2082 = vld [vmem:[%s5] sm:$0x1]
        %v2084 = vlaneseq
        %v2085 = vshrl.u32 %v2084, 7
        %v2086 = vsub.s32 0, %v2085
        %v2087 = vrot.slane %v2082, %v2086
        %v2089 = vadd.f32 %v2052, %v2087
        %v2090 = vadd.f32 %v2055, %v2087
        %v2091 = vadd.f32 %v2060, %v2087
        %v2092 = vadd.f32 %v2063, %v2087
        %v2093 = vadd.f32 %v2068, %v2087
        %v2094 = vadd.f32 %v2071, %v2087
        %v2095 = vadd.f32 %v2076, %v2087
        %v2096 = vadd.f32 %v2079, %v2087
        %2097 = vst [vmem:[%s259] sm:$0xff] %v2089
        %2098 = vst [vmem:[%s259 + $0x8] sm:$0xff] %v2090
        %2099 = vst [vmem:[%s259 + $0x10] sm:$0xff] %v2091
        %2100 = vst [vmem:[%s259 + $0x18] sm:$0xff] %v2092
        %2101 = vst [vmem:[%s259 + $0x20] sm:$0xff] %v2093
        %2102 = vst [vmem:[%s259 + $0x28] sm:$0xff] %v2094
        %2103 = vst [vmem:[%s259 + $0x30] sm:$0xff] %v2095
        %2104 = vst [vmem:[%s259 + $0x38] sm:$0xff] %v2096
        %s2105 = sand.u32 %s164, 1
        %s2106 = scalar_lea.sflag [#allocation3], %s2105
        %s2107 = sand.u32 %s164, 1
        %s2108 = smul.addr %s2107, 64
        %s2109 = scalar_lea.vmem [#allocation2], %s2108
        // Predicated region
        $region45: #{attention_forward.3} parent=43 // pred_check
          %p2110 = pneg %p174
        $region46: #{attention_forward.3} parent=43 // pred_check_branch
          %2112 = sbr.rel (%p2110) target = $region48
        $region47: #{attention_forward.3} parent=43 // pred_region
          %s2114 = ssub.s32 1024, 1024
          %2115 = vsyncadd %s2106, %s2114
          %s2116 = smul.addr %s20, 8
          %s2117 = smul.addr %s2116, 128
          %s2118 = scalar_lea.hbm %s6, %s2117
          %s2119 = sshll.u32 %s2109, 4
          %s2120 = int_to_ptr.vmem [resolvable:$true] %s2119
          %2125 = dma.vmem_to_hbm [thread:$0]  %s2120, 1024, %s2118, %s2106, 128, 128, 8
        $region48: #{attention_forward.3} parent=43 // pred_fallthru
          _
      $region44: #{attention_forward.3} parent=5 // pred_fallthru
        _
      %p2126 = scmp.le.s32.totalorder 2, %s15
      // Predicated region
      $region49: #{attention_forward.3} parent=5 // pred_check
        %p2127 = pneg %p2126
      $region50: #{attention_forward.3} parent=5 // pred_check_branch
        %2129 = sbr.rel (%p2127) target = $region52
      $region51: #{attention_forward.3} parent=5 // pred_region
        %s2130 = ssub.s32 %s15, 2
        // Predicated region
        $region53: #{attention_forward.3} parent=51 // pred_check
          %p2131 = pneg %p180
        $region54: #{attention_forward.3} parent=51 // pred_check_branch
          %2133 = sbr.rel (%p2131) target = $region56
        $region55: #{attention_forward.3} parent=51 // pred_region
          %s2134 = sand.u32 %s165, 1
          %s2135 = scalar_lea.sflag [#allocation3], %s2134
          %s2136 = sand.u32 %s165, 1
          %s2137 = smul.addr %s2136, 64
          %s2138 = scalar_lea.vmem [#allocation2], %s2137
          %2139 = dma.done %s2135, 1024
        $region56: #{attention_forward.3} parent=51 // pred_fallthru
          _
      $region52: #{attention_forward.3} parent=5 // pred_fallthru
        _
    $region6: #{attention_forward.3} parent=1 // loop_footer
      %s19 = sadd.s32 1, %s15
    $region7: #{attention_forward.3} parent=1 // loop_footer_branch
      %14 = sbr.rel target = $region3
    $region8: #{attention_forward.3} parent=1 // loop_exit
      _
    %2140 = vsyncpa [#allocation3], 1
    %s2141 = scalar_lea.sflag [#allocation3], 1
    %2142 = vsyncpa %s2141, 1

// kernel: attention_forward.2
$region0: #{attention_forward.2}
  #allocation0 [shape = 'u32[]', space=smem, size = 0x4, offset = 0x4, fixed_abs, tag = 'smem constant byte address 0x4 - core index']
  #allocation1 [shape = 'u32[144,128]{1,0:T(1,128)}', space=vmem, size = 0x12000, scoped, tag = 'internal scratch']
  %s0 = inlined_call_operand.vmem [shape: f32[2,14,14,32], index: 0, kind: input, shape index: {}]
  %s1 = inlined_call_operand.vmem [shape: f32[9,1,32], index: 1, kind: input, shape index: {}]
  %s2 = inlined_call_operand.vmem [shape: f32[1,32], index: 2, kind: input, shape index: {}]
  %s3 = inlined_call_operand.vmem [shape: bf16[800,32], index: 3, kind: input, shape index: {}]
  %s4 = inlined_call_operand.vmem [shape: f32[1,32], index: 4, kind: input, shape index: {}]
  %s5 = inlined_call_operand.vmem [shape: f32[1,32], index: 5, kind: input, shape index: {}]
  %s6 = inlined_call_operand.vmem [shape: f32[1,32], index: 6, kind: input, shape index: {}]
  %s7 = inlined_call_operand.vmem [shape: f32[2,64,32], index: 7, kind: output, shape index: {}]
  %s8 = sld [smem:[#allocation0]]
  $region61: #{attention_forward.2} parent=0
    _
  %s10 = ssub.s32 1, %s8
  %s11 = scalar_select 0, %s10, %s8
  loop: start=0, step=1, limit=4
  $region2: #{attention_forward.2} parent=0 // loop_pre_header
    _
  $region3: #{attention_forward.2} parent=0 // loop_header
    %s13 = sphi 0, %s17
    %p14 = scmp.ge.s32.totalorder %s13, 4
    %s23 = sphi 0, %s25
    %s26 = sphi 0, %s23
    %s27 = sphi 0, %s26
    %s43 = sphi 0, %s27
    %s47 = sphi 0, %s47
    %s49 = sphi 0, %s47
    %s50 = sphi 0, %s49
    %s64 = sphi 0, %s50
    %s68 = sphi 0, %s68
    %s70 = sphi 0, %s68
    %s71 = sphi 0, %s70
    %s85 = sphi 0, %s71
    %s89 = sphi 0, %s89
    %s91 = sphi 0, %s89
    %s92 = sphi 0, %s91
    %s106 = sphi 0, %s92
    %s110 = sphi 0, %s110
    %s112 = sphi 0, %s110
    %s113 = sphi 0, %s112
    %s127 = sphi 0, %s113
    %s131 = sphi 0, %s131
    %s133 = sphi 0, %s131
    %s134 = sphi 0, %s133
    %s148 = sphi 0, %s134
    %s152 = sphi 0, %s152
    %s154 = sphi 0, %s152
    %s155 = sphi 0, %s154
    %s169 = sphi 0, %s155
    %s175 = sphi 0, %s177
    %s178 = sphi 0, %s175
    %s179 = sphi 0, %s178
    %s195 = sphi 0, %s179
  $region4: #{attention_forward.2} parent=0 // loop_header_branch
    %16 = sbr.rel (%p14) target = $region8
  $region5: #{attention_forward.2} parent=0 // loop_body
    %s18 = ssub.s32 %s13, 1
    %s19 = ssub.s32 %s13, 2
    %s20 = sadd.s32 %s13, 1
    %s21 = ssub.s32 %s13, %s20
    %p22 = scmp.eq.s32.totalorder %s21, 0
    %s24 = sadd.s32 %s23, 1
    %s25 = scalar_select %p22, %s23, %s24
    %p28 = pneg %p22
    %p29 = scmp.eq.s32.totalorder %s13, 1
    %p30 = por %p28, %p29
    %p31 = scmp.ne.s32.totalorder %s23, %s26
    %p32 = scmp.eq.s32.totalorder %s13, 0
    %p33 = por %p31, %p32
    %p34 = scmp.ne.s32.totalorder %s23, %s26
    %p35 = scmp.eq.s32.totalorder %s18, 1
    %p36 = por %p34, %p35
    %p37 = scmp.ne.s32.totalorder %s26, %s27
    %p38 = scmp.eq.s32.totalorder %s18, 0
    %p39 = por %p37, %p38
    %p40 = scmp.ne.s32.totalorder %s26, %s27
    %p41 = scmp.eq.s32.totalorder %s19, 1
    %p42 = por %p40, %p41
    %p44 = scmp.ne.s32.totalorder %s27, %s43
    %p45 = scmp.eq.s32.totalorder %s19, 0
    %p46 = por %p44, %p45
    %s48 = sadd.s32 %s47, 1
    %p51 = scmp.eq.s32.totalorder %s13, 1
    %p52 = scmp.ne.s32.totalorder %s47, %s49
    %p53 = scmp.eq.s32.totalorder %s13, 0
    %p54 = por %p52, %p53
    %p55 = scmp.ne.s32.totalorder %s47, %s49
    %p56 = scmp.eq.s32.totalorder %s18, 1
    %p57 = por %p55, %p56
    %p58 = scmp.ne.s32.totalorder %s49, %s50
    %p59 = scmp.eq.s32.totalorder %s18, 0
    %p60 = por %p58, %p59
    %p61 = scmp.ne.s32.totalorder %s49, %s50
    %p62 = scmp.eq.s32.totalorder %s19, 1
    %p63 = por %p61, %p62
    %p65 = scmp.ne.s32.totalorder %s50, %s64
    %p66 = scmp.eq.s32.totalorder %s19, 0
    %p67 = por %p65, %p66
    %s69 = sadd.s32 %s68, 1
    %p72 = scmp.eq.s32.totalorder %s13, 1
    %p73 = scmp.ne.s32.totalorder %s68, %s70
    %p74 = scmp.eq.s32.totalorder %s13, 0
    %p75 = por %p73, %p74
    %p76 = scmp.ne.s32.totalorder %s68, %s70
    %p77 = scmp.eq.s32.totalorder %s18, 1
    %p78 = por %p76, %p77
    %p79 = scmp.ne.s32.totalorder %s70, %s71
    %p80 = scmp.eq.s32.totalorder %s18, 0
    %p81 = por %p79, %p80
    %p82 = scmp.ne.s32.totalorder %s70, %s71
    %p83 = scmp.eq.s32.totalorder %s19, 1
    %p84 = por %p82, %p83
    %p86 = scmp.ne.s32.totalorder %s71, %s85
    %p87 = scmp.eq.s32.totalorder %s19, 0
    %p88 = por %p86, %p87
    %s90 = sadd.s32 %s89, 1
    %p93 = scmp.eq.s32.totalorder %s13, 1
    %p94 = scmp.ne.s32.totalorder %s89, %s91
    %p95 = scmp.eq.s32.totalorder %s13, 0
    %p96 = por %p94, %p95
    %p97 = scmp.ne.s32.totalorder %s89, %s91
    %p98 = scmp.eq.s32.totalorder %s18, 1
    %p99 = por %p97, %p98
    %p100 = scmp.ne.s32.totalorder %s91, %s92
    %p101 = scmp.eq.s32.totalorder %s18, 0
    %p102 = por %p100, %p101
    %p103 = scmp.ne.s32.totalorder %s91, %s92
    %p104 = scmp.eq.s32.totalorder %s19, 1
    %p105 = por %p103, %p104
    %p107 = scmp.ne.s32.totalorder %s92, %s106
    %p108 = scmp.eq.s32.totalorder %s19, 0
    %p109 = por %p107, %p108
    %s111 = sadd.s32 %s110, 1
    %p114 = scmp.eq.s32.totalorder %s13, 1
    %p115 = scmp.ne.s32.totalorder %s110, %s112
    %p116 = scmp.eq.s32.totalorder %s13, 0
    %p117 = por %p115, %p116
    %p118 = scmp.ne.s32.totalorder %s110, %s112
    %p119 = scmp.eq.s32.totalorder %s18, 1
    %p120 = por %p118, %p119
    %p121 = scmp.ne.s32.totalorder %s112, %s113
    %p122 = scmp.eq.s32.totalorder %s18, 0
    %p123 = por %p121, %p122
    %p124 = scmp.ne.s32.totalorder %s112, %s113
    %p125 = scmp.eq.s32.totalorder %s19, 1
    %p126 = por %p124, %p125
    %p128 = scmp.ne.s32.totalorder %s113, %s127
    %p129 = scmp.eq.s32.totalorder %s19, 0
    %p130 = por %p128, %p129
    %s132 = sadd.s32 %s131, 1
    %p135 = scmp.eq.s32.totalorder %s13, 1
    %p136 = scmp.ne.s32.totalorder %s131, %s133
    %p137 = scmp.eq.s32.totalorder %s13, 0
    %p138 = por %p136, %p137
    %p139 = scmp.ne.s32.totalorder %s131, %s133
    %p140 = scmp.eq.s32.totalorder %s18, 1
    %p141 = por %p139, %p140
    %p142 = scmp.ne.s32.totalorder %s133, %s134
    %p143 = scmp.eq.s32.totalorder %s18, 0
    %p144 = por %p142, %p143
    %p145 = scmp.ne.s32.totalorder %s133, %s134
    %p146 = scmp.eq.s32.totalorder %s19, 1
    %p147 = por %p145, %p146
    %p149 = scmp.ne.s32.totalorder %s134, %s148
    %p150 = scmp.eq.s32.totalorder %s19, 0
    %p151 = por %p149, %p150
    %s153 = sadd.s32 %s152, 1
    %p156 = scmp.eq.s32.totalorder %s13, 1
    %p157 = scmp.ne.s32.totalorder %s152, %s154
    %p158 = scmp.eq.s32.totalorder %s13, 0
    %p159 = por %p157, %p158
    %p160 = scmp.ne.s32.totalorder %s152, %s154
    %p161 = scmp.eq.s32.totalorder %s18, 1
    %p162 = por %p160, %p161
    %p163 = scmp.ne.s32.totalorder %s154, %s155
    %p164 = scmp.eq.s32.totalorder %s18, 0
    %p165 = por %p163, %p164
    %p166 = scmp.ne.s32.totalorder %s154, %s155
    %p167 = scmp.eq.s32.totalorder %s19, 1
    %p168 = por %p166, %p167
    %p170 = scmp.ne.s32.totalorder %s155, %s169
    %p171 = scmp.eq.s32.totalorder %s19, 0
    %p172 = por %p170, %p171
    %s173 = ssub.s32 %s13, %s20
    %p174 = scmp.eq.s32.totalorder %s173, 0
    %s176 = sadd.s32 %s175, 1
    %s177 = scalar_select %p174, %s175, %s176
    %p180 = pneg %p174
    %p181 = scmp.eq.s32.totalorder %s13, 1
    %p182 = por %p180, %p181
    %p183 = scmp.ne.s32.totalorder %s175, %s178
    %p184 = scmp.eq.s32.totalorder %s13, 0
    %p185 = por %p183, %p184
    %p186 = scmp.ne.s32.totalorder %s175, %s178
    %p187 = scmp.eq.s32.totalorder %s18, 1
    %p188 = por %p186, %p187
    %p189 = scmp.ne.s32.totalorder %s178, %s179
    %p190 = scmp.eq.s32.totalorder %s18, 0
    %p191 = por %p189, %p190
    %p192 = scmp.ne.s32.totalorder %s178, %s179
    %p193 = scmp.eq.s32.totalorder %s19, 1
    %p194 = por %p192, %p193
    %p196 = scmp.ne.s32.totalorder %s179, %s195
    %p197 = scmp.eq.s32.totalorder %s19, 0
    %p198 = por %p196, %p197
    %p199 = scmp.le.s32.totalorder 1, %s13
    %p200 = scmp.lt.s32.totalorder %s13, 3
    %p201 = pnand %p199, %p200
    %p202 = pneg %p201
    // Predicated region
    $region9: #{attention_forward.2} parent=5 // pred_check
      _
    $region10: #{attention_forward.2} parent=5 // pred_check_branch
      %204 = sbr.rel (%p201) target = $region12
    $region11: #{attention_forward.2} parent=5 // pred_region
      %s205 = ssub.s32 %s13, 1
      // Predicated region
      $region13: #{attention_forward.2} parent=11 // pred_check
        %p206 = pneg %p60
      $region14: #{attention_forward.2} parent=11 // pred_check_branch
        %208 = sbr.rel (%p206) target = $region16
      $region15: #{attention_forward.2} parent=11 // pred_region
        _
      $region16: #{attention_forward.2} parent=11 // pred_fallthru
        _
      // Predicated region
      $region17: #{attention_forward.2} parent=11 // pred_check
        %p209 = pneg %p81
      $region18: #{attention_forward.2} parent=11 // pred_check_branch
        %211 = sbr.rel (%p209) target = $region20
      $region19: #{attention_forward.2} parent=11 // pred_region
        _
      $region20: #{attention_forward.2} parent=11 // pred_fallthru
        _
      // Predicated region
      $region21: #{attention_forward.2} parent=11 // pred_check
        %p212 = pneg %p102
      $region22: #{attention_forward.2} parent=11 // pred_check_branch
        %214 = sbr.rel (%p212) target = $region24
      $region23: #{attention_forward.2} parent=11 // pred_region
        _
      $region24: #{attention_forward.2} parent=11 // pred_fallthru
        _
      // Predicated region
      $region25: #{attention_forward.2} parent=11 // pred_check
        %p215 = pneg %p123
      $region26: #{attention_forward.2} parent=11 // pred_check_branch
        %217 = sbr.rel (%p215) target = $region28
      $region27: #{attention_forward.2} parent=11 // pred_region
        _
      $region28: #{attention_forward.2} parent=11 // pred_fallthru
        _
      // Predicated region
      $region29: #{attention_forward.2} parent=11 // pred_check
        %p218 = pneg %p144
      $region30: #{attention_forward.2} parent=11 // pred_check_branch
        %220 = sbr.rel (%p218) target = $region32
      $region31: #{attention_forward.2} parent=11 // pred_region
        _
      $region32: #{attention_forward.2} parent=11 // pred_fallthru
        _
      // Predicated region
      $region33: #{attention_forward.2} parent=11 // pred_check
        %p221 = pneg %p165
      $region34: #{attention_forward.2} parent=11 // pred_check_branch
        %223 = sbr.rel (%p221) target = $region36
      $region35: #{attention_forward.2} parent=11 // pred_region
        _
      $region36: #{attention_forward.2} parent=11 // pred_fallthru
        _
    $region12: #{attention_forward.2} parent=5 // pred_fallthru
      _
    %p224 = scmp.lt.s32.totalorder %s13, 2
    // Predicated region
    $region37: #{attention_forward.2} parent=5 // pred_check
      %p225 = pneg %p224
    $region38: #{attention_forward.2} parent=5 // pred_check_branch
      %227 = sbr.rel (%p225) target = $region40
    $region39: #{attention_forward.2} parent=5 // pred_region
      // Predicated region
      $region41: #{attention_forward.2} parent=39 // pred_check
        %p228 = pneg %p33
      $region42: #{attention_forward.2} parent=39 // pred_check_branch
        %230 = sbr.rel (%p228) target = $region44
      $region43: #{attention_forward.2} parent=39 // pred_region
        %p231 = scmp.lt.s32.totalorder %s13, 1
        %s232 = scalar_select %p231, %s13, 1
        %s233 = smul.addr %s232, 28
        %s234 = smul.addr %s233, 8
        %s235 = scalar_lea.vmem %s0, %s234
      $region44: #{attention_forward.2} parent=39 // pred_fallthru
        _
    $region40: #{attention_forward.2} parent=5 // pred_fallthru
      _
    %p236 = scmp.le.s32.totalorder 1, %s13
    %p237 = scmp.lt.s32.totalorder %s13, 3
    %p238 = pnand %p236, %p237
    %p239 = pneg %p238
    // Predicated region
    $region45: #{attention_forward.2} parent=5 // pred_check
      _
    $region46: #{attention_forward.2} parent=5 // pred_check_branch
      %241 = sbr.rel (%p238) target = $region48
    $region47: #{attention_forward.2} parent=5 // pred_region
      %s242 = ssub.s32 %s13, 1
      %p243 = scmp.lt.s32.totalorder %s18, 1
      %s244 = scalar_select %p243, %s18, 1
      %s245 = smul.addr %s244, 28
      %s246 = smul.addr %s245, 8
      %s247 = scalar_lea.vmem %s0, %s246
      %p248 = pneg %p39
      %p249 = pneg %p36
      %p250 = pneg %p60
      %p251 = pneg %p57
      %p252 = pneg %p81
      %p253 = pneg %p78
      %p254 = pneg %p102
      %p255 = pneg %p99
      %p256 = pneg %p123
      %p257 = pneg %p120
      %p258 = pneg %p144
      %p259 = pneg %p141
      %p260 = pneg %p165
      %p261 = pneg %p162
      %p262 = pneg %p191
      %p263 = pneg %p188
      %p264 = scmp.lt.s32.totalorder %s18, 1
      %s265 = scalar_select %p264, %s18, 1
      %s266 = smul.addr %s265, 8
      %s267 = smul.addr %s266, 8
      %s268 = scalar_lea.vmem %s7, %s267
      %p269 = scmp.lt.s32.totalorder %s18, 1
      %s270 = scalar_select %p269, %s18, 1
      %s271 = smul.addr %s270, 28
      %s272 = smul.addr %s271, 8
      %s273 = scalar_lea.vmem %s0, %s272
      %p274 = scmp.lt.s32.totalorder %s18, 1
      %s275 = scalar_select %p274, %s18, 1
      %s276 = smul.addr %s275, 8
      %s277 = smul.addr %s276, 8
      %s278 = scalar_lea.vmem %s7, %s277
      %v280 = vld [vmem:[%s273] sm:$0xff]
      %v281 = vld [vmem:[%s273 + $0x8] sm:$0x3f]
      %v282 = vld [vmem:[%s273 + $0x10] sm:$0xff]
      %v283 = vld [vmem:[%s273 + $0x18] sm:$0x3f]
      %v284 = vld [vmem:[%s273 + $0x20] sm:$0xff]
      %v285 = vld [vmem:[%s273 + $0x28] sm:$0x3f]
      %v286 = vld [vmem:[%s273 + $0x30] sm:$0xff]
      %v287 = vld [vmem:[%s273 + $0x38] sm:$0x3f]
      %v288 = vld [vmem:[%s273 + $0x40] sm:$0xff]
      %v289 = vld [vmem:[%s273 + $0x48] sm:$0x3f]
      %v290 = vld [vmem:[%s273 + $0x50] sm:$0xff]
      %v291 = vld [vmem:[%s273 + $0x58] sm:$0x3f]
      %v292 = vld [vmem:[%s273 + $0x60] sm:$0xff]
      %v293 = vld [vmem:[%s273 + $0x68] sm:$0x3f]
      %v294 = vld [vmem:[%s273 + $0x70] sm:$0xff]
      %v295 = vld [vmem:[%s273 + $0x78] sm:$0x3f]
      %v296 = vld [vmem:[%s273 + $0x80] sm:$0xff]
      %v297 = vld [vmem:[%s273 + $0x88] sm:$0x3f]
      %v298 = vld [vmem:[%s273 + $0x90] sm:$0xff]
      %v299 = vld [vmem:[%s273 + $0x98] sm:$0x3f]
      %v300 = vld [vmem:[%s273 + $0xa0] sm:$0xff]
      %v301 = vld [vmem:[%s273 + $0xa8] sm:$0x3f]
      %v302 = vld [vmem:[%s273 + $0xb0] sm:$0xff]
      %v303 = vld [vmem:[%s273 + $0xb8] sm:$0x3f]
      %v304 = vld [vmem:[%s273 + $0xc0] sm:$0xff]
      %v305 = vld [vmem:[%s273 + $0xc8] sm:$0x3f]
      %v306 = vld [vmem:[%s273 + $0xd0] sm:$0xff]
      %v307 = vld [vmem:[%s273 + $0xd8] sm:$0x3f]
      %v308 = vld [vmem:[%s1] sm:$0x1]
      %v310 = vlaneseq
      %v311 = vshrl.u32 %v310, 7
      %v312 = vsub.s32 0, %v311
      %v313 = vrot.slane %v308, %v312
      %v315 = vmul.f32 %v280, %v313
      %v316 = vmul.f32 %v281, %v313
      %v317 = vmul.f32 %v282, %v313
      %v318 = vmul.f32 %v283, %v313
      %v319 = vmul.f32 %v284, %v313
      %v320 = vmul.f32 %v285, %v313
      %v321 = vmul.f32 %v286, %v313
      %v322 = vmul.f32 %v287, %v313
      %v323 = vmul.f32 %v288, %v313
      %v324 = vmul.f32 %v289, %v313
      %v325 = vmul.f32 %v290, %v313
      %v326 = vmul.f32 %v291, %v313
      %v327 = vmul.f32 %v292, %v313
      %v328 = vmul.f32 %v293, %v313
      %v329 = vmul.f32 %v294, %v313
      %v330 = vmul.f32 %v295, %v313
      %v331 = vmul.f32 %v296, %v313
      %v332 = vmul.f32 %v297, %v313
      %v333 = vmul.f32 %v298, %v313
      %v334 = vmul.f32 %v299, %v313
      %v335 = vmul.f32 %v300, %v313
      %v336 = vmul.f32 %v301, %v313
      %v337 = vmul.f32 %v302, %v313
      %v338 = vmul.f32 %v303, %v313
      %v339 = vadd.f32 %v315, 0.0
      %v340 = vadd.f32 %v316, 0.0
      %v341 = vadd.f32 %v317, 0.0
      %v342 = vadd.f32 %v318, 0.0
      %v343 = vadd.f32 %v319, 0.0
      %v344 = vadd.f32 %v320, 0.0
      %v345 = vadd.f32 %v321, 0.0
      %v346 = vadd.f32 %v322, 0.0
      %v347 = vadd.f32 %v323, 0.0
      %v348 = vadd.f32 %v324, 0.0
      %v349 = vadd.f32 %v325, 0.0
      %v350 = vadd.f32 %v326, 0.0
      %v351 = vadd.f32 %v327, 0.0
      %v352 = vadd.f32 %v328, 0.0
      %v353 = vadd.f32 %v329, 0.0
      %v354 = vadd.f32 %v330, 0.0
      %v355 = vadd.f32 %v331, 0.0
      %v356 = vadd.f32 %v332, 0.0
      %v357 = vadd.f32 %v333, 0.0
      %v358 = vadd.f32 %v334, 0.0
      %v359 = vadd.f32 %v335, 0.0
      %v360 = vadd.f32 %v336, 0.0
      %v361 = vadd.f32 %v337, 0.0
      %v362 = vadd.f32 %v338, 0.0
      %s363 = scalar_lea.vmem %s1, 1
      %v364 = vld [vmem:[%s363] sm:$0x1]
      %v366 = vlaneseq
      %v367 = vshrl.u32 %v366, 7
      %v368 = vsub.s32 0, %v367
      %v369 = vrot.slane %v364, %v368
      %v371 = vmul.f32 %v280, %v369
      %v372 = vmul.f32 %v281, %v369
      %v373 = vmul.f32 %v282, %v369
      %v374 = vmul.f32 %v283, %v369
      %v375 = vmul.f32 %v284, %v369
      %v376 = vmul.f32 %v285, %v369
      %v377 = vmul.f32 %v286, %v369
      %v378 = vmul.f32 %v287, %v369
      %v379 = vmul.f32 %v288, %v369
      %v380 = vmul.f32 %v289, %v369
      %v381 = vmul.f32 %v290, %v369
      %v382 = vmul.f32 %v291, %v369
      %v383 = vmul.f32 %v292, %v369
      %v384 = vmul.f32 %v293, %v369
      %v385 = vmul.f32 %v294, %v369
      %v386 = vmul.f32 %v295, %v369
      %v387 = vmul.f32 %v296, %v369
      %v388 = vmul.f32 %v297, %v369
      %v389 = vmul.f32 %v298, %v369
      %v390 = vmul.f32 %v299, %v369
      %v391 = vmul.f32 %v300, %v369
      %v392 = vmul.f32 %v301, %v369
      %v393 = vmul.f32 %v302, %v369
      %v394 = vmul.f32 %v303, %v369
      %vm419 = vcmask 1046528
      %v420 = vrot.slane %v371, 1
      %v421 = vrot.slane %v372, 1
      %v422 = vsel %vm419, %v420, %v421
      %v423 = vrot.slane %v373, 1
      %v424 = vrot.slane %v374, 1
      %v425 = vsel %vm419, %v423, %v424
      %v426 = vrot.slane %v375, 1
      %v427 = vrot.slane %v376, 1
      %v428 = vsel %vm419, %v426, %v427
      %v429 = vrot.slane %v377, 1
      %v430 = vrot.slane %v378, 1
      %v431 = vsel %vm419, %v429, %v430
      %v432 = vrot.slane %v379, 1
      %v433 = vrot.slane %v380, 1
      %v434 = vsel %vm419, %v432, %v433
      %v435 = vrot.slane %v381, 1
      %v436 = vrot.slane %v382, 1
      %v437 = vsel %vm419, %v435, %v436
      %v438 = vrot.slane %v383, 1
      %v439 = vrot.slane %v384, 1
      %v440 = vsel %vm419, %v438, %v439
      %v441 = vrot.slane %v385, 1
      %v442 = vrot.slane %v386, 1
      %v443 = vsel %vm419, %v441, %v442
      %v444 = vrot.slane %v387, 1
      %v445 = vrot.slane %v388, 1
      %v446 = vsel %vm419, %v444, %v445
      %v447 = vrot.slane %v389, 1
      %v448 = vrot.slane %v390, 1
      %v449 = vsel %vm419, %v447, %v448
      %v450 = vrot.slane %v391, 1
      %v451 = vrot.slane %v392, 1
      %v452 = vsel %vm419, %v450, %v451
      %v453 = vrot.slane %v393, 1
      %v454 = vrot.slane %v394, 1
      %v455 = vsel %vm419, %v453, %v454
      %v480 = vadd.f32 %v339, %v422
      %v481 = vadd.f32 %v340, %v421
      %v482 = vadd.f32 %v341, %v425
      %v483 = vadd.f32 %v342, %v424
      %v484 = vadd.f32 %v343, %v428
      %v485 = vadd.f32 %v344, %v427
      %v486 = vadd.f32 %v345, %v431
      %v487 = vadd.f32 %v346, %v430
      %v488 = vadd.f32 %v347, %v434
      %v489 = vadd.f32 %v348, %v433
      %v490 = vadd.f32 %v349, %v437
      %v491 = vadd.f32 %v350, %v436
      %v492 = vadd.f32 %v351, %v440
      %v493 = vadd.f32 %v352, %v439
      %v494 = vadd.f32 %v353, %v443
      %v495 = vadd.f32 %v354, %v442
      %v496 = vadd.f32 %v355, %v446
      %v497 = vadd.f32 %v356, %v445
      %v498 = vadd.f32 %v357, %v449
      %v499 = vadd.f32 %v358, %v448
      %v500 = vadd.f32 %v359, %v452
      %v501 = vadd.f32 %v360, %v451
      %v502 = vadd.f32 %v361, %v455
      %v503 = vadd.f32 %v362, %v454
      %s504 = scalar_lea.vmem %s1, 2
      %v505 = vld [vmem:[%s504] sm:$0x1]
      %v507 = vlaneseq
      %v508 = vshrl.u32 %v507, 7
      %v509 = vsub.s32 0, %v508
      %v510 = vrot.slane %v505, %v509
      %v512 = vmul.f32 %v280, %v510
      %v513 = vmul.f32 %v281, %v510
      %v514 = vmul.f32 %v282, %v510
      %v515 = vmul.f32 %v283, %v510
      %v516 = vmul.f32 %v284, %v510
      %v517 = vmul.f32 %v285, %v510
      %v518 = vmul.f32 %v286, %v510
      %v519 = vmul.f32 %v287, %v510
      %v520 = vmul.f32 %v288, %v510
      %v521 = vmul.f32 %v289, %v510
      %v522 = vmul.f32 %v290, %v510
      %v523 = vmul.f32 %v291, %v510
      %v524 = vmul.f32 %v292, %v510
      %v525 = vmul.f32 %v293, %v510
      %v526 = vmul.f32 %v294, %v510
      %v527 = vmul.f32 %v295, %v510
      %v528 = vmul.f32 %v296, %v510
      %v529 = vmul.f32 %v297, %v510
      %v530 = vmul.f32 %v298, %v510
      %v531 = vmul.f32 %v299, %v510
      %v532 = vmul.f32 %v300, %v510
      %v533 = vmul.f32 %v301, %v510
      %v534 = vmul.f32 %v302, %v510
      %v535 = vmul.f32 %v303, %v510
      %vm560 = vcmask 1045504
      %v561 = vrot.slane %v512, 2
      %v562 = vrot.slane %v513, 2
      %v563 = vsel %vm560, %v561, %v562
      %v564 = vrot.slane %v514, 2
      %v565 = vrot.slane %v515, 2
      %v566 = vsel %vm560, %v564, %v565
      %v567 = vrot.slane %v516, 2
      %v568 = vrot.slane %v517, 2
      %v569 = vsel %vm560, %v567, %v568
      %v570 = vrot.slane %v518, 2
      %v571 = vrot.slane %v519, 2
      %v572 = vsel %vm560, %v570, %v571
      %v573 = vrot.slane %v520, 2
      %v574 = vrot.slane %v521, 2
      %v575 = vsel %vm560, %v573, %v574
      %v576 = vrot.slane %v522, 2
      %v577 = vrot.slane %v523, 2
      %v578 = vsel %vm560, %v576, %v577
      %v579 = vrot.slane %v524, 2
      %v580 = vrot.slane %v525, 2
      %v581 = vsel %vm560, %v579, %v580
      %v582 = vrot.slane %v526, 2
      %v583 = vrot.slane %v527, 2
      %v584 = vsel %vm560, %v582, %v583
      %v585 = vrot.slane %v528, 2
      %v586 = vrot.slane %v529, 2
      %v587 = vsel %vm560, %v585, %v586
      %v588 = vrot.slane %v530, 2
      %v589 = vrot.slane %v531, 2
      %v590 = vsel %vm560, %v588, %v589
      %v591 = vrot.slane %v532, 2
      %v592 = vrot.slane %v533, 2
      %v593 = vsel %vm560, %v591, %v592
      %v594 = vrot.slane %v534, 2
      %v595 = vrot.slane %v535, 2
      %v596 = vsel %vm560, %v594, %v595
      %v621 = vadd.f32 %v480, %v563
      %v622 = vadd.f32 %v481, %v562
      %v623 = vadd.f32 %v482, %v566
      %v624 = vadd.f32 %v483, %v565
      %v625 = vadd.f32 %v484, %v569
      %v626 = vadd.f32 %v485, %v568
      %v627 = vadd.f32 %v486, %v572
      %v628 = vadd.f32 %v487, %v571
      %v629 = vadd.f32 %v488, %v575
      %v630 = vadd.f32 %v489, %v574
      %v631 = vadd.f32 %v490, %v578
      %v632 = vadd.f32 %v491, %v577
      %v633 = vadd.f32 %v492, %v581
      %v634 = vadd.f32 %v493, %v580
      %v635 = vadd.f32 %v494, %v584
      %v636 = vadd.f32 %v495, %v583
      %v637 = vadd.f32 %v496, %v587
      %v638 = vadd.f32 %v497, %v586
      %v639 = vadd.f32 %v498, %v590
      %v640 = vadd.f32 %v499, %v589
      %v641 = vadd.f32 %v500, %v593
      %v642 = vadd.f32 %v501, %v592
      %v643 = vadd.f32 %v502, %v596
      %v644 = vadd.f32 %v503, %v595
      %s645 = scalar_lea.vmem %s1, 3
      %v646 = vld [vmem:[%s645] sm:$0x1]
      %v648 = vlaneseq
      %v649 = vshrl.u32 %v648, 7
      %v650 = vsub.s32 0, %v649
      %v651 = vrot.slane %v646, %v650
      %v653 = vmul.f32 %v282, %v651
      %v654 = vmul.f32 %v283, %v651
      %v655 = vmul.f32 %v284, %v651
      %v656 = vmul.f32 %v285, %v651
      %v657 = vmul.f32 %v286, %v651
      %v658 = vmul.f32 %v287, %v651
      %v659 = vmul.f32 %v288, %v651
      %v660 = vmul.f32 %v289, %v651
      %v661 = vmul.f32 %v290, %v651
      %v662 = vmul.f32 %v291, %v651
      %v663 = vmul.f32 %v292, %v651
      %v664 = vmul.f32 %v293, %v651
      %v665 = vmul.f32 %v294, %v651
      %v666 = vmul.f32 %v295, %v651
      %v667 = vmul.f32 %v296, %v651
      %v668 = vmul.f32 %v297, %v651
      %v669 = vmul.f32 %v298, %v651
      %v670 = vmul.f32 %v299, %v651
      %v671 = vmul.f32 %v300, %v651
      %v672 = vmul.f32 %v301, %v651
      %v673 = vmul.f32 %v302, %v651
      %v674 = vmul.f32 %v303, %v651
      %v675 = vmul.f32 %v304, %v651
      %v676 = vmul.f32 %v305, %v651
      %v677 = vadd.f32 %v621, %v653
      %v678 = vadd.f32 %v622, %v654
      %v679 = vadd.f32 %v623, %v655
      %v680 = vadd.f32 %v624, %v656
      %v681 = vadd.f32 %v625, %v657
      %v682 = vadd.f32 %v626, %v658
      %v683 = vadd.f32 %v627, %v659
      %v684 = vadd.f32 %v628, %v660
      %v685 = vadd.f32 %v629, %v661
      %v686 = vadd.f32 %v630, %v662
      %v687 = vadd.f32 %v631, %v663
      %v688 = vadd.f32 %v632, %v664
      %v689 = vadd.f32 %v633, %v665
      %v690 = vadd.f32 %v634, %v666
      %v691 = vadd.f32 %v635, %v667
      %v692 = vadd.f32 %v636, %v668
      %v693 = vadd.f32 %v637, %v669
      %v694 = vadd.f32 %v638, %v670
      %v695 = vadd.f32 %v639, %v671
      %v696 = vadd.f32 %v640, %v672
      %v697 = vadd.f32 %v641, %v673
      %v698 = vadd.f32 %v642, %v674
      %v699 = vadd.f32 %v643, %v675
      %v700 = vadd.f32 %v644, %v676
      %s701 = scalar_lea.vmem %s1, 4
      %v702 = vld [vmem:[%s701] sm:$0x1]
      %v704 = vlaneseq
      %v705 = vshrl.u32 %v704, 7
      %v706 = vsub.s32 0, %v705
      %v707 = vrot.slane %v702, %v706
      %v709 = vmul.f32 %v282, %v707
      %v710 = vmul.f32 %v283, %v707
      %v711 = vmul.f32 %v284, %v707
      %v712 = vmul.f32 %v285, %v707
      %v713 = vmul.f32 %v286, %v707
      %v714 = vmul.f32 %v287, %v707
      %v715 = vmul.f32 %v288, %v707
      %v716 = vmul.f32 %v289, %v707
      %v717 = vmul.f32 %v290, %v707
      %v718 = vmul.f32 %v291, %v707
      %v719 = vmul.f32 %v292, %v707
      %v720 = vmul.f32 %v293, %v707
      %v721 = vmul.f32 %v294, %v707
      %v722 = vmul.f32 %v295, %v707
      %v723 = vmul.f32 %v296, %v707
      %v724 = vmul.f32 %v297, %v707
      %v725 = vmul.f32 %v298, %v707
      %v726 = vmul.f32 %v299, %v707
      %v727 = vmul.f32 %v300, %v707
      %v728 = vmul.f32 %v301, %v707
      %v729 = vmul.f32 %v302, %v707
      %v730 = vmul.f32 %v303, %v707
      %v731 = vmul.f32 %v304, %v707
      %v732 = vmul.f32 %v305, %v707
      %v757 = vrot.slane %v709, 1
      %v758 = vrot.slane %v710, 1
      %v759 = vsel %vm419, %v757, %v758
      %v760 = vrot.slane %v711, 1
      %v761 = vrot.slane %v712, 1
      %v762 = vsel %vm419, %v760, %v761
      %v763 = vrot.slane %v713, 1
      %v764 = vrot.slane %v714, 1
      %v765 = vsel %vm419, %v763, %v764
      %v766 = vrot.slane %v715, 1
      %v767 = vrot.slane %v716, 1
      %v768 = vsel %vm419, %v766, %v767
      %v769 = vrot.slane %v717, 1
      %v770 = vrot.slane %v718, 1
      %v771 = vsel %vm419, %v769, %v770
      %v772 = vrot.slane %v719, 1
      %v773 = vrot.slane %v720, 1
      %v774 = vsel %vm419, %v772, %v773
      %v775 = vrot.slane %v721, 1
      %v776 = vrot.slane %v722, 1
      %v777 = vsel %vm419, %v775, %v776
      %v778 = vrot.slane %v723, 1
      %v779 = vrot.slane %v724, 1
      %v780 = vsel %vm419, %v778, %v779
      %v781 = vrot.slane %v725, 1
      %v782 = vrot.slane %v726, 1
      %v783 = vsel %vm419, %v781, %v782
      %v784 = vrot.slane %v727, 1
      %v785 = vrot.slane %v728, 1
      %v786 = vsel %vm419, %v784, %v785
      %v787 = vrot.slane %v729, 1
      %v788 = vrot.slane %v730, 1
      %v789 = vsel %vm419, %v787, %v788
      %v790 = vrot.slane %v731, 1
      %v791 = vrot.slane %v732, 1
      %v792 = vsel %vm419, %v790, %v791
      %v817 = vadd.f32 %v677, %v759
      %v818 = vadd.f32 %v678, %v758
      %v819 = vadd.f32 %v679, %v762
      %v820 = vadd.f32 %v680, %v761
      %v821 = vadd.f32 %v681, %v765
      %v822 = vadd.f32 %v682, %v764
      %v823 = vadd.f32 %v683, %v768
      %v824 = vadd.f32 %v684, %v767
      %v825 = vadd.f32 %v685, %v771
      %v826 = vadd.f32 %v686, %v770
      %v827 = vadd.f32 %v687, %v774
      %v828 = vadd.f32 %v688, %v773
      %v829 = vadd.f32 %v689, %v777
      %v830 = vadd.f32 %v690, %v776
      %v831 = vadd.f32 %v691, %v780
      %v832 = vadd.f32 %v692, %v779
      %v833 = vadd.f32 %v693, %v783
      %v834 = vadd.f32 %v694, %v782
      %v835 = vadd.f32 %v695, %v786
      %v836 = vadd.f32 %v696, %v785
      %v837 = vadd.f32 %v697, %v789
      %v838 = vadd.f32 %v698, %v788
      %v839 = vadd.f32 %v699, %v792
      %v840 = vadd.f32 %v700, %v791
      %s841 = scalar_lea.vmem %s1, 5
      %v842 = vld [vmem:[%s841] sm:$0x1]
      %v844 = vlaneseq
      %v845 = vshrl.u32 %v844, 7
      %v846 = vsub.s32 0, %v845
      %v847 = vrot.slane %v842, %v846
      %v849 = vmul.f32 %v282, %v847
      %v850 = vmul.f32 %v283, %v847
      %v851 = vmul.f32 %v284, %v847
      %v852 = vmul.f32 %v285, %v847
      %v853 = vmul.f32 %v286, %v847
      %v854 = vmul.f32 %v287, %v847
      %v855 = vmul.f32 %v288, %v847
      %v856 = vmul.f32 %v289, %v847
      %v857 = vmul.f32 %v290, %v847
      %v858 = vmul.f32 %v291, %v847
      %v859 = vmul.f32 %v292, %v847
      %v860 = vmul.f32 %v293, %v847
      %v861 = vmul.f32 %v294, %v847
      %v862 = vmul.f32 %v295, %v847
      %v863 = vmul.f32 %v296, %v847
      %v864 = vmul.f32 %v297, %v847
      %v865 = vmul.f32 %v298, %v847
      %v866 = vmul.f32 %v299, %v847
      %v867 = vmul.f32 %v300, %v847
      %v868 = vmul.f32 %v301, %v847
      %v869 = vmul.f32 %v302, %v847
      %v870 = vmul.f32 %v303, %v847
      %v871 = vmul.f32 %v304, %v847
      %v872 = vmul.f32 %v305, %v847
      %v897 = vrot.slane %v849, 2
      %v898 = vrot.slane %v850, 2
      %v899 = vsel %vm560, %v897, %v898
      %v900 = vrot.slane %v851, 2
      %v901 = vrot.slane %v852, 2
      %v902 = vsel %vm560, %v900, %v901
      %v903 = vrot.slane %v853, 2
      %v904 = vrot.slane %v854, 2
      %v905 = vsel %vm560, %v903, %v904
      %v906 = vrot.slane %v855, 2
      %v907 = vrot.slane %v856, 2
      %v908 = vsel %vm560, %v906, %v907
      %v909 = vrot.slane %v857, 2
      %v910 = vrot.slane %v858, 2
      %v911 = vsel %vm560, %v909, %v910
      %v912 = vrot.slane %v859, 2
      %v913 = vrot.slane %v860, 2
      %v914 = vsel %vm560, %v912, %v913
      %v915 = vrot.slane %v861, 2
      %v916 = vrot.slane %v862, 2
      %v917 = vsel %vm560, %v915, %v916
      %v918 = vrot.slane %v863, 2
      %v919 = vrot.slane %v864, 2
      %v920 = vsel %vm560, %v918, %v919
      %v921 = vrot.slane %v865, 2
      %v922 = vrot.slane %v866, 2
      %v923 = vsel %vm560, %v921, %v922
      %v924 = vrot.slane %v867, 2
      %v925 = vrot.slane %v868, 2
      %v926 = vsel %vm560, %v924, %v925
      %v927 = vrot.slane %v869, 2
      %v928 = vrot.slane %v870, 2
      %v929 = vsel %vm560, %v927, %v928
      %v930 = vrot.slane %v871, 2
      %v931 = vrot.slane %v872, 2
      %v932 = vsel %vm560, %v930, %v931
      %v957 = vadd.f32 %v817, %v899
      %v958 = vadd.f32 %v818, %v898
      %v959 = vadd.f32 %v819, %v902
      %v960 = vadd.f32 %v820, %v901
      %v961 = vadd.f32 %v821, %v905
      %v962 = vadd.f32 %v822, %v904
      %v963 = vadd.f32 %v823, %v908
      %v964 = vadd.f32 %v824, %v907
      %v965 = vadd.f32 %v825, %v911
      %v966 = vadd.f32 %v826, %v910
      %v967 = vadd.f32 %v827, %v914
      %v968 = vadd.f32 %v828, %v913
      %v969 = vadd.f32 %v829, %v917
      %v970 = vadd.f32 %v830, %v916
      %v971 = vadd.f32 %v831, %v920
      %v972 = vadd.f32 %v832, %v919
      %v973 = vadd.f32 %v833, %v923
      %v974 = vadd.f32 %v834, %v922
      %v975 = vadd.f32 %v835, %v926
      %v976 = vadd.f32 %v836, %v925
      %v977 = vadd.f32 %v837, %v929
      %v978 = vadd.f32 %v838, %v928
      %v979 = vadd.f32 %v839, %v932
      %v980 = vadd.f32 %v840, %v931
      %s981 = scalar_lea.vmem %s1, 6
      %v982 = vld [vmem:[%s981] sm:$0x1]
      %v984 = vlaneseq
      %v985 = vshrl.u32 %v984, 7
      %v986 = vsub.s32 0, %v985
      %v987 = vrot.slane %v982, %v986
      %v989 = vmul.f32 %v284, %v987
      %v990 = vmul.f32 %v285, %v987
      %v991 = vmul.f32 %v286, %v987
      %v992 = vmul.f32 %v287, %v987
      %v993 = vmul.f32 %v288, %v987
      %v994 = vmul.f32 %v289, %v987
      %v995 = vmul.f32 %v290, %v987
      %v996 = vmul.f32 %v291, %v987
      %v997 = vmul.f32 %v292, %v987
      %v998 = vmul.f32 %v293, %v987
      %v999 = vmul.f32 %v294, %v987
      %v1000 = vmul.f32 %v295, %v987
      %v1001 = vmul.f32 %v296, %v987
      %v1002 = vmul.f32 %v297, %v987
      %v1003 = vmul.f32 %v298, %v987
      %v1004 = vmul.f32 %v299, %v987
      %v1005 = vmul.f32 %v300, %v987
      %v1006 = vmul.f32 %v301, %v987
      %v1007 = vmul.f32 %v302, %v987
      %v1008 = vmul.f32 %v303, %v987
      %v1009 = vmul.f32 %v304, %v987
      %v1010 = vmul.f32 %v305, %v987
      %v1011 = vmul.f32 %v306, %v987
      %v1012 = vmul.f32 %v307, %v987
      %v1013 = vadd.f32 %v957, %v989
      %v1014 = vadd.f32 %v958, %v990
      %v1015 = vadd.f32 %v959, %v991
      %v1016 = vadd.f32 %v960, %v992
      %v1017 = vadd.f32 %v961, %v993
      %v1018 = vadd.f32 %v962, %v994
      %v1019 = vadd.f32 %v963, %v995
      %v1020 = vadd.f32 %v964, %v996
      %v1021 = vadd.f32 %v965, %v997
      %v1022 = vadd.f32 %v966, %v998
      %v1023 = vadd.f32 %v967, %v999
      %v1024 = vadd.f32 %v968, %v1000
      %v1025 = vadd.f32 %v969, %v1001
      %v1026 = vadd.f32 %v970, %v1002
      %v1027 = vadd.f32 %v971, %v1003
      %v1028 = vadd.f32 %v972, %v1004
      %v1029 = vadd.f32 %v973, %v1005
      %v1030 = vadd.f32 %v974, %v1006
      %v1031 = vadd.f32 %v975, %v1007
      %v1032 = vadd.f32 %v976, %v1008
      %v1033 = vadd.f32 %v977, %v1009
      %v1034 = vadd.f32 %v978, %v1010
      %v1035 = vadd.f32 %v979, %v1011
      %v1036 = vadd.f32 %v980, %v1012
      %s1037 = scalar_lea.vmem %s1, 7
      %v1038 = vld [vmem:[%s1037] sm:$0x1]
      %v1040 = vlaneseq
      %v1041 = vshrl.u32 %v1040, 7
      %v1042 = vsub.s32 0, %v1041
      %v1043 = vrot.slane %v1038, %v1042
      %v1045 = vmul.f32 %v284, %v1043
      %v1046 = vmul.f32 %v285, %v1043
      %v1047 = vmul.f32 %v286, %v1043
      %v1048 = vmul.f32 %v287, %v1043
      %v1049 = vmul.f32 %v288, %v1043
      %v1050 = vmul.f32 %v289, %v1043
      %v1051 = vmul.f32 %v290, %v1043
      %v1052 = vmul.f32 %v291, %v1043
      %v1053 = vmul.f32 %v292, %v1043
      %v1054 = vmul.f32 %v293, %v1043
      %v1055 = vmul.f32 %v294, %v1043
      %v1056 = vmul.f32 %v295, %v1043
      %v1057 = vmul.f32 %v296, %v1043
      %v1058 = vmul.f32 %v297, %v1043
      %v1059 = vmul.f32 %v298, %v1043
      %v1060 = vmul.f32 %v299, %v1043
      %v1061 = vmul.f32 %v300, %v1043
      %v1062 = vmul.f32 %v301, %v1043
      %v1063 = vmul.f32 %v302, %v1043
      %v1064 = vmul.f32 %v303, %v1043
      %v1065 = vmul.f32 %v304, %v1043
      %v1066 = vmul.f32 %v305, %v1043
      %v1067 = vmul.f32 %v306, %v1043
      %v1068 = vmul.f32 %v307, %v1043
      %v1093 = vrot.slane %v1045, 1
      %v1094 = vrot.slane %v1046, 1
      %v1095 = vsel %vm419, %v1093, %v1094
      %v1096 = vrot.slane %v1047, 1
      %v1097 = vrot.slane %v1048, 1
      %v1098 = vsel %vm419, %v1096, %v1097
      %v1099 = vrot.slane %v1049, 1
      %v1100 = vrot.slane %v1050, 1
      %v1101 = vsel %vm419, %v1099, %v1100
      %v1102 = vrot.slane %v1051, 1
      %v1103 = vrot.slane %v1052, 1
      %v1104 = vsel %vm419, %v1102, %v1103
      %v1105 = vrot.slane %v1053, 1
      %v1106 = vrot.slane %v1054, 1
      %v1107 = vsel %vm419, %v1105, %v1106
      %v1108 = vrot.slane %v1055, 1
      %v1109 = vrot.slane %v1056, 1
      %v1110 = vsel %vm419, %v1108, %v1109
      %v1111 = vrot.slane %v1057, 1
      %v1112 = vrot.slane %v1058, 1
      %v1113 = vsel %vm419, %v1111, %v1112
      %v1114 = vrot.slane %v1059, 1
      %v1115 = vrot.slane %v1060, 1
      %v1116 = vsel %vm419, %v1114, %v1115
      %v1117 = vrot.slane %v1061, 1
      %v1118 = vrot.slane %v1062, 1
      %v1119 = vsel %vm419, %v1117, %v1118
      %v1120 = vrot.slane %v1063, 1
      %v1121 = vrot.slane %v1064, 1
      %v1122 = vsel %vm419, %v1120, %v1121
      %v1123 = vrot.slane %v1065, 1
      %v1124 = vrot.slane %v1066, 1
      %v1125 = vsel %vm419, %v1123, %v1124
      %v1126 = vrot.slane %v1067, 1
      %v1127 = vrot.slane %v1068, 1
      %v1128 = vsel %vm419, %v1126, %v1127
      %v1153 = vadd.f32 %v1013, %v1095
      %v1154 = vadd.f32 %v1014, %v1094
      %v1155 = vadd.f32 %v1015, %v1098
      %v1156 = vadd.f32 %v1016, %v1097
      %v1157 = vadd.f32 %v1017, %v1101
      %v1158 = vadd.f32 %v1018, %v1100
      %v1159 = vadd.f32 %v1019, %v1104
      %v1160 = vadd.f32 %v1020, %v1103
      %v1161 = vadd.f32 %v1021, %v1107
      %v1162 = vadd.f32 %v1022, %v1106
      %v1163 = vadd.f32 %v1023, %v1110
      %v1164 = vadd.f32 %v1024, %v1109
      %v1165 = vadd.f32 %v1025, %v1113
      %v1166 = vadd.f32 %v1026, %v1112
      %v1167 = vadd.f32 %v1027, %v1116
      %v1168 = vadd.f32 %v1028, %v1115
      %v1169 = vadd.f32 %v1029, %v1119
      %v1170 = vadd.f32 %v1030, %v1118
      %v1171 = vadd.f32 %v1031, %v1122
      %v1172 = vadd.f32 %v1032, %v1121
      %v1173 = vadd.f32 %v1033, %v1125
      %v1174 = vadd.f32 %v1034, %v1124
      %v1175 = vadd.f32 %v1035, %v1128
      %v1176 = vadd.f32 %v1036, %v1127
      %s1177 = scalar_lea.vmem %s1, 8
      %v1178 = vld [vmem:[%s1177] sm:$0x1]
      %v1180 = vlaneseq
      %v1181 = vshrl.u32 %v1180, 7
      %v1182 = vsub.s32 0, %v1181
      %v1183 = vrot.slane %v1178, %v1182
      %v1185 = vmul.f32 %v284, %v1183
      %v1186 = vmul.f32 %v285, %v1183
      %v1187 = vmul.f32 %v286, %v1183
      %v1188 = vmul.f32 %v287, %v1183
      %v1189 = vmul.f32 %v288, %v1183
      %v1190 = vmul.f32 %v289, %v1183
      %v1191 = vmul.f32 %v290, %v1183
      %v1192 = vmul.f32 %v291, %v1183
      %v1193 = vmul.f32 %v292, %v1183
      %v1194 = vmul.f32 %v293, %v1183
      %v1195 = vmul.f32 %v294, %v1183
      %v1196 = vmul.f32 %v295, %v1183
      %v1197 = vmul.f32 %v296, %v1183
      %v1198 = vmul.f32 %v297, %v1183
      %v1199 = vmul.f32 %v298, %v1183
      %v1200 = vmul.f32 %v299, %v1183
      %v1201 = vmul.f32 %v300, %v1183
      %v1202 = vmul.f32 %v301, %v1183
      %v1203 = vmul.f32 %v302, %v1183
      %v1204 = vmul.f32 %v303, %v1183
      %v1205 = vmul.f32 %v304, %v1183
      %v1206 = vmul.f32 %v305, %v1183
      %v1207 = vmul.f32 %v306, %v1183
      %v1208 = vmul.f32 %v307, %v1183
      %v1233 = vrot.slane %v1185, 2
      %v1234 = vrot.slane %v1186, 2
      %v1235 = vsel %vm560, %v1233, %v1234
      %v1236 = vrot.slane %v1187, 2
      %v1237 = vrot.slane %v1188, 2
      %v1238 = vsel %vm560, %v1236, %v1237
      %v1239 = vrot.slane %v1189, 2
      %v1240 = vrot.slane %v1190, 2
      %v1241 = vsel %vm560, %v1239, %v1240
      %v1242 = vrot.slane %v1191, 2
      %v1243 = vrot.slane %v1192, 2
      %v1244 = vsel %vm560, %v1242, %v1243
      %v1245 = vrot.slane %v1193, 2
      %v1246 = vrot.slane %v1194, 2
      %v1247 = vsel %vm560, %v1245, %v1246
      %v1248 = vrot.slane %v1195, 2
      %v1249 = vrot.slane %v1196, 2
      %v1250 = vsel %vm560, %v1248, %v1249
      %v1251 = vrot.slane %v1197, 2
      %v1252 = vrot.slane %v1198, 2
      %v1253 = vsel %vm560, %v1251, %v1252
      %v1254 = vrot.slane %v1199, 2
      %v1255 = vrot.slane %v1200, 2
      %v1256 = vsel %vm560, %v1254, %v1255
      %v1257 = vrot.slane %v1201, 2
      %v1258 = vrot.slane %v1202, 2
      %v1259 = vsel %vm560, %v1257, %v1258
      %v1260 = vrot.slane %v1203, 2
      %v1261 = vrot.slane %v1204, 2
      %v1262 = vsel %vm560, %v1260, %v1261
      %v1263 = vrot.slane %v1205, 2
      %v1264 = vrot.slane %v1206, 2
      %v1265 = vsel %vm560, %v1263, %v1264
      %v1266 = vrot.slane %v1207, 2
      %v1267 = vrot.slane %v1208, 2
      %v1268 = vsel %vm560, %v1266, %v1267
      %v1293 = vadd.f32 %v1153, %v1235
      %v1294 = vadd.f32 %v1154, %v1234
      %v1295 = vadd.f32 %v1155, %v1238
      %v1296 = vadd.f32 %v1156, %v1237
      %v1297 = vadd.f32 %v1157, %v1241
      %v1298 = vadd.f32 %v1158, %v1240
      %v1299 = vadd.f32 %v1159, %v1244
      %v1300 = vadd.f32 %v1160, %v1243
      %v1301 = vadd.f32 %v1161, %v1247
      %v1302 = vadd.f32 %v1162, %v1246
      %v1303 = vadd.f32 %v1163, %v1250
      %v1304 = vadd.f32 %v1164, %v1249
      %v1305 = vadd.f32 %v1165, %v1253
      %v1306 = vadd.f32 %v1166, %v1252
      %v1307 = vadd.f32 %v1167, %v1256
      %v1308 = vadd.f32 %v1168, %v1255
      %v1309 = vadd.f32 %v1169, %v1259
      %v1310 = vadd.f32 %v1170, %v1258
      %v1311 = vadd.f32 %v1171, %v1262
      %v1312 = vadd.f32 %v1172, %v1261
      %v1313 = vadd.f32 %v1173, %v1265
      %v1314 = vadd.f32 %v1174, %v1264
      %v1315 = vadd.f32 %v1175, %v1268
      %v1316 = vadd.f32 %v1176, %v1267
      %v1317 = vld [vmem:[%s2] sm:$0x1]
      %v1319 = vlaneseq
      %v1320 = vshrl.u32 %v1319, 7
      %v1321 = vsub.s32 0, %v1320
      %v1322 = vrot.slane %v1317, %v1321
      %v1324 = vadd.f32 %v1293, %v1322
      %v1325 = vadd.f32 %v1294, %v1322
      %v1326 = vadd.f32 %v1295, %v1322
      %v1327 = vadd.f32 %v1296, %v1322
      %v1328 = vadd.f32 %v1297, %v1322
      %v1329 = vadd.f32 %v1298, %v1322
      %v1330 = vadd.f32 %v1299, %v1322
      %v1331 = vadd.f32 %v1300, %v1322
      %v1332 = vadd.f32 %v1301, %v1322
      %v1333 = vadd.f32 %v1302, %v1322
      %v1334 = vadd.f32 %v1303, %v1322
      %v1335 = vadd.f32 %v1304, %v1322
      %v1336 = vadd.f32 %v1305, %v1322
      %v1337 = vadd.f32 %v1306, %v1322
      %v1338 = vadd.f32 %v1307, %v1322
      %v1339 = vadd.f32 %v1308, %v1322
      %v1340 = vadd.f32 %v1309, %v1322
      %v1341 = vadd.f32 %v1310, %v1322
      %v1342 = vadd.f32 %v1311, %v1322
      %v1343 = vadd.f32 %v1312, %v1322
      %v1344 = vadd.f32 %v1313, %v1322
      %v1345 = vadd.f32 %v1314, %v1322
      %v1346 = vadd.f32 %v1315, %v1322
      %v1347 = vadd.f32 %v1316, %v1322
      %v1348 = vlaneseq
      %v1349 = vshrl.u32 %v1348, 7
      %v1350 = vadd.s32 %v1349, 8
      %vm1351 = vcmp.ge.s32.totalorder %v1349, 2
      %vm1352 = vcmp.ge.s32.totalorder %v1350, 2
      %vm1353 = vmand 0, %vm1351
      %vm1354 = vmand 0, %vm1352
      %vm1355 = vmand 1, %vm1351
      %vm1356 = vmand 1, %vm1352
      %vm1357 = vcmp.lt.s32.totalorder %v1349, 10
      %vm1358 = vcmp.lt.s32.totalorder %v1350, 10
      %vm1359 = vmand %vm1353, %vm1357
      %vm1360 = vmand %vm1354, %vm1358
      %vm1361 = vmand %vm1355, %vm1357
      %vm1362 = vmand %vm1356, %vm1358
      %v1363 = vsel %vm1359, %v1324, 0.0
      %v1364 = vsel %vm1360, %v1325, 0.0
      %v1365 = vsel %vm1359, %v1326, 0.0
      %v1366 = vsel %vm1360, %v1327, 0.0
      %v1367 = vsel %vm1361, %v1328, 0.0
      %v1368 = vsel %vm1362, %v1329, 0.0
      %v1369 = vsel %vm1361, %v1330, 0.0
      %v1370 = vsel %vm1362, %v1331, 0.0
      %v1371 = vsel %vm1361, %v1332, 0.0
      %v1372 = vsel %vm1362, %v1333, 0.0
      %v1373 = vsel %vm1361, %v1334, 0.0
      %v1374 = vsel %vm1362, %v1335, 0.0
      %v1375 = vsel %vm1361, %v1336, 0.0
      %v1376 = vsel %vm1362, %v1337, 0.0
      %v1377 = vsel %vm1361, %v1338, 0.0
      %v1378 = vsel %vm1362, %v1339, 0.0
      %v1379 = vsel %vm1361, %v1340, 0.0
      %v1380 = vsel %vm1362, %v1341, 0.0
      %v1381 = vsel %vm1361, %v1342, 0.0
      %v1382 = vsel %vm1362, %v1343, 0.0
      %v1383 = vsel %vm1359, %v1344, 0.0
      %v1384 = vsel %vm1360, %v1345, 0.0
      %v1385 = vsel %vm1359, %v1346, 0.0
      %v1386 = vsel %vm1360, %v1347, 0.0
      %v1389 = vrot.slane %v1363, 1
      %v1390 = vrot.slane %v1364, 1
      %v1391 = vsel %vm419, %v1389, %v1390
      %v1394 = vrot.slane %v1365, 1
      %v1395 = vrot.slane %v1366, 1
      %v1396 = vsel %vm419, %v1394, %v1395
      %v1399 = vrot.slane %v1367, 1
      %v1400 = vrot.slane %v1368, 1
      %v1401 = vsel %vm419, %v1399, %v1400
      %v1404 = vrot.slane %v1369, 1
      %v1405 = vrot.slane %v1370, 1
      %v1406 = vsel %vm419, %v1404, %v1405
      %v1409 = vrot.slane %v1371, 1
      %v1410 = vrot.slane %v1372, 1
      %v1411 = vsel %vm419, %v1409, %v1410
      %v1414 = vrot.slane %v1373, 1
      %v1415 = vrot.slane %v1374, 1
      %v1416 = vsel %vm419, %v1414, %v1415
      %v1419 = vrot.slane %v1375, 1
      %v1420 = vrot.slane %v1376, 1
      %v1421 = vsel %vm419, %v1419, %v1420
      %v1424 = vrot.slane %v1377, 1
      %v1425 = vrot.slane %v1378, 1
      %v1426 = vsel %vm419, %v1424, %v1425
      %v1427 = vrot.slane %v1363, 2
      %v1428 = vrot.slane %v1364, 2
      %v1429 = vsel %vm560, %v1427, %v1428
      %v1430 = vrot.slane %v1365, 2
      %v1431 = vrot.slane %v1366, 2
      %v1432 = vsel %vm560, %v1430, %v1431
      %v1433 = vrot.slane %v1367, 2
      %v1434 = vrot.slane %v1368, 2
      %v1435 = vsel %vm560, %v1433, %v1434
      %v1436 = vrot.slane %v1369, 2
      %v1437 = vrot.slane %v1370, 2
      %v1438 = vsel %vm560, %v1436, %v1437
      %v1439 = vrot.slane %v1371, 2
      %v1440 = vrot.slane %v1372, 2
      %v1441 = vsel %vm560, %v1439, %v1440
      %v1442 = vrot.slane %v1373, 2
      %v1443 = vrot.slane %v1374, 2
      %v1444 = vsel %vm560, %v1442, %v1443
      %v1445 = vrot.slane %v1375, 2
      %v1446 = vrot.slane %v1376, 2
      %v1447 = vsel %vm560, %v1445, %v1446
      %v1448 = vrot.slane %v1377, 2
      %v1449 = vrot.slane %v1378, 2
      %v1450 = vsel %vm560, %v1448, %v1449
      %vm1451 = vcmask 1044480
      %v1452 = vrot.slane %v1363, 3
      %v1453 = vrot.slane %v1364, 3
      %v1454 = vsel %vm1451, %v1452, %v1453
      %v1455 = vrot.slane %v1365, 3
      %v1456 = vrot.slane %v1366, 3
      %v1457 = vsel %vm1451, %v1455, %v1456
      %v1458 = vrot.slane %v1367, 3
      %v1459 = vrot.slane %v1368, 3
      %v1460 = vsel %vm1451, %v1458, %v1459
      %v1461 = vrot.slane %v1369, 3
      %v1462 = vrot.slane %v1370, 3
      %v1463 = vsel %vm1451, %v1461, %v1462
      %v1464 = vrot.slane %v1371, 3
      %v1465 = vrot.slane %v1372, 3
      %v1466 = vsel %vm1451, %v1464, %v1465
      %v1467 = vrot.slane %v1373, 3
      %v1468 = vrot.slane %v1374, 3
      %v1469 = vsel %vm1451, %v1467, %v1468
      %v1470 = vrot.slane %v1375, 3
      %v1471 = vrot.slane %v1376, 3
      %v1472 = vsel %vm1451, %v1470, %v1471
      %v1473 = vrot.slane %v1377, 3
      %v1474 = vrot.slane %v1378, 3
      %v1475 = vsel %vm1451, %v1473, %v1474
      %vm1476 = vcmask 1043456
      %v1477 = vrot.slane %v1363, 4
      %v1478 = vrot.slane %v1364, 4
      %v1479 = vsel %vm1476, %v1477, %v1478
      %v1481 = vrot.slane %v1365, 4
      %v1482 = vrot.slane %v1366, 4
      %v1483 = vsel %vm1476, %v1481, %v1482
      %v1485 = vrot.slane %v1367, 4
      %v1486 = vrot.slane %v1368, 4
      %v1487 = vsel %vm1476, %v1485, %v1486
      %v1489 = vrot.slane %v1369, 4
      %v1490 = vrot.slane %v1370, 4
      %v1491 = vsel %vm1476, %v1489, %v1490
      %v1493 = vrot.slane %v1371, 4
      %v1494 = vrot.slane %v1372, 4
      %v1495 = vsel %vm1476, %v1493, %v1494
      %v1497 = vrot.slane %v1373, 4
      %v1498 = vrot.slane %v1374, 4
      %v1499 = vsel %vm1476, %v1497, %v1498
      %v1501 = vrot.slane %v1375, 4
      %v1502 = vrot.slane %v1376, 4
      %v1503 = vsel %vm1476, %v1501, %v1502
      %v1505 = vrot.slane %v1377, 4
      %v1506 = vrot.slane %v1378, 4
      %v1507 = vsel %vm1476, %v1505, %v1506
      %v1511 = vrot.slane %v1379, 1
      %v1512 = vrot.slane %v1380, 1
      %v1513 = vsel %vm419, %v1511, %v1512
      %v1514 = vrot.slane %v1379, 2
      %v1515 = vrot.slane %v1380, 2
      %v1516 = vsel %vm560, %v1514, %v1515
      %v1524 = vrot.slane %v1379, 3
      %v1525 = vrot.slane %v1380, 3
      %v1526 = vsel %vm1451, %v1524, %v1525
      %v1528 = vrot.slane %v1379, 4
      %v1529 = vrot.slane %v1380, 4
      %v1530 = vsel %vm1476, %v1528, %v1529
      %v1533 = vrot.slane %v1381, 1
      %v1534 = vrot.slane %v1382, 1
      %v1535 = vsel %vm419, %v1533, %v1534
      %v1543 = vrot.slane %v1381, 2
      %v1544 = vrot.slane %v1382, 2
      %v1545 = vsel %vm560, %v1543, %v1544
      %v1547 = vrot.slane %v1381, 3
      %v1548 = vrot.slane %v1382, 3
      %v1549 = vsel %vm1451, %v1547, %v1548
      %v1550 = vrot.slane %v1381, 4
      %v1551 = vrot.slane %v1382, 4
      %v1552 = vsel %vm1476, %v1550, %v1551
      %v1562 = vrot.slane %v1383, 1
      %v1563 = vrot.slane %v1384, 1
      %v1564 = vsel %vm419, %v1562, %v1563
      %v1566 = vrot.slane %v1383, 2
      %v1567 = vrot.slane %v1384, 2
      %v1568 = vsel %vm560, %v1566, %v1567
      %v1569 = vrot.slane %v1383, 3
      %v1570 = vrot.slane %v1384, 3
      %v1571 = vsel %vm1451, %v1569, %v1570
      %v1572 = vrot.slane %v1383, 4
      %v1573 = vrot.slane %v1384, 4
      %v1574 = vsel %vm1476, %v1572, %v1573
      %v1577 = vrot.slane %v1385, 1
      %v1578 = vrot.slane %v1386, 1
      %v1579 = vsel %vm419, %v1577, %v1578
      %v1580 = vrot.slane %v1385, 2
      %v1581 = vrot.slane %v1386, 2
      %v1582 = vsel %vm560, %v1580, %v1581
      %v1583 = vrot.slane %v1385, 3
      %v1584 = vrot.slane %v1386, 3
      %v1585 = vsel %vm1451, %v1583, %v1584
      %v1589 = vrot.slane %v1385, 4
      %v1590 = vrot.slane %v1386, 4
      %v1591 = vsel %vm1476, %v1589, %v1590
      %1593 = vrot.lane.b32.xlu0 %v1391, 32
      %v1594 = vpop.permute.xlu0 %1593
      %1595 = vrot.lane.b32.xlu0 %v1396, 32
      %v1596 = vpop.permute.xlu0 %1595
      %1597 = vrot.lane.b32.xlu0 %v1401, 32
      %v1598 = vpop.permute.xlu0 %1597
      %1599 = vrot.lane.b32.xlu0 %v1406, 32
      %v1600 = vpop.permute.xlu0 %1599
      %1601 = vrot.lane.b32.xlu0 %v1411, 32
      %v1602 = vpop.permute.xlu0 %1601
      %1603 = vrot.lane.b32.xlu0 %v1416, 32
      %v1604 = vpop.permute.xlu0 %1603
      %1605 = vrot.lane.b32.xlu0 %v1421, 32
      %v1606 = vpop.permute.xlu0 %1605
      %1607 = vrot.lane.b32.xlu0 %v1426, 32
      %v1608 = vpop.permute.xlu0 %1607
      %1617 = vrot.lane.b32.xlu0 %v1429, 64
      %v1618 = vpop.permute.xlu0 %1617
      %1619 = vrot.lane.b32.xlu0 %v1432, 64
      %v1620 = vpop.permute.xlu0 %1619
      %1621 = vrot.lane.b32.xlu0 %v1435, 64
      %v1622 = vpop.permute.xlu0 %1621
      %1623 = vrot.lane.b32.xlu0 %v1438, 64
      %v1624 = vpop.permute.xlu0 %1623
      %1625 = vrot.lane.b32.xlu0 %v1441, 64
      %v1626 = vpop.permute.xlu0 %1625
      %1627 = vrot.lane.b32.xlu0 %v1444, 64
      %v1628 = vpop.permute.xlu0 %1627
      %1629 = vrot.lane.b32.xlu0 %v1447, 64
      %v1630 = vpop.permute.xlu0 %1629
      %1631 = vrot.lane.b32.xlu0 %v1450, 64
      %v1632 = vpop.permute.xlu0 %1631
      %1641 = vrot.lane.b32.xlu0 %v1454, 96
      %v1642 = vpop.permute.xlu0 %1641
      %1643 = vrot.lane.b32.xlu0 %v1457, 96
      %v1644 = vpop.permute.xlu0 %1643
      %1645 = vrot.lane.b32.xlu0 %v1460, 96
      %v1646 = vpop.permute.xlu0 %1645
      %1647 = vrot.lane.b32.xlu0 %v1463, 96
      %v1648 = vpop.permute.xlu0 %1647
      %1649 = vrot.lane.b32.xlu0 %v1466, 96
      %v1650 = vpop.permute.xlu0 %1649
      %1651 = vrot.lane.b32.xlu0 %v1469, 96
      %v1652 = vpop.permute.xlu0 %1651
      %1653 = vrot.lane.b32.xlu0 %v1472, 96
      %v1654 = vpop.permute.xlu0 %1653
      %1655 = vrot.lane.b32.xlu0 %v1475, 96
      %v1656 = vpop.permute.xlu0 %1655
      %1665 = vrot.lane.b32.xlu0 %v1365, 32
      %v1666 = vpop.permute.xlu0 %1665
      %1667 = vrot.lane.b32.xlu0 %v1367, 32
      %v1668 = vpop.permute.xlu0 %1667
      %1669 = vrot.lane.b32.xlu0 %v1369, 32
      %v1670 = vpop.permute.xlu0 %1669
      %1671 = vrot.lane.b32.xlu0 %v1371, 32
      %v1672 = vpop.permute.xlu0 %1671
      %1673 = vrot.lane.b32.xlu0 %v1373, 32
      %v1674 = vpop.permute.xlu0 %1673
      %1675 = vrot.lane.b32.xlu0 %v1375, 32
      %v1676 = vpop.permute.xlu0 %1675
      %1677 = vrot.lane.b32.xlu0 %v1377, 32
      %v1678 = vpop.permute.xlu0 %1677
      %1679 = vrot.lane.b32.xlu0 %v1379, 32
      %v1680 = vpop.permute.xlu0 %1679
      %1689 = vrot.lane.b32.xlu0 %v1396, 64
      %v1690 = vpop.permute.xlu0 %1689
      %1691 = vrot.lane.b32.xlu0 %v1401, 64
      %v1692 = vpop.permute.xlu0 %1691
      %1693 = vrot.lane.b32.xlu0 %v1406, 64
      %v1694 = vpop.permute.xlu0 %1693
      %1695 = vrot.lane.b32.xlu0 %v1411, 64
      %v1696 = vpop.permute.xlu0 %1695
      %1697 = vrot.lane.b32.xlu0 %v1416, 64
      %v1698 = vpop.permute.xlu0 %1697
      %1699 = vrot.lane.b32.xlu0 %v1421, 64
      %v1700 = vpop.permute.xlu0 %1699
      %1701 = vrot.lane.b32.xlu0 %v1426, 64
      %v1702 = vpop.permute.xlu0 %1701
      %1703 = vrot.lane.b32.xlu0 %v1513, 64
      %v1704 = vpop.permute.xlu0 %1703
      %1713 = vrot.lane.b32.xlu0 %v1432, 96
      %v1714 = vpop.permute.xlu0 %1713
      %1715 = vrot.lane.b32.xlu0 %v1435, 96
      %v1716 = vpop.permute.xlu0 %1715
      %1717 = vrot.lane.b32.xlu0 %v1438, 96
      %v1718 = vpop.permute.xlu0 %1717
      %1719 = vrot.lane.b32.xlu0 %v1441, 96
      %v1720 = vpop.permute.xlu0 %1719
      %1721 = vrot.lane.b32.xlu0 %v1444, 96
      %v1722 = vpop.permute.xlu0 %1721
      %1723 = vrot.lane.b32.xlu0 %v1447, 96
      %v1724 = vpop.permute.xlu0 %1723
      %1725 = vrot.lane.b32.xlu0 %v1450, 96
      %v1726 = vpop.permute.xlu0 %1725
      %1727 = vrot.lane.b32.xlu0 %v1516, 96
      %v1728 = vpop.permute.xlu0 %1727
      %1737 = vrot.lane.b32.xlu0 %v1483, 32
      %v1738 = vpop.permute.xlu0 %1737
      %1739 = vrot.lane.b32.xlu0 %v1487, 32
      %v1740 = vpop.permute.xlu0 %1739
      %1741 = vrot.lane.b32.xlu0 %v1491, 32
      %v1742 = vpop.permute.xlu0 %1741
      %1743 = vrot.lane.b32.xlu0 %v1495, 32
      %v1744 = vpop.permute.xlu0 %1743
      %1745 = vrot.lane.b32.xlu0 %v1499, 32
      %v1746 = vpop.permute.xlu0 %1745
      %1747 = vrot.lane.b32.xlu0 %v1503, 32
      %v1748 = vpop.permute.xlu0 %1747
      %1749 = vrot.lane.b32.xlu0 %v1507, 32
      %v1750 = vpop.permute.xlu0 %1749
      %1751 = vrot.lane.b32.xlu0 %v1530, 32
      %v1752 = vpop.permute.xlu0 %1751
      %1761 = vrot.lane.b32.xlu0 %v1367, 64
      %v1762 = vpop.permute.xlu0 %1761
      %1763 = vrot.lane.b32.xlu0 %v1369, 64
      %v1764 = vpop.permute.xlu0 %1763
      %1765 = vrot.lane.b32.xlu0 %v1371, 64
      %v1766 = vpop.permute.xlu0 %1765
      %1767 = vrot.lane.b32.xlu0 %v1373, 64
      %v1768 = vpop.permute.xlu0 %1767
      %1769 = vrot.lane.b32.xlu0 %v1375, 64
      %v1770 = vpop.permute.xlu0 %1769
      %1771 = vrot.lane.b32.xlu0 %v1377, 64
      %v1772 = vpop.permute.xlu0 %1771
      %1773 = vrot.lane.b32.xlu0 %v1379, 64
      %v1774 = vpop.permute.xlu0 %1773
      %1775 = vrot.lane.b32.xlu0 %v1381, 64
      %v1776 = vpop.permute.xlu0 %1775
      %1785 = vrot.lane.b32.xlu0 %v1401, 96
      %v1786 = vpop.permute.xlu0 %1785
      %1787 = vrot.lane.b32.xlu0 %v1406, 96
      %v1788 = vpop.permute.xlu0 %1787
      %1789 = vrot.lane.b32.xlu0 %v1411, 96
      %v1790 = vpop.permute.xlu0 %1789
      %1791 = vrot.lane.b32.xlu0 %v1416, 96
      %v1792 = vpop.permute.xlu0 %1791
      %1793 = vrot.lane.b32.xlu0 %v1421, 96
      %v1794 = vpop.permute.xlu0 %1793
      %1795 = vrot.lane.b32.xlu0 %v1426, 96
      %v1796 = vpop.permute.xlu0 %1795
      %1797 = vrot.lane.b32.xlu0 %v1513, 96
      %v1798 = vpop.permute.xlu0 %1797
      %1799 = vrot.lane.b32.xlu0 %v1535, 96
      %v1800 = vpop.permute.xlu0 %1799
      %1809 = vrot.lane.b32.xlu0 %v1460, 32
      %v1810 = vpop.permute.xlu0 %1809
      %1811 = vrot.lane.b32.xlu0 %v1463, 32
      %v1812 = vpop.permute.xlu0 %1811
      %1813 = vrot.lane.b32.xlu0 %v1466, 32
      %v1814 = vpop.permute.xlu0 %1813
      %1815 = vrot.lane.b32.xlu0 %v1469, 32
      %v1816 = vpop.permute.xlu0 %1815
      %1817 = vrot.lane.b32.xlu0 %v1472, 32
      %v1818 = vpop.permute.xlu0 %1817
      %1819 = vrot.lane.b32.xlu0 %v1475, 32
      %v1820 = vpop.permute.xlu0 %1819
      %1821 = vrot.lane.b32.xlu0 %v1526, 32
      %v1822 = vpop.permute.xlu0 %1821
      %1823 = vrot.lane.b32.xlu0 %v1549, 32
      %v1824 = vpop.permute.xlu0 %1823
      %1833 = vrot.lane.b32.xlu0 %v1487, 64
      %v1834 = vpop.permute.xlu0 %1833
      %1835 = vrot.lane.b32.xlu0 %v1491, 64
      %v1836 = vpop.permute.xlu0 %1835
      %1837 = vrot.lane.b32.xlu0 %v1495, 64
      %v1838 = vpop.permute.xlu0 %1837
      %1839 = vrot.lane.b32.xlu0 %v1499, 64
      %v1840 = vpop.permute.xlu0 %1839
      %1841 = vrot.lane.b32.xlu0 %v1503, 64
      %v1842 = vpop.permute.xlu0 %1841
      %1843 = vrot.lane.b32.xlu0 %v1507, 64
      %v1844 = vpop.permute.xlu0 %1843
      %1845 = vrot.lane.b32.xlu0 %v1530, 64
      %v1846 = vpop.permute.xlu0 %1845
      %1847 = vrot.lane.b32.xlu0 %v1552, 64
      %v1848 = vpop.permute.xlu0 %1847
      %1857 = vrot.lane.b32.xlu0 %v1369, 96
      %v1858 = vpop.permute.xlu0 %1857
      %1859 = vrot.lane.b32.xlu0 %v1371, 96
      %v1860 = vpop.permute.xlu0 %1859
      %1861 = vrot.lane.b32.xlu0 %v1373, 96
      %v1862 = vpop.permute.xlu0 %1861
      %1863 = vrot.lane.b32.xlu0 %v1375, 96
      %v1864 = vpop.permute.xlu0 %1863
      %1865 = vrot.lane.b32.xlu0 %v1377, 96
      %v1866 = vpop.permute.xlu0 %1865
      %1867 = vrot.lane.b32.xlu0 %v1379, 96
      %v1868 = vpop.permute.xlu0 %1867
      %1869 = vrot.lane.b32.xlu0 %v1381, 96
      %v1870 = vpop.permute.xlu0 %1869
      %1871 = vrot.lane.b32.xlu0 %v1383, 96
      %v1872 = vpop.permute.xlu0 %1871
      %vm1881 = vcmask 261120
      %v1882 = vsel %vm1881, %v1363, %v1594
      %v1883 = vsel %vm1881, %v1365, %v1596
      %v1884 = vsel %vm1881, %v1367, %v1598
      %v1885 = vsel %vm1881, %v1369, %v1600
      %v1886 = vsel %vm1881, %v1371, %v1602
      %v1887 = vsel %vm1881, %v1373, %v1604
      %v1888 = vsel %vm1881, %v1375, %v1606
      %v1889 = vsel %vm1881, %v1377, %v1608
      %vm1890 = vcmask 523264
      %v1891 = vsel %vm1890, %v1882, %v1618
      %v1892 = vsel %vm1890, %v1883, %v1620
      %v1893 = vsel %vm1890, %v1884, %v1622
      %v1894 = vsel %vm1890, %v1885, %v1624
      %v1895 = vsel %vm1890, %v1886, %v1626
      %v1896 = vsel %vm1890, %v1887, %v1628
      %v1897 = vsel %vm1890, %v1888, %v1630
      %v1898 = vsel %vm1890, %v1889, %v1632
      %vm1899 = vcmask 785408
      %v1900 = vsel %vm1899, %v1891, %v1642
      %v1901 = vsel %vm1899, %v1892, %v1644
      %v1902 = vsel %vm1899, %v1893, %v1646
      %v1903 = vsel %vm1899, %v1894, %v1648
      %v1904 = vsel %vm1899, %v1895, %v1650
      %v1905 = vsel %vm1899, %v1896, %v1652
      %v1906 = vsel %vm1899, %v1897, %v1654
      %v1907 = vsel %vm1899, %v1898, %v1656
      %v1908 = vsel %vm1881, %v1479, %v1666
      %v1909 = vsel %vm1881, %v1483, %v1668
      %v1910 = vsel %vm1881, %v1487, %v1670
      %v1911 = vsel %vm1881, %v1491, %v1672
      %v1912 = vsel %vm1881, %v1495, %v1674
      %v1913 = vsel %vm1881, %v1499, %v1676
      %v1914 = vsel %vm1881, %v1503, %v1678
      %v1915 = vsel %vm1881, %v1507, %v1680
      %v1916 = vsel %vm1890, %v1908, %v1690
      %v1917 = vsel %vm1890, %v1909, %v1692
      %v1918 = vsel %vm1890, %v1910, %v1694
      %v1919 = vsel %vm1890, %v1911, %v1696
      %v1920 = vsel %vm1890, %v1912, %v1698
      %v1921 = vsel %vm1890, %v1913, %v1700
      %v1922 = vsel %vm1890, %v1914, %v1702
      %v1923 = vsel %vm1890, %v1915, %v1704
      %v1924 = vsel %vm1899, %v1916, %v1714
      %v1925 = vsel %vm1899, %v1917, %v1716
      %v1926 = vsel %vm1899, %v1918, %v1718
      %v1927 = vsel %vm1899, %v1919, %v1720
      %v1928 = vsel %vm1899, %v1920, %v1722
      %v1929 = vsel %vm1899, %v1921, %v1724
      %v1930 = vsel %vm1899, %v1922, %v1726
      %v1931 = vsel %vm1899, %v1923, %v1728
      %v1932 = vsel %vm1881, %v1457, %v1738
      %v1933 = vsel %vm1881, %v1460, %v1740
      %v1934 = vsel %vm1881, %v1463, %v1742
      %v1935 = vsel %vm1881, %v1466, %v1744
      %v1936 = vsel %vm1881, %v1469, %v1746
      %v1937 = vsel %vm1881, %v1472, %v1748
      %v1938 = vsel %vm1881, %v1475, %v1750
      %v1939 = vsel %vm1881, %v1526, %v1752
      %v1940 = vsel %vm1890, %v1932, %v1762
      %v1941 = vsel %vm1890, %v1933, %v1764
      %v1942 = vsel %vm1890, %v1934, %v1766
      %v1943 = vsel %vm1890, %v1935, %v1768
      %v1944 = vsel %vm1890, %v1936, %v1770
      %v1945 = vsel %vm1890, %v1937, %v1772
      %v1946 = vsel %vm1890, %v1938, %v1774
      %v1947 = vsel %vm1890, %v1939, %v1776
      %v1948 = vsel %vm1899, %v1940, %v1786
      %v1949 = vsel %vm1899, %v1941, %v1788
      %v1950 = vsel %vm1899, %v1942, %v1790
      %v1951 = vsel %vm1899, %v1943, %v1792
      %v1952 = vsel %vm1899, %v1944, %v1794
      %v1953 = vsel %vm1899, %v1945, %v1796
      %v1954 = vsel %vm1899, %v1946, %v1798
      %v1955 = vsel %vm1899, %v1947, %v1800
      %v1956 = vsel %vm1881, %v1435, %v1810
      %v1957 = vsel %vm1881, %v1438, %v1812
      %v1958 = vsel %vm1881, %v1441, %v1814
      %v1959 = vsel %vm1881, %v1444, %v1816
      %v1960 = vsel %vm1881, %v1447, %v1818
      %v1961 = vsel %vm1881, %v1450, %v1820
      %v1962 = vsel %vm1881, %v1516, %v1822
      %v1963 = vsel %vm1881, %v1545, %v1824
      %v1964 = vsel %vm1890, %v1956, %v1834
      %v1965 = vsel %vm1890, %v1957, %v1836
      %v1966 = vsel %vm1890, %v1958, %v1838
      %v1967 = vsel %vm1890, %v1959, %v1840
      %v1968 = vsel %vm1890, %v1960, %v1842
      %v1969 = vsel %vm1890, %v1961, %v1844
      %v1970 = vsel %vm1890, %v1962, %v1846
      %v1971 = vsel %vm1890, %v1963, %v1848
      %v1972 = vsel %vm1899, %v1964, %v1858
      %v1973 = vsel %vm1899, %v1965, %v1860
      %v1974 = vsel %vm1899, %v1966, %v1862
      %v1975 = vsel %vm1899, %v1967, %v1864
      %v1976 = vsel %vm1899, %v1968, %v1866
      %v1977 = vsel %vm1899, %v1969, %v1868
      %v1978 = vsel %vm1899, %v1970, %v1870
      %v1979 = vsel %vm1899, %v1971, %v1872
      %1980 = vrot.lane.b32.xlu0 %v1438, 32
      %v1981 = vpop.permute.xlu0 %1980
      %1982 = vrot.lane.b32.xlu0 %v1441, 32
      %v1983 = vpop.permute.xlu0 %1982
      %1984 = vrot.lane.b32.xlu0 %v1444, 32
      %v1985 = vpop.permute.xlu0 %1984
      %1986 = vrot.lane.b32.xlu0 %v1447, 32
      %v1987 = vpop.permute.xlu0 %1986
      %1988 = vrot.lane.b32.xlu0 %v1450, 32
      %v1989 = vpop.permute.xlu0 %1988
      %1990 = vrot.lane.b32.xlu0 %v1516, 32
      %v1991 = vpop.permute.xlu0 %1990
      %1992 = vrot.lane.b32.xlu0 %v1545, 32
      %v1993 = vpop.permute.xlu0 %1992
      %1994 = vrot.lane.b32.xlu0 %v1568, 32
      %v1995 = vpop.permute.xlu0 %1994
      %2004 = vrot.lane.b32.xlu0 %v1463, 64
      %v2005 = vpop.permute.xlu0 %2004
      %2006 = vrot.lane.b32.xlu0 %v1466, 64
      %v2007 = vpop.permute.xlu0 %2006
      %2008 = vrot.lane.b32.xlu0 %v1469, 64
      %v2009 = vpop.permute.xlu0 %2008
      %2010 = vrot.lane.b32.xlu0 %v1472, 64
      %v2011 = vpop.permute.xlu0 %2010
      %2012 = vrot.lane.b32.xlu0 %v1475, 64
      %v2013 = vpop.permute.xlu0 %2012
      %2014 = vrot.lane.b32.xlu0 %v1526, 64
      %v2015 = vpop.permute.xlu0 %2014
      %2016 = vrot.lane.b32.xlu0 %v1549, 64
      %v2017 = vpop.permute.xlu0 %2016
      %2018 = vrot.lane.b32.xlu0 %v1571, 64
      %v2019 = vpop.permute.xlu0 %2018
      %2028 = vrot.lane.b32.xlu0 %v1491, 96
      %v2029 = vpop.permute.xlu0 %2028
      %2030 = vrot.lane.b32.xlu0 %v1495, 96
      %v2031 = vpop.permute.xlu0 %2030
      %2032 = vrot.lane.b32.xlu0 %v1499, 96
      %v2033 = vpop.permute.xlu0 %2032
      %2034 = vrot.lane.b32.xlu0 %v1503, 96
      %v2035 = vpop.permute.xlu0 %2034
      %2036 = vrot.lane.b32.xlu0 %v1507, 96
      %v2037 = vpop.permute.xlu0 %2036
      %2038 = vrot.lane.b32.xlu0 %v1530, 96
      %v2039 = vpop.permute.xlu0 %2038
      %2040 = vrot.lane.b32.xlu0 %v1552, 96
      %v2041 = vpop.permute.xlu0 %2040
      %2042 = vrot.lane.b32.xlu0 %v1574, 96
      %v2043 = vpop.permute.xlu0 %2042
      %2052 = vrot.lane.b32.xlu0 %v1513, 32
      %v2053 = vpop.permute.xlu0 %2052
      %2054 = vrot.lane.b32.xlu0 %v1535, 32
      %v2055 = vpop.permute.xlu0 %2054
      %2056 = vrot.lane.b32.xlu0 %v1564, 32
      %v2057 = vpop.permute.xlu0 %2056
      %2058 = vrot.lane.b32.xlu0 %v1579, 32
      %v2059 = vpop.permute.xlu0 %2058
      %2064 = vrot.lane.b32.xlu0 %v1516, 64
      %v2065 = vpop.permute.xlu0 %2064
      %2066 = vrot.lane.b32.xlu0 %v1545, 64
      %v2067 = vpop.permute.xlu0 %2066
      %2068 = vrot.lane.b32.xlu0 %v1568, 64
      %v2069 = vpop.permute.xlu0 %2068
      %2070 = vrot.lane.b32.xlu0 %v1582, 64
      %v2071 = vpop.permute.xlu0 %2070
      %2076 = vrot.lane.b32.xlu0 %v1526, 96
      %v2077 = vpop.permute.xlu0 %2076
      %2078 = vrot.lane.b32.xlu0 %v1549, 96
      %v2079 = vpop.permute.xlu0 %2078
      %2080 = vrot.lane.b32.xlu0 %v1571, 96
      %v2081 = vpop.permute.xlu0 %2080
      %2082 = vrot.lane.b32.xlu0 %v1585, 96
      %v2083 = vpop.permute.xlu0 %2082
      %v2088 = vsel %vm1881, %v1406, %v1981
      %v2089 = vsel %vm1881, %v1411, %v1983
      %v2090 = vsel %vm1881, %v1416, %v1985
      %v2091 = vsel %vm1881, %v1421, %v1987
      %v2092 = vsel %vm1881, %v1426, %v1989
      %v2093 = vsel %vm1881, %v1513, %v1991
      %v2094 = vsel %vm1881, %v1535, %v1993
      %v2095 = vsel %vm1881, %v1564, %v1995
      %v2096 = vsel %vm1890, %v2088, %v2005
      %v2097 = vsel %vm1890, %v2089, %v2007
      %v2098 = vsel %vm1890, %v2090, %v2009
      %v2099 = vsel %vm1890, %v2091, %v2011
      %v2100 = vsel %vm1890, %v2092, %v2013
      %v2101 = vsel %vm1890, %v2093, %v2015
      %v2102 = vsel %vm1890, %v2094, %v2017
      %v2103 = vsel %vm1890, %v2095, %v2019
      %v2104 = vsel %vm1899, %v2096, %v2029
      %v2105 = vsel %vm1899, %v2097, %v2031
      %v2106 = vsel %vm1899, %v2098, %v2033
      %v2107 = vsel %vm1899, %v2099, %v2035
      %v2108 = vsel %vm1899, %v2100, %v2037
      %v2109 = vsel %vm1899, %v2101, %v2039
      %v2110 = vsel %vm1899, %v2102, %v2041
      %v2111 = vsel %vm1899, %v2103, %v2043
      %v2112 = vsel %vm1881, %v1379, %v2053
      %v2113 = vsel %vm1881, %v1381, %v2055
      %v2114 = vsel %vm1881, %v1383, %v2057
      %v2115 = vsel %vm1881, %v1385, %v2059
      %v2116 = vsel %vm1890, %v2112, %v2065
      %v2117 = vsel %vm1890, %v2113, %v2067
      %v2118 = vsel %vm1890, %v2114, %v2069
      %v2119 = vsel %vm1890, %v2115, %v2071
      %v2120 = vsel %vm1899, %v2116, %v2077
      %v2121 = vsel %vm1899, %v2117, %v2079
      %v2122 = vsel %vm1899, %v2118, %v2081
      %v2123 = vsel %vm1899, %v2119, %v2083
      %v2124 = vpack.c.bf16 %v1901, %v1900
      %v2125 = vpack.c.bf16 %v1925, %v1924
      %v2126 = vpack.c.bf16 %v1949, %v1948
      %v2127 = vpack.c.bf16 %v1973, %v1972
      %v2128 = vpack.c.bf16 %v2105, %v2104
      %v2129 = vpack.c.bf16 %v1905, %v1904
      %v2130 = vpack.c.bf16 %v1499, %v1495
      %v2131 = vpack.c.bf16 %v1903, %v1902
      %v2132 = vpack.c.bf16 %v1927, %v1926
      %v2133 = vpack.c.bf16 %v1951, %v1950
      %v2134 = vpack.c.bf16 %v1975, %v1974
      %v2135 = vpack.c.bf16 %v2107, %v2106
      %v2136 = vpack.c.bf16 %v1907, %v1906
      %v2137 = vpack.c.bf16 %v1507, %v1503
      %v2138 = vpack.c.bf16 %v1929, %v1928
      %v2139 = vpack.c.bf16 %v1953, %v1952
      %v2140 = vpack.c.bf16 %v1977, %v1976
      %v2141 = vpack.c.bf16 %v2109, %v2108
      %v2142 = vpack.c.bf16 %v2121, %v2120
      %v2143 = vpack.c.bf16 %v1552, %v1530
      %v2144 = vpack.c.bf16 %v1931, %v1930
      %v2145 = vpack.c.bf16 %v1955, %v1954
      %v2146 = vpack.c.bf16 %v1979, %v1978
      %v2147 = vpack.c.bf16 %v2111, %v2110
      %v2148 = vpack.c.bf16 %v2123, %v2122
      %v2149 = vpack.c.bf16 %v1591, %v1574
      %v2150 = vld [vmem:[%s3] sm:$0xf]
      %v2151 = vld [vmem:[%s3 + $0x4] sm:$0xf]
      %v2152 = vld [vmem:[%s3 + $0x8] sm:$0xf]
      %v2153 = vld [vmem:[%s3 + $0xc] sm:$0xf]
      %v2154 = vld [vmem:[%s3 + $0x10] sm:$0xf]
      %v2155 = vld [vmem:[%s3 + $0x14] sm:$0xf]
      %v2156 = vld [vmem:[%s3 + $0x18] sm:$0xf]
      %v2157 = vld [vmem:[%s3 + $0x1c] sm:$0xf]
      %v2158 = vld [vmem:[%s3 + $0x20] sm:$0xf]
      %v2159 = vld [vmem:[%s3 + $0x24] sm:$0xf]
      %v2160 = vld [vmem:[%s3 + $0x28] sm:$0xf]
      %v2161 = vld [vmem:[%s3 + $0x2c] sm:$0xf]
      %v2162 = vld [vmem:[%s3 + $0x30] sm:$0xf]
      %v2163 = vld [vmem:[%s3 + $0x34] sm:$0xf]
      %v2164 = vld [vmem:[%s3 + $0x38] sm:$0xf]
      %v2165 = vld [vmem:[%s3 + $0x3c] sm:$0xf]
      %v2166 = vld [vmem:[%s3 + $0x40] sm:$0xf]
      %v2167 = vld [vmem:[%s3 + $0x44] sm:$0xf]
      %v2168 = vld [vmem:[%s3 + $0x48] sm:$0xf]
      %v2169 = vld [vmem:[%s3 + $0x4c] sm:$0xf]
      %v2170 = vld [vmem:[%s3 + $0x50] sm:$0xf]
      %v2171 = vld [vmem:[%s3 + $0x54] sm:$0xf]
      %v2172 = vld [vmem:[%s3 + $0x58] sm:$0xf]
      %v2173 = vld [vmem:[%s3 + $0x5c] sm:$0xf]
      %v2174 = vld [vmem:[%s3 + $0x60] sm:$0xf]
      %v2175 = vld [vmem:[%s3 + $0x64] sm:$0xf]
      %v2176 = vld [vmem:[%s3 + $0x68] sm:$0xf]
      %v2177 = vld [vmem:[%s3 + $0x6c] sm:$0xf]
      %v2178 = vld [vmem:[%s3 + $0x70] sm:$0xf]
      %v2179 = vld [vmem:[%s3 + $0x74] sm:$0xf]
      %v2180 = vld [vmem:[%s3 + $0x78] sm:$0xf]
      %v2181 = vld [vmem:[%s3 + $0x7c] sm:$0xf]
      %v2182 = vld [vmem:[%s3 + $0x80] sm:$0xf]
      %v2183 = vld [vmem:[%s3 + $0x84] sm:$0xf]
      %v2184 = vld [vmem:[%s3 + $0x88] sm:$0xf]
      %v2185 = vld [vmem:[%s3 + $0x8c] sm:$0xf]
      %v2186 = vld [vmem:[%s3 + $0x90] sm:$0xf]
      %v2187 = vld [vmem:[%s3 + $0x94] sm:$0xf]
      %v2188 = vld [vmem:[%s3 + $0x98] sm:$0xf]
      %v2189 = vld [vmem:[%s3 + $0x9c] sm:$0xf]
      %v2190 = vld [vmem:[%s3 + $0xa0] sm:$0xf]
      %v2191 = vld [vmem:[%s3 + $0xa4] sm:$0xf]
      %v2192 = vld [vmem:[%s3 + $0xa8] sm:$0xf]
      %v2193 = vld [vmem:[%s3 + $0xac] sm:$0xf]
      %v2194 = vld [vmem:[%s3 + $0xb0] sm:$0xf]
      %v2195 = vld [vmem:[%s3 + $0xb4] sm:$0xf]
      %v2196 = vld [vmem:[%s3 + $0xb8] sm:$0xf]
      %v2197 = vld [vmem:[%s3 + $0xbc] sm:$0xf]
      %v2198 = vld [vmem:[%s3 + $0xc0] sm:$0xf]
      %v2199 = vld [vmem:[%s3 + $0xc4] sm:$0xf]
      %v2200 = vld [vmem:[%s3 + $0xc8] sm:$0xf]
      %v2201 = vld [vmem:[%s3 + $0xcc] sm:$0xf]
      %v2202 = vld [vmem:[%s3 + $0xd0] sm:$0xf]
      %v2203 = vld [vmem:[%s3 + $0xd4] sm:$0xf]
      %v2204 = vld [vmem:[%s3 + $0xd8] sm:$0xf]
      %v2205 = vld [vmem:[%s3 + $0xdc] sm:$0xf]
      %v2206 = vld [vmem:[%s3 + $0xe0] sm:$0xf]
      %v2207 = vld [vmem:[%s3 + $0xe4] sm:$0xf]
      %v2208 = vld [vmem:[%s3 + $0xe8] sm:$0xf]
      %v2209 = vld [vmem:[%s3 + $0xec] sm:$0xf]
      %v2210 = vld [vmem:[%s3 + $0xf0] sm:$0xf]
      %v2211 = vld [vmem:[%s3 + $0xf4] sm:$0xf]
      %v2212 = vld [vmem:[%s3 + $0xf8] sm:$0xf]
      %v2213 = vld [vmem:[%s3 + $0xfc] sm:$0xf]
      %v2214 = vld [vmem:[%s3 + $0x100] sm:$0xf]
      %v2215 = vld [vmem:[%s3 + $0x104] sm:$0xf]
      %v2216 = vld [vmem:[%s3 + $0x108] sm:$0xf]
      %v2217 = vld [vmem:[%s3 + $0x10c] sm:$0xf]
      %v2218 = vld [vmem:[%s3 + $0x110] sm:$0xf]
      %v2219 = vld [vmem:[%s3 + $0x114] sm:$0xf]
      %v2220 = vld [vmem:[%s3 + $0x118] sm:$0xf]
      %v2221 = vld [vmem:[%s3 + $0x11c] sm:$0xf]
      %v2222 = vld [vmem:[%s3 + $0x120] sm:$0xf]
      %v2223 = vld [vmem:[%s3 + $0x124] sm:$0xf]
      %v2224 = vld [vmem:[%s3 + $0x128] sm:$0xf]
      %v2225 = vld [vmem:[%s3 + $0x12c] sm:$0xf]
      %v2226 = vld [vmem:[%s3 + $0x130] sm:$0xf]
      %v2227 = vld [vmem:[%s3 + $0x134] sm:$0xf]
      %v2228 = vld [vmem:[%s3 + $0x138] sm:$0xf]
      %v2229 = vld [vmem:[%s3 + $0x13c] sm:$0xf]
      %v2230 = vld [vmem:[%s3 + $0x140] sm:$0xf]
      %v2231 = vld [vmem:[%s3 + $0x144] sm:$0xf]
      %v2232 = vld [vmem:[%s3 + $0x148] sm:$0xf]
      %v2233 = vld [vmem:[%s3 + $0x14c] sm:$0xf]
      %v2234 = vld [vmem:[%s3 + $0x150] sm:$0xf]
      %v2235 = vld [vmem:[%s3 + $0x154] sm:$0xf]
      %v2236 = vld [vmem:[%s3 + $0x158] sm:$0xf]
      %v2237 = vld [vmem:[%s3 + $0x15c] sm:$0xf]
      %v2238 = vld [vmem:[%s3 + $0x160] sm:$0xf]
      %v2239 = vld [vmem:[%s3 + $0x164] sm:$0xf]
      %v2240 = vld [vmem:[%s3 + $0x168] sm:$0xf]
      %v2241 = vld [vmem:[%s3 + $0x16c] sm:$0xf]
      %v2242 = vld [vmem:[%s3 + $0x170] sm:$0xf]
      %v2243 = vld [vmem:[%s3 + $0x174] sm:$0xf]
      %v2244 = vld [vmem:[%s3 + $0x178] sm:$0xf]
      %v2245 = vld [vmem:[%s3 + $0x17c] sm:$0xf]
      %v2246 = vld [vmem:[%s3 + $0x180] sm:$0xf]
      %v2247 = vld [vmem:[%s3 + $0x184] sm:$0xf]
      %v2248 = vld [vmem:[%s3 + $0x188] sm:$0xf]
      %v2249 = vld [vmem:[%s3 + $0x18c] sm:$0xf]
      %v2250 = vld [vmem:[%s4] sm:$0x1]
      %v2252 = vlaneseq
      %v2253 = vshrl.u32 %v2252, 7
      %v2254 = vsub.s32 0, %v2253
      %v2255 = vrot.slane %v2250, %v2254
      %v2357 = vunpack.c.l.b16 %v2150
      %v2358 = vunpack.c.l.b16 %v2151
      %v2359 = vunpack.c.l.b16 %v2152
      %v2360 = vunpack.c.l.b16 %v2153
      %v2361 = vunpack.c.l.b16 %v2154
      %v2362 = vunpack.c.l.b16 %v2155
      %v2363 = vunpack.c.l.b16 %v2156
      %v2364 = vunpack.c.l.b16 %v2157
      %v2365 = vunpack.c.l.b16 %v2158
      %v2366 = vunpack.c.l.b16 %v2159
      %v2367 = vunpack.c.l.b16 %v2160
      %v2368 = vunpack.c.l.b16 %v2161
      %v2369 = vunpack.c.l.b16 %v2162
      %v2370 = vunpack.c.l.b16 %v2163
      %v2371 = vunpack.c.l.b16 %v2164
      %v2372 = vunpack.c.l.b16 %v2165
      %v2373 = vunpack.c.l.b16 %v2166
      %v2374 = vunpack.c.l.b16 %v2167
      %v2375 = vunpack.c.l.b16 %v2168
      %v2376 = vunpack.c.l.b16 %v2169
      %v2377 = vunpack.c.l.b16 %v2170
      %v2378 = vunpack.c.l.b16 %v2171
      %v2379 = vunpack.c.l.b16 %v2172
      %v2380 = vunpack.c.l.b16 %v2173
      %v2381 = vunpack.c.l.b16 %v2174
      %v2382 = vunpack.c.l.b16 %v2175
      %v2383 = vunpack.c.l.b16 %v2176
      %v2384 = vunpack.c.l.b16 %v2177
      %v2385 = vunpack.c.l.b16 %v2178
      %v2386 = vunpack.c.l.b16 %v2179
      %v2387 = vunpack.c.l.b16 %v2180
      %v2388 = vunpack.c.l.b16 %v2181
      %v2389 = vunpack.c.l.b16 %v2182
      %v2390 = vunpack.c.l.b16 %v2183
      %v2391 = vunpack.c.l.b16 %v2184
      %v2392 = vunpack.c.l.b16 %v2185
      %v2393 = vunpack.c.l.b16 %v2186
      %v2394 = vunpack.c.l.b16 %v2187
      %v2395 = vunpack.c.l.b16 %v2188
      %v2396 = vunpack.c.l.b16 %v2189
      %v2397 = vunpack.c.l.b16 %v2190
      %v2398 = vunpack.c.l.b16 %v2191
      %v2399 = vunpack.c.l.b16 %v2192
      %v2400 = vunpack.c.l.b16 %v2193
      %v2401 = vunpack.c.l.b16 %v2194
      %v2402 = vunpack.c.l.b16 %v2195
      %v2403 = vunpack.c.l.b16 %v2196
      %v2404 = vunpack.c.l.b16 %v2197
      %v2405 = vunpack.c.l.b16 %v2198
      %v2406 = vunpack.c.l.b16 %v2199
      %v2407 = vunpack.c.l.b16 %v2200
      %v2408 = vunpack.c.l.b16 %v2201
      %v2409 = vunpack.c.l.b16 %v2202
      %v2410 = vunpack.c.l.b16 %v2203
      %v2411 = vunpack.c.l.b16 %v2204
      %v2412 = vunpack.c.l.b16 %v2205
      %v2413 = vunpack.c.l.b16 %v2206
      %v2414 = vunpack.c.l.b16 %v2207
      %v2415 = vunpack.c.l.b16 %v2208
      %v2416 = vunpack.c.l.b16 %v2209
      %v2417 = vunpack.c.l.b16 %v2210
      %v2418 = vunpack.c.l.b16 %v2211
      %v2419 = vunpack.c.l.b16 %v2212
      %v2420 = vunpack.c.l.b16 %v2213
      %v2421 = vunpack.c.l.b16 %v2214
      %v2422 = vunpack.c.l.b16 %v2215
      %v2423 = vunpack.c.l.b16 %v2216
      %v2424 = vunpack.c.l.b16 %v2217
      %v2425 = vunpack.c.l.b16 %v2218
      %v2426 = vunpack.c.l.b16 %v2219
      %v2427 = vunpack.c.l.b16 %v2220
      %v2428 = vunpack.c.l.b16 %v2221
      %v2429 = vunpack.c.l.b16 %v2222
      %v2430 = vunpack.c.l.b16 %v2223
      %v2431 = vunpack.c.l.b16 %v2224
      %v2432 = vunpack.c.l.b16 %v2225
      %v2433 = vunpack.c.l.b16 %v2226
      %v2434 = vunpack.c.l.b16 %v2227
      %v2435 = vunpack.c.l.b16 %v2228
      %v2436 = vunpack.c.l.b16 %v2229
      %v2437 = vunpack.c.l.b16 %v2230
      %v2438 = vunpack.c.l.b16 %v2231
      %v2439 = vunpack.c.l.b16 %v2232
      %v2440 = vunpack.c.l.b16 %v2233
      %v2441 = vunpack.c.l.b16 %v2234
      %v2442 = vunpack.c.l.b16 %v2235
      %v2443 = vunpack.c.l.b16 %v2236
      %v2444 = vunpack.c.l.b16 %v2237
      %v2445 = vunpack.c.l.b16 %v2238
      %v2446 = vunpack.c.l.b16 %v2239
      %v2447 = vunpack.c.l.b16 %v2240
      %v2448 = vunpack.c.l.b16 %v2241
      %v2449 = vunpack.c.l.b16 %v2242
      %v2450 = vunpack.c.l.b16 %v2243
      %v2451 = vunpack.c.l.b16 %v2244
      %v2452 = vunpack.c.l.b16 %v2245
      %v2453 = vunpack.c.l.b16 %v2246
      %v2454 = vunpack.c.l.b16 %v2247
      %v2455 = vunpack.c.l.b16 %v2248
      %v2456 = vunpack.c.l.b16 %v2249
      %v2457 = vpack.c.b16 %v2358, %v2357
      %v2458 = vpack.c.b16 %v2360, %v2359
      %v2459 = vpack.c.b16 %v2362, %v2361
      %v2460 = vpack.c.b16 %v2364, %v2363
      %v2461 = vpack.c.b16 %v2366, %v2365
      %v2462 = vpack.c.b16 %v2368, %v2367
      %v2463 = vpack.c.b16 %v2370, %v2369
      %v2464 = vpack.c.b16 %v2372, %v2371
      %v2465 = vpack.c.b16 %v2374, %v2373
      %v2466 = vpack.c.b16 %v2376, %v2375
      %v2467 = vpack.c.b16 %v2378, %v2377
      %v2468 = vpack.c.b16 %v2380, %v2379
      %v2469 = vpack.c.b16 %v2382, %v2381
      %v2470 = vpack.c.b16 %v2384, %v2383
      %v2471 = vpack.c.b16 %v2386, %v2385
      %v2472 = vpack.c.b16 %v2388, %v2387
      %v2473 = vpack.c.b16 %v2390, %v2389
      %v2474 = vpack.c.b16 %v2392, %v2391
      %v2475 = vpack.c.b16 %v2394, %v2393
      %v2476 = vpack.c.b16 %v2396, %v2395
      %v2477 = vpack.c.b16 %v2398, %v2397
      %v2478 = vpack.c.b16 %v2400, %v2399
      %v2479 = vpack.c.b16 %v2402, %v2401
      %v2480 = vpack.c.b16 %v2404, %v2403
      %v2481 = vpack.c.b16 %v2406, %v2405
      %v2482 = vpack.c.b16 %v2408, %v2407
      %v2483 = vpack.c.b16 %v2410, %v2409
      %v2484 = vpack.c.b16 %v2412, %v2411
      %v2485 = vpack.c.b16 %v2414, %v2413
      %v2486 = vpack.c.b16 %v2416, %v2415
      %v2487 = vpack.c.b16 %v2418, %v2417
      %v2488 = vpack.c.b16 %v2420, %v2419
      %v2489 = vpack.c.b16 %v2422, %v2421
      %v2490 = vpack.c.b16 %v2424, %v2423
      %v2491 = vpack.c.b16 %v2426, %v2425
      %v2492 = vpack.c.b16 %v2428, %v2427
      %v2493 = vpack.c.b16 %v2430, %v2429
      %v2494 = vpack.c.b16 %v2432, %v2431
      %v2495 = vpack.c.b16 %v2434, %v2433
      %v2496 = vpack.c.b16 %v2436, %v2435
      %v2497 = vpack.c.b16 %v2438, %v2437
      %v2498 = vpack.c.b16 %v2440, %v2439
      %v2499 = vpack.c.b16 %v2442, %v2441
      %v2500 = vpack.c.b16 %v2444, %v2443
      %v2501 = vpack.c.b16 %v2446, %v2445
      %v2502 = vpack.c.b16 %v2448, %v2447
      %v2503 = vpack.c.b16 %v2450, %v2449
      %v2504 = vpack.c.b16 %v2452, %v2451
      %v2505 = vpack.c.b16 %v2454, %v2453
      %v2506 = vpack.c.b16 %v2456, %v2455
      %v2558 = vsel %vm1881, %v2130, 0
      %v2561 = vsel %vm1881, %v2137, 0
      %v2564 = vsel %vm1881, %v2143, 0
      %v2567 = vsel %vm1881, %v2149, 0
      %2569 = vmatprep.subr.bf16.mxu0 0
      %2570 = vmatpush1.bf16.msra.mxu0 %v2457
      %2571 = vmatprep.subr.bf16.mxu0 0
      %2572 = vmatpush1.bf16.msra.mxu0 %v2458
      %2573 = vmatprep.subr.bf16.mxu0 0
      %2574 = vmatpush1.bf16.msra.mxu0 %v2459
      %2575 = vmatprep.subr.bf16.mxu0 0
      %2576 = vmatpush1.bf16.msra.mxu0 %v2460
      %2577 = vmatprep.subr.bf16.mxu0 0
      %2578 = vmatpush1.bf16.msra.mxu0 %v2461
      %2579 = vmatprep.subr.bf16.mxu0 0
      %2580 = vmatpush1.bf16.msra.mxu0 %v2462
      %2581 = vmatprep.subr.bf16.mxu0 0
      %2582 = vmatpush1.bf16.msra.mxu0 %v2463
      %2583 = vmatprep.subr.bf16.mxu0 0
      %2584 = vmatpush1.bf16.msra.mxu0 %v2464
      %2585 = vmatprep.subr.bf16.mxu0 0
      %2586 = vmatpush1.bf16.msra.mxu0 %v2465
      %2587 = vmatprep.subr.bf16.mxu0 0
      %2588 = vmatpush1.bf16.msra.mxu0 %v2466
      %2589 = vmatprep.subr.bf16.mxu0 0
      %2590 = vmatpush1.bf16.msra.mxu0 %v2467
      %2591 = vmatprep.subr.bf16.mxu0 0
      %2592 = vmatpush1.bf16.msra.mxu0 %v2468
      %2593 = vmatprep.subr.bf16.mxu0 0
      %2594 = vmatpush1.bf16.msra.mxu0 %v2469
      %2595 = vmatprep.subr.bf16.mxu0 0
      %2596 = vmatpush1.bf16.msra.mxu0 %v2470
      %2597 = vmatprep.subr.bf16.mxu0 0
      %2598 = vmatpush1.bf16.msra.mxu0 %v2471
      %2599 = vmatprep.subr.bf16.mxu0 0
      %2600 = vmatpush1.bf16.msra.mxu0 %v2472
      %2601 = vmatprep.mubr.bf16.mxu0 %v2125
      %2602 = vmatmul.mubr.bf16.gmra.mrb[0].mxu0 %v2124
      %v2603 = vpop.f32.mrb[0].mxu0
      %v2604 = vadd.f32 %v2255, %v2603
      %v2605 = vpop.f32.mrb[0].mxu0
      %v2606 = vpop.f32.mrb[0].mxu0
      %v2607 = vadd.f32 %v2255, %v2606
      %v2608 = vpop.f32.mrb[0].mxu0
      %2609 = vmatprep.mubr.bf16.mxu0 %v2132
      %2610 = vmatmul.mubr.bf16.gmra.mrb[0].mxu0 %v2131
      %v2611 = vpop.f32.mrb[0].mxu0
      %v2612 = vadd.f32 %v2255, %v2611
      %v2613 = vpop.f32.mrb[0].mxu0
      %v2614 = vpop.f32.mrb[0].mxu0
      %v2615 = vadd.f32 %v2255, %v2614
      %v2616 = vpop.f32.mrb[0].mxu0
      %2617 = vmatprep.mubr.bf16.mxu0 %v2138
      %2618 = vmatmul.mubr.bf16.gmra.mrb[0].mxu0 %v2129
      %v2619 = vpop.f32.mrb[0].mxu0
      %v2620 = vadd.f32 %v2255, %v2619
      %v2621 = vpop.f32.mrb[0].mxu0
      %v2622 = vpop.f32.mrb[0].mxu0
      %v2623 = vadd.f32 %v2255, %v2622
      %v2624 = vpop.f32.mrb[0].mxu0
      %2625 = vmatprep.mubr.bf16.mxu0 %v2144
      %2626 = vmatmul.mubr.bf16.gmra.mrb[0].mxu0 %v2136
      %v2627 = vpop.f32.mrb[0].mxu0
      %v2628 = vadd.f32 %v2255, %v2627
      %v2629 = vpop.f32.mrb[0].mxu0
      %v2630 = vpop.f32.mrb[0].mxu0
      %v2631 = vadd.f32 %v2255, %v2630
      %v2632 = vpop.f32.mrb[0].mxu0
      %2633 = vdwg.mxu0
      %2634 = vmatprep.subr.bf16.mxu0 0
      %2635 = vmatpush1.bf16.msra.mxu0 %v2473
      %2636 = vmatprep.subr.bf16.mxu0 0
      %2637 = vmatpush1.bf16.msra.mxu0 %v2474
      %2638 = vmatprep.subr.bf16.mxu0 0
      %2639 = vmatpush1.bf16.msra.mxu0 %v2475
      %2640 = vmatprep.subr.bf16.mxu0 0
      %2641 = vmatpush1.bf16.msra.mxu0 %v2476
      %2642 = vmatprep.subr.bf16.mxu0 0
      %2643 = vmatpush1.bf16.msra.mxu0 %v2477
      %2644 = vmatprep.subr.bf16.mxu0 0
      %2645 = vmatpush1.bf16.msra.mxu0 %v2478
      %2646 = vmatprep.subr.bf16.mxu0 0
      %2647 = vmatpush1.bf16.msra.mxu0 %v2479
      %2648 = vmatprep.subr.bf16.mxu0 0
      %2649 = vmatpush1.bf16.msra.mxu0 %v2480
      %2650 = vmatprep.subr.bf16.mxu0 0
      %2651 = vmatpush1.bf16.msra.mxu0 %v2481
      %2652 = vmatprep.subr.bf16.mxu0 0
      %2653 = vmatpush1.bf16.msra.mxu0 %v2482
      %2654 = vmatprep.subr.bf16.mxu0 0
      %2655 = vmatpush1.bf16.msra.mxu0 %v2483
      %2656 = vmatprep.subr.bf16.mxu0 0
      %2657 = vmatpush1.bf16.msra.mxu0 %v2484
      %2658 = vmatprep.subr.bf16.mxu0 0
      %2659 = vmatpush1.bf16.msra.mxu0 %v2485
      %2660 = vmatprep.subr.bf16.mxu0 0
      %2661 = vmatpush1.bf16.msra.mxu0 %v2486
      %2662 = vmatprep.subr.bf16.mxu0 0
      %2663 = vmatpush1.bf16.msra.mxu0 %v2487
      %2664 = vmatprep.subr.bf16.mxu0 0
      %2665 = vmatpush1.bf16.msra.mxu0 %v2488
      %2666 = vmatprep.mubr.bf16.mxu0 %v2127
      %2667 = vmatmul.mubr.bf16.gmra.mrb[0].mxu0 %v2126
      %v2668 = vpop.f32.mrb[0].mxu0
      %v2669 = vadd.f32 %v2604, %v2668
      %v2670 = vpop.f32.mrb[0].mxu0
      %v2671 = vpop.f32.mrb[0].mxu0
      %v2672 = vadd.f32 %v2607, %v2671
      %v2673 = vpop.f32.mrb[0].mxu0
      %2674 = vmatprep.mubr.bf16.mxu0 %v2134
      %2675 = vmatmul.mubr.bf16.gmra.mrb[0].mxu0 %v2133
      %v2676 = vpop.f32.mrb[0].mxu0
      %v2677 = vadd.f32 %v2612, %v2676
      %v2678 = vpop.f32.mrb[0].mxu0
      %v2679 = vpop.f32.mrb[0].mxu0
      %v2680 = vadd.f32 %v2615, %v2679
      %v2681 = vpop.f32.mrb[0].mxu0
      %2682 = vmatprep.mubr.bf16.mxu0 %v2140
      %2683 = vmatmul.mubr.bf16.gmra.mrb[0].mxu0 %v2139
      %v2684 = vpop.f32.mrb[0].mxu0
      %v2685 = vadd.f32 %v2620, %v2684
      %v2686 = vpop.f32.mrb[0].mxu0
      %v2687 = vpop.f32.mrb[0].mxu0
      %v2688 = vadd.f32 %v2623, %v2687
      %v2689 = vpop.f32.mrb[0].mxu0
      %2690 = vmatprep.mubr.bf16.mxu0 %v2146
      %2691 = vmatmul.mubr.bf16.gmra.mrb[0].mxu0 %v2145
      %v2692 = vpop.f32.mrb[0].mxu0
      %v2693 = vadd.f32 %v2628, %v2692
      %v2694 = vpop.f32.mrb[0].mxu0
      %v2695 = vpop.f32.mrb[0].mxu0
      %v2696 = vadd.f32 %v2631, %v2695
      %v2697 = vpop.f32.mrb[0].mxu0
      %2698 = vdwg.mxu0
      %2699 = vmatprep.subr.bf16.mxu0 0
      %2700 = vmatpush1.bf16.msra.mxu0 %v2489
      %2701 = vmatprep.subr.bf16.mxu0 0
      %2702 = vmatpush1.bf16.msra.mxu0 %v2490
      %2703 = vmatprep.subr.bf16.mxu0 0
      %2704 = vmatpush1.bf16.msra.mxu0 %v2491
      %2705 = vmatprep.subr.bf16.mxu0 0
      %2706 = vmatpush1.bf16.msra.mxu0 %v2492
      %2707 = vmatprep.subr.bf16.mxu0 0
      %2708 = vmatpush1.bf16.msra.mxu0 %v2493
      %2709 = vmatprep.subr.bf16.mxu0 0
      %2710 = vmatpush1.bf16.msra.mxu0 %v2494
      %2711 = vmatprep.subr.bf16.mxu0 0
      %2712 = vmatpush1.bf16.msra.mxu0 %v2495
      %2713 = vmatprep.subr.bf16.mxu0 0
      %2714 = vmatpush1.bf16.msra.mxu0 %v2496
      %2715 = vmatprep.subr.bf16.mxu0 0
      %2716 = vmatpush1.bf16.msra.mxu0 %v2497
      %2717 = vmatprep.subr.bf16.mxu0 0
      %2718 = vmatpush1.bf16.msra.mxu0 %v2498
      %2719 = vmatprep.subr.bf16.mxu0 0
      %2720 = vmatpush1.bf16.msra.mxu0 %v2499
      %2721 = vmatprep.subr.bf16.mxu0 0
      %2722 = vmatpush1.bf16.msra.mxu0 %v2500
      %2723 = vmatprep.subr.bf16.mxu0 0
      %2724 = vmatpush1.bf16.msra.mxu0 %v2501
      %2725 = vmatprep.subr.bf16.mxu0 0
      %2726 = vmatpush1.bf16.msra.mxu0 %v2502
      %2727 = vmatprep.subr.bf16.mxu0 0
      %2728 = vmatpush1.bf16.msra.mxu0 %v2503
      %2729 = vmatprep.subr.bf16.mxu0 0
      %2730 = vmatpush1.bf16.msra.mxu0 %v2504
      %2731 = vmatprep.mubr.bf16.mxu0 %v2129
      %2732 = vmatmul.mubr.bf16.gmra.mrb[0].mxu0 %v2128
      %v2733 = vpop.f32.mrb[0].mxu0
      %v2734 = vadd.f32 %v2669, %v2733
      %v2735 = vpop.f32.mrb[0].mxu0
      %v2736 = vpop.f32.mrb[0].mxu0
      %v2737 = vadd.f32 %v2672, %v2736
      %v2738 = vpop.f32.mrb[0].mxu0
      %2739 = vmatprep.mubr.bf16.mxu0 %v2136
      %2740 = vmatmul.mubr.bf16.gmra.mrb[0].mxu0 %v2135
      %v2741 = vpop.f32.mrb[0].mxu0
      %v2742 = vadd.f32 %v2677, %v2741
      %v2743 = vpop.f32.mrb[0].mxu0
      %v2744 = vpop.f32.mrb[0].mxu0
      %v2745 = vadd.f32 %v2680, %v2744
      %v2746 = vpop.f32.mrb[0].mxu0
      %2747 = vmatprep.mubr.bf16.mxu0 %v2142
      %2748 = vmatmul.mubr.bf16.gmra.mrb[0].mxu0 %v2141
      %v2749 = vpop.f32.mrb[0].mxu0
      %v2750 = vadd.f32 %v2685, %v2749
      %v2751 = vpop.f32.mrb[0].mxu0
      %v2752 = vpop.f32.mrb[0].mxu0
      %v2753 = vadd.f32 %v2688, %v2752
      %v2754 = vpop.f32.mrb[0].mxu0
      %2755 = vmatprep.mubr.bf16.mxu0 %v2148
      %2756 = vmatmul.mubr.bf16.gmra.mrb[0].mxu0 %v2147
      %v2757 = vpop.f32.mrb[0].mxu0
      %v2758 = vadd.f32 %v2693, %v2757
      %v2759 = vpop.f32.mrb[0].mxu0
      %v2760 = vpop.f32.mrb[0].mxu0
      %v2761 = vadd.f32 %v2696, %v2760
      %v2762 = vpop.f32.mrb[0].mxu0
      %2763 = vdwg.mxu0
      %2764 = vmatprep.subr.bf16.mxu0 0
      %2765 = vmatpush1.bf16.msra.mxu0 %v2505
      %2766 = vmatprep.subr.bf16.mxu0 0
      %2767 = vmatpush1.bf16.msra.mxu0 %v2506
      %2768 = vmatprep.subr.bf16.mxu0 0
      %2769 = vmatpush1.bf16.msra.mxu0 0
      %2770 = vmatprep.subr.bf16.mxu0 0
      %2771 = vmatpush1.bf16.msra.mxu0 0
      %2772 = vmatprep.subr.bf16.mxu0 0
      %2773 = vmatpush1.bf16.msra.mxu0 0
      %2774 = vmatprep.subr.bf16.mxu0 0
      %2775 = vmatpush1.bf16.msra.mxu0 0
      %2776 = vmatprep.subr.bf16.mxu0 0
      %2777 = vmatpush1.bf16.msra.mxu0 0
      %2778 = vmatprep.subr.bf16.mxu0 0
      %2779 = vmatpush1.bf16.msra.mxu0 0
      %2780 = vmatprep.subr.bf16.mxu0 0
      %2781 = vmatpush1.bf16.msra.mxu0 0
      %2782 = vmatprep.subr.bf16.mxu0 0
      %2783 = vmatpush1.bf16.msra.mxu0 0
      %2784 = vmatprep.subr.bf16.mxu0 0
      %2785 = vmatpush1.bf16.msra.mxu0 0
      %2786 = vmatprep.subr.bf16.mxu0 0
      %2787 = vmatpush1.bf16.msra.mxu0 0
      %2788 = vmatprep.subr.bf16.mxu0 0
      %2789 = vmatpush1.bf16.msra.mxu0 0
      %2790 = vmatprep.subr.bf16.mxu0 0
      %2791 = vmatpush1.bf16.msra.mxu0 0
      %2792 = vmatprep.subr.bf16.mxu0 0
      %2793 = vmatpush1.bf16.msra.mxu0 0
      %2794 = vmatprep.subr.bf16.mxu0 0
      %2795 = vmatpush1.bf16.msra.mxu0 0
      %2796 = vmatprep.mubr.bf16.mxu0 0
      %2797 = vmatmul.mubr.bf16.gmra.mrb[0].mxu0 %v2558
      %v2798 = vpop.f32.mrb[0].mxu0
      %v2799 = vadd.f32 %v2734, %v2798
      %v2800 = vpop.f32.mrb[0].mxu0
      %v2801 = vpop.f32.mrb[0].mxu0
      %v2802 = vadd.f32 %v2737, %v2801
      %v2803 = vpop.f32.mrb[0].mxu0
      %2804 = vmatprep.mubr.bf16.mxu0 0
      %2805 = vmatmul.mubr.bf16.gmra.mrb[0].mxu0 %v2561
      %v2806 = vpop.f32.mrb[0].mxu0
      %v2807 = vadd.f32 %v2742, %v2806
      %v2808 = vpop.f32.mrb[0].mxu0
      %v2809 = vpop.f32.mrb[0].mxu0
      %v2810 = vadd.f32 %v2745, %v2809
      %v2811 = vpop.f32.mrb[0].mxu0
      %2812 = vmatprep.mubr.bf16.mxu0 0
      %2813 = vmatmul.mubr.bf16.gmra.mrb[0].mxu0 %v2564
      %v2814 = vpop.f32.mrb[0].mxu0
      %v2815 = vadd.f32 %v2750, %v2814
      %v2816 = vpop.f32.mrb[0].mxu0
      %v2817 = vpop.f32.mrb[0].mxu0
      %v2818 = vadd.f32 %v2753, %v2817
      %v2819 = vpop.f32.mrb[0].mxu0
      %2820 = vmatprep.mubr.bf16.mxu0 0
      %2821 = vmatmul.mubr.bf16.gmra.mrb[0].mxu0 %v2567
      %v2822 = vpop.f32.mrb[0].mxu0
      %v2823 = vadd.f32 %v2758, %v2822
      %v2824 = vpop.f32.mrb[0].mxu0
      %v2825 = vpop.f32.mrb[0].mxu0
      %v2826 = vadd.f32 %v2761, %v2825
      %v2827 = vpop.f32.mrb[0].mxu0
      %2828 = vdwg.mxu0
      %v2829 = vsel %vm1881, %v2799, 0.0
      %2830 = vadd.xlane.f32.xlu0 %v2829
      %v2831 = vpop.xlane.xlu0 %2830
      %v2832 = vsel %vm1881, %v2802, 0.0
      %2833 = vadd.xlane.f32.xlu0 %v2832
      %v2834 = vpop.xlane.xlu0 %2833
      %v2835 = vsel %vm1881, %v2807, 0.0
      %2836 = vadd.xlane.f32.xlu0 %v2835
      %v2837 = vpop.xlane.xlu0 %2836
      %v2838 = vsel %vm1881, %v2810, 0.0
      %2839 = vadd.xlane.f32.xlu0 %v2838
      %v2840 = vpop.xlane.xlu0 %2839
      %v2841 = vsel %vm1881, %v2815, 0.0
      %2842 = vadd.xlane.f32.xlu0 %v2841
      %v2843 = vpop.xlane.xlu0 %2842
      %v2844 = vsel %vm1881, %v2818, 0.0
      %2845 = vadd.xlane.f32.xlu0 %v2844
      %v2846 = vpop.xlane.xlu0 %2845
      %v2847 = vsel %vm1881, %v2823, 0.0
      %2848 = vadd.xlane.f32.xlu0 %v2847
      %v2849 = vpop.xlane.xlu0 %2848
      %v2850 = vsel %vm1881, %v2826, 0.0
      %2851 = vadd.xlane.f32.xlu0 %v2850
      %v2852 = vpop.xlane.xlu0 %2851
      %v2853 = vrcp.pop 32.0
      %v2854 = vmul.f32 %v2831, %v2853
      %v2855 = vmul.f32 %v2834, %v2853
      %v2856 = vmul.f32 %v2837, %v2853
      %v2857 = vmul.f32 %v2840, %v2853
      %v2858 = vmul.f32 %v2843, %v2853
      %v2859 = vmul.f32 %v2846, %v2853
      %v2860 = vmul.f32 %v2849, %v2853
      %v2861 = vmul.f32 %v2852, %v2853
      %v2862 = vsub.f32 %v2799, %v2854
      %v2863 = vsub.f32 %v2802, %v2855
      %v2864 = vsub.f32 %v2807, %v2856
      %v2865 = vsub.f32 %v2810, %v2857
      %v2866 = vsub.f32 %v2815, %v2858
      %v2867 = vsub.f32 %v2818, %v2859
      %v2868 = vsub.f32 %v2823, %v2860
      %v2869 = vsub.f32 %v2826, %v2861
      %v2870 = vmul.f32 %v2862, %v2862
      %v2871 = vmul.f32 %v2863, %v2863
      %v2872 = vmul.f32 %v2864, %v2864
      %v2873 = vmul.f32 %v2865, %v2865
      %v2874 = vmul.f32 %v2866, %v2866
      %v2875 = vmul.f32 %v2867, %v2867
      %v2876 = vmul.f32 %v2868, %v2868
      %v2877 = vmul.f32 %v2869, %v2869
      %v2878 = vsel %vm1881, %v2870, 0.0
      %2879 = vadd.xlane.f32.xlu0 %v2878
      %v2880 = vpop.xlane.xlu0 %2879
      %v2881 = vsel %vm1881, %v2871, 0.0
      %2882 = vadd.xlane.f32.xlu0 %v2881
      %v2883 = vpop.xlane.xlu0 %2882
      %v2884 = vsel %vm1881, %v2872, 0.0
      %2885 = vadd.xlane.f32.xlu0 %v2884
      %v2886 = vpop.xlane.xlu0 %2885
      %v2887 = vsel %vm1881, %v2873, 0.0
      %2888 = vadd.xlane.f32.xlu0 %v2887
      %v2889 = vpop.xlane.xlu0 %2888
      %v2890 = vsel %vm1881, %v2874, 0.0
      %2891 = vadd.xlane.f32.xlu0 %v2890
      %v2892 = vpop.xlane.xlu0 %2891
      %v2893 = vsel %vm1881, %v2875, 0.0
      %2894 = vadd.xlane.f32.xlu0 %v2893
      %v2895 = vpop.xlane.xlu0 %2894
      %v2896 = vsel %vm1881, %v2876, 0.0
      %2897 = vadd.xlane.f32.xlu0 %v2896
      %v2898 = vpop.xlane.xlu0 %2897
      %v2899 = vsel %vm1881, %v2877, 0.0
      %2900 = vadd.xlane.f32.xlu0 %v2899
      %v2901 = vpop.xlane.xlu0 %2900
      %v2902 = vmul.f32 %v2880, %v2853
      %v2903 = vmul.f32 %v2883, %v2853
      %v2904 = vmul.f32 %v2886, %v2853
      %v2905 = vmul.f32 %v2889, %v2853
      %v2906 = vmul.f32 %v2892, %v2853
      %v2907 = vmul.f32 %v2895, %v2853
      %v2908 = vmul.f32 %v2898, %v2853
      %v2909 = vmul.f32 %v2901, %v2853
      %v2910 = vadd.f32 %v2902, 1e-05
      %v2911 = vadd.f32 %v2903, 1e-05
      %v2912 = vadd.f32 %v2904, 1e-05
      %v2913 = vadd.f32 %v2905, 1e-05
      %v2914 = vadd.f32 %v2906, 1e-05
      %v2915 = vadd.f32 %v2907, 1e-05
      %v2916 = vadd.f32 %v2908, 1e-05
      %v2917 = vadd.f32 %v2909, 1e-05
      %v2918 = vrsqrt.pop %v2910
      %v2919 = vrsqrt.pop %v2911
      %v2920 = vrsqrt.pop %v2912
      %v2921 = vrsqrt.pop %v2913
      %v2922 = vrsqrt.pop %v2914
      %v2923 = vrsqrt.pop %v2915
      %v2924 = vrsqrt.pop %v2916
      %v2925 = vrsqrt.pop %v2917
      %v2926 = vmul.f32 %v2862, %v2918
      %v2927 = vmul.f32 %v2863, %v2919
      %v2928 = vmul.f32 %v2864, %v2920
      %v2929 = vmul.f32 %v2865, %v2921
      %v2930 = vmul.f32 %v2866, %v2922
      %v2931 = vmul.f32 %v2867, %v2923
      %v2932 = vmul.f32 %v2868, %v2924
      %v2933 = vmul.f32 %v2869, %v2925
      %v2934 = vld [vmem:[%s5] sm:$0x1]
      %v2936 = vlaneseq
      %v2937 = vshrl.u32 %v2936, 7
      %v2938 = vsub.s32 0, %v2937
      %v2939 = vrot.slane %v2934, %v2938
      %v2941 = vmul.f32 %v2926, %v2939
      %v2942 = vmul.f32 %v2927, %v2939
      %v2943 = vmul.f32 %v2928, %v2939
      %v2944 = vmul.f32 %v2929, %v2939
      %v2945 = vmul.f32 %v2930, %v2939
      %v2946 = vmul.f32 %v2931, %v2939
      %v2947 = vmul.f32 %v2932, %v2939
      %v2948 = vmul.f32 %v2933, %v2939
      %v2949 = vld [vmem:[%s6] sm:$0x1]
      %v2951 = vlaneseq
      %v2952 = vshrl.u32 %v2951, 7
      %v2953 = vsub.s32 0, %v2952
      %v2954 = vrot.slane %v2949, %v2953
      %v2956 = vadd.f32 %v2941, %v2954
      %v2957 = vadd.f32 %v2942, %v2954
      %v2958 = vadd.f32 %v2943, %v2954
      %v2959 = vadd.f32 %v2944, %v2954
      %v2960 = vadd.f32 %v2945, %v2954
      %v2961 = vadd.f32 %v2946, %v2954
      %v2962 = vadd.f32 %v2947, %v2954
      %v2963 = vadd.f32 %v2948, %v2954
      %2964 = vst.msk [vmem:[%s278] sm:$0xff] %vm1881, %v2956
      %2965 = vst.msk [vmem:[%s278 + $0x8] sm:$0xff] %vm1881, %v2957
      %2966 = vst.msk [vmem:[%s278 + $0x10] sm:$0xff] %vm1881, %v2958
      %2967 = vst.msk [vmem:[%s278 + $0x18] sm:$0xff] %vm1881, %v2959
      %2968 = vst.msk [vmem:[%s278 + $0x20] sm:$0xff] %vm1881, %v2960
      %2969 = vst.msk [vmem:[%s278 + $0x28] sm:$0xff] %vm1881, %v2961
      %2970 = vst.msk [vmem:[%s278 + $0x30] sm:$0xff] %vm1881, %v2962
      %2971 = vst.msk [vmem:[%s278 + $0x38] sm:$0xff] %vm1881, %v2963
      %p2972 = scmp.lt.s32.totalorder %s18, 1
      %s2973 = scalar_select %p2972, %s18, 1
      %s2974 = smul.addr %s2973, 8
      %s2975 = smul.addr %s2974, 8
      %s2976 = scalar_lea.vmem %s7, %s2975
      // Predicated region
      $region49: #{attention_forward.2} parent=47 // pred_check
        %p2977 = pneg %p188
      $region50: #{attention_forward.2} parent=47 // pred_check_branch
        %2979 = sbr.rel (%p2977) target = $region52
      $region51: #{attention_forward.2} parent=47 // pred_region
        _
      $region52: #{attention_forward.2} parent=47 // pred_fallthru
        _
    $region48: #{attention_forward.2} parent=5 // pred_fallthru
      _
    %p2980 = scmp.le.s32.totalorder 2, %s13
    // Predicated region
    $region53: #{attention_forward.2} parent=5 // pred_check
      %p2981 = pneg %p2980
    $region54: #{attention_forward.2} parent=5 // pred_check_branch
      %2983 = sbr.rel (%p2981) target = $region56
    $region55: #{attention_forward.2} parent=5 // pred_region
      %s2984 = ssub.s32 %s13, 2
      // Predicated region
      $region57: #{attention_forward.2} parent=55 // pred_check
        %p2985 = pneg %p194
      $region58: #{attention_forward.2} parent=55 // pred_check_branch
        %2987 = sbr.rel (%p2985) target = $region60
      $region59: #{attention_forward.2} parent=55 // pred_region
        %p2988 = scmp.lt.s32.totalorder %s19, 1
        %s2989 = scalar_select %p2988, %s19, 1
        %s2990 = smul.addr %s2989, 8
        %s2991 = smul.addr %s2990, 8
        %s2992 = scalar_lea.vmem %s7, %s2991
      $region60: #{attention_forward.2} parent=55 // pred_fallthru
        _
    $region56: #{attention_forward.2} parent=5 // pred_fallthru
      _
  $region6: #{attention_forward.2} parent=0 // loop_footer
    %s17 = sadd.s32 1, %s13
  $region7: #{attention_forward.2} parent=0 // loop_footer_branch
    %12 = sbr.rel target = $region3
  $region8: #{attention_forward.2} parent=0 // loop_exit
    _

</llo_original>
